<compile_context>
chip_gen: v7x
topology: tpu7x:2x2x1
jax: 0.10.0
libtpu: 0.0.40
codegen_flags: <defaults>
</compile_context>

<pallas_src>
import jax
import jax.numpy as jnp
from jax import lax
from jax.experimental import pallas as pl
from jax.experimental.pallas import tpu as pltpu

NEG_SLOPE = 0.01  # torch F.leaky_relu default


def _lrelu(v):
    return jnp.where(v >= 0, v, NEG_SLOPE * v)


# --------------------------- fused Pallas kernel -----------------------------

def fused_gnn_kernel(adj_ref, id_ref,
                     feat_ref, pref_ref,
                     mlp_w_ref, mlp_b_ref,
                     c1_w_ref, c1_b_ref, l1_w_ref, l1_b_ref, g1_w_ref, g1_b_ref,
                     c2_w_ref, c2_b_ref, l2_w_ref, l2_b_ref, g2_w_ref, g2_b_ref,
                     c3_w_ref, c3_b_ref, l3_w_ref, l3_b_ref, g3_w_ref, g3_b_ref,
                     out_ref, x_scratch):
    """One full GNN branch (3 GraphGAT layers + updates) for the current grid
    step (grid axis = branch: 0 -> visual, 1 -> textual)."""
    num_user = pref_ref.shape[0]
    dim_E = id_ref.shape[1]

    # ---- adjacency-derived quantities, computed once per branch ----
    adj = adj_ref[...]                                   # adj[t, s] = 1 iff s -> t
    mask = adj > 0.5
    deg = jnp.sum(adj, axis=0, keepdims=True)            # out-degree of source, [1, N]
    dis = jnp.where(deg > 0, lax.rsqrt(deg), 0.0)        # deg^-0.5, broadcast by source
    id_w = id_ref[...]

    # ---- temp_features = tanh(MLP(features)) ----
    temp = jnp.tanh(
        jnp.dot(feat_ref[...], mlp_w_ref[...], preferred_element_type=jnp.float32)
        + mlp_b_ref[...])

    # ---- x = F.normalize(cat(preference, temp), p=2, dim=1) ----
    # concat along rows done via slice writes into a VMEM scratch buffer.
    x_scratch[0:num_user, :] = pref_ref[...]
    x_scratch[num_user:, :] = temp
    x = x_scratch[...]
    x = x * lax.rsqrt(jnp.maximum(jnp.sum(x * x, axis=-1, keepdims=True), 1e-24))

    def gat(xin, w_ref, b_ref):
        """GraphGAT layer on a dense masked adjacency."""
        xw = jnp.dot(xin, w_ref[...], preferred_element_type=jnp.float32)   # [N, Do]
        # inner_product per edge: S[t, s] = sum_d xw[t, d] * leaky_relu(xw[s, d])
        scores = lax.dot_general(xw, _lrelu(xw), (((1,), (1,)), ((), ())),
                                 preferred_element_type=jnp.float32)        # [N, N]
        gate = jax.nn.sigmoid(scores * dis)               # sigmoid(deg_src^-0.5 * ip)
        t2 = jnp.where(mask, scores * gate, -1e30)        # mask BEFORE exp (no overflow)
        m = jnp.max(t2, axis=-1, keepdims=True)
        e = jnp.where(mask, jnp.exp(t2 - m), 0.0)
        denom = jnp.sum(e, axis=-1, keepdims=True) + 1e-16
        attn = e * pl.reciprocal(denom, approx=True)      # softmax over incoming edges
        agg = jnp.dot(attn, xw, preferred_element_type=jnp.float32) + b_ref[...]
        # update(): + bias then F.normalize(p=2, dim=-1)
        ss = jnp.sum(agg * agg, axis=-1, keepdims=True)
        return agg * lax.rsqrt(jnp.maximum(ss, 1e-24))

    def layer(xin, cw, cb, lw, lb, gw, gb):
        h = _lrelu(gat(xin, cw, cb))
        x_hat = _lrelu(jnp.dot(xin, lw[...], preferred_element_type=jnp.float32)
                       + lb[...]) + id_w
        g = jnp.dot(h, gw[...], preferred_element_type=jnp.float32) + gb[...]
        return _lrelu(g + x_hat)

    x1 = layer(x,  c1_w_ref, c1_b_ref, l1_w_ref, l1_b_ref, g1_w_ref, g1_b_ref)
    x2 = layer(x1, c2_w_ref, c2_b_ref, l2_w_ref, l2_b_ref, g2_w_ref, g2_b_ref)
    x3 = layer(x2, c3_w_ref, c3_b_ref, l3_w_ref, l3_b_ref, g3_w_ref, g3_b_ref)

    # concat(x1, x2, x3, dim=1) written straight into the output block
    out_ref[:, 0:dim_E] = x1.astype(out_ref.dtype)
    out_ref[:, dim_E:2 * dim_E] = x2.astype(out_ref.dtype)
    out_ref[:, 2 * dim_E:3 * dim_E] = x3.astype(out_ref.dtype)


def avg_kernel(rep_ref, out_ref):
    """representation = (v_rep + t_rep) / 2"""
    out_ref[...] = ((rep_ref[0] + rep_ref[1]) * 0.5).astype(out_ref.dtype)


# --------------------------- pallas_call wrappers ----------------------------

_BRANCH_ORDER = ('features', 'preference', 'mlp_w', 'mlp_b',
                 'c1_w', 'c1_b', 'l1_w', 'l1_b', 'g1_w', 'g1_b',
                 'c2_w', 'c2_b', 'l2_w', 'l2_b', 'g2_w', 'g2_b',
                 'c3_w', 'c3_b', 'l3_w', 'l3_b', 'g3_w', 'g3_b')


def mgat_forward(stacked, adj, id_weight):
    """stacked: dict of [2, rows, cols] per-branch (padded) params; branch 0 =
    visual, branch 1 = textual.  adj/id_weight are shared across branches."""
    N = adj.shape[0]
    dim_E = id_weight.shape[1]
    DL = stacked['preference'].shape[2]

    branch_args = [stacked[k] for k in _BRANCH_ORDER]

    def branch_spec(a):
        r, c = a.shape[1], a.shape[2]
        return pl.BlockSpec((None, r, c), lambda b: (b, 0, 0))

    grid_spec = pltpu.PrefetchScalarGridSpec(
        num_scalar_prefetch=0,
        grid=(2,),                                          # one grid step per branch
        in_specs=[pl.BlockSpec((N, N), lambda b: (0, 0)),        # adj (shared)
                  pl.BlockSpec((N, dim_E), lambda b: (0, 0))]    # id_embedding (shared)
                 + [branch_spec(a) for a in branch_args],
        out_specs=pl.BlockSpec((None, N, 3 * dim_E), lambda b: (b, 0, 0)),
        scratch_shapes=[pltpu.VMEM((N, DL), jnp.float32)],
    )

    reps = pl.pallas_call(
        fused_gnn_kernel,
        out_shape=jax.ShapeDtypeStruct((2, N, 3 * dim_E), jnp.float32),
        grid_spec=grid_spec,
        compiler_params=pltpu.CompilerParams(
            dimension_semantics=("parallel",)),             # v7x: one branch per TC
    )(adj, id_weight, *branch_args)

    return pl.pallas_call(
        avg_kernel,
        out_shape=jax.ShapeDtypeStruct((N, 3 * dim_E), jnp.float32),
        in_specs=[pl.BlockSpec(memory_space=pltpu.MemorySpace.VMEM)],
        out_specs=pl.BlockSpec(memory_space=pltpu.MemorySpace.VMEM),
    )(reps)


# --------------------------- deterministic init ------------------------------

def xavier_normal(key, shape):
    std = (2.0 / (shape[0] + shape[1])) ** 0.5
    return (std * jax.random.normal(key, shape)).astype(jnp.float32)


def init_gnn_params(key, num_user, dim_feat, dim_latent, dim_E):
    ks = jax.random.split(key, 16)
    z = lambda d: jnp.zeros((1, d), jnp.float32)
    u = lambda k, d: (0.1 * jax.random.uniform(k, (1, d), minval=-1.0, maxval=1.0)
                      ).astype(jnp.float32)
    p = {}
    p['preference'] = xavier_normal(ks[0], (num_user, dim_latent))
    p['mlp_w'] = xavier_normal(ks[1], (dim_feat, dim_latent)); p['mlp_b'] = z(dim_latent)
    p['c1_w'] = xavier_normal(ks[2], (dim_latent, dim_latent)); p['c1_b'] = u(ks[3], dim_latent)
    p['l1_w'] = xavier_normal(ks[4], (dim_latent, dim_E)); p['l1_b'] = z(dim_E)
    p['g1_w'] = xavier_normal(ks[5], (dim_latent, dim_E)); p['g1_b'] = z(dim_E)
    p['c2_w'] = xavier_normal(ks[6], (dim_E, dim_E)); p['c2_b'] = u(ks[7], dim_E)
    p['l2_w'] = xavier_normal(ks[8], (dim_E, dim_E)); p['l2_b'] = z(dim_E)
    p['g2_w'] = xavier_normal(ks[9], (dim_E, dim_E)); p['g2_b'] = z(dim_E)
    p['c3_w'] = xavier_normal(ks[10], (dim_E, dim_E)); p['c3_b'] = u(ks[11], dim_E)
    p['l3_w'] = xavier_normal(ks[12], (dim_E, dim_E)); p['l3_b'] = z(dim_E)
    p['g3_w'] = xavier_normal(ks[13], (dim_E, dim_E)); p['g3_b'] = z(dim_E)
    return p


def _round_up(x, m=128):
    return ((x + m - 1) // m) * m


def _pad2(a, rows, cols):
    return jnp.pad(a, ((0, rows - a.shape[0]), (0, cols - a.shape[1])))


def stack_branches(v_params, t_params, v_feat, t_feat, dim_E):
    """Zero-pad both branches to common lane-dense dims and stack along axis 0.
    Zero padding is numerically exact for this model."""
    DF = _round_up(max(v_feat.shape[1], t_feat.shape[1]))
    DL = _round_up(max(v_params['mlp_w'].shape[1], t_params['mlp_w'].shape[1]))
    DE = dim_E
    v = dict(v_params, features=v_feat)
    t = dict(t_params, features=t_feat)

    targets = {
        'features': (None, DF), 'preference': (None, DL),
        'mlp_w': (DF, DL), 'mlp_b': (1, DL),
        'c1_w': (DL, DL), 'c1_b': (1, DL),
        'l1_w': (DL, DE), 'l1_b': (1, DE),
        'g1_w': (DL, DE), 'g1_b': (1, DE),
        'c2_w': (DE, DE), 'c2_b': (1, DE),
        'l2_w': (DE, DE), 'l2_b': (1, DE),
        'g2_w': (DE, DE), 'g2_b': (1, DE),
        'c3_w': (DE, DE), 'c3_b': (1, DE),
        'l3_w': (DE, DE), 'l3_b': (1, DE),
        'g3_w': (DE, DE), 'g3_b': (1, DE),
    }
    stacked = {}
    for k, (tr, tc) in targets.items():
        r = tr if tr is not None else v[k].shape[0]
        stacked[k] = jnp.stack([_pad2(v[k], r, tc), _pad2(t[k], r, tc)], axis=0)
    return stacked


# --------------------------- driver ------------------------------------------

if __name__ == "__main__":
    num_user, num_item = 8, 8
    N = num_user + num_item
    dim_E = 64
    v_feat_dim, t_feat_dim = 128, 64

    key = jax.random.PRNGKey(0)
    k_v, k_t, k_id, k_vf, k_tf = jax.random.split(key, 5)

    v_feat = jax.random.normal(k_vf, (num_item, v_feat_dim), jnp.float32)
    t_feat = jax.random.normal(k_tf, (num_item, t_feat_dim), jnp.float32)

    # user->item edges (item ids offset by num_user), then made bidirectional
    # exactly like MGAT.__init__ (cat(edge_index, edge_index[[1,0]])).
    edges = []
    for uu in range(num_user):
        for d in (0, 1, 3):
            edges.append((uu, num_user + (uu + d) % num_item))
    ei = jnp.array(edges, jnp.int32).T                       # [2, E]
    edge_index = jnp.concatenate([ei, ei[::-1]], axis=1)     # [2, 2E]
    src, dst = edge_index[0], edge_index[1]
    # dense adjacency for the kernel: adj[target, source] = 1.0
    adj = jnp.zeros((N, N), jnp.float32).at[dst, src].set(1.0)

    id_weight = xavier_normal(k_id, (N, dim_E))               # nn.Embedding(N, dim_E)
    v_params = init_gnn_params(k_v, num_user, v_feat_dim, 256, dim_E)   # dim_latent=256
    t_params = init_gnn_params(k_t, num_user, t_feat_dim, 100, dim_E)   # dim_latent=100

    stacked = stack_branches(v_params, t_params, v_feat, t_feat, dim_E)

    out = jax.jit(mgat_forward)(stacked, adj, id_weight)
    out = jax.block_until_ready(out)

    assert out.shape == (N, 3 * dim_E), out.shape
    assert bool(jnp.all(jnp.isfinite(out)))
    print("KERNEL_OK")
</pallas_src>

<mosaic_0001>
module attributes {stable_mosaic.version = 11 : i64} {
  func.func @avg_kernel(%arg0: memref<2x16x192xf32, #tpu.memory_space<vmem>>, %arg1: memref<16x192xf32, #tpu.memory_space<vmem>>) attributes {dimension_semantics = [], scalar_prefetch = 0 : i64, scratch_operands = 0 : i64, tpu.core_type = #tpu.core_type<tc>} {
    %c0 = arith.constant 0 : index
    %c0_0 = arith.constant 0 : index
    %c0_1 = arith.constant 0 : index
    %0 = vector.load %arg0[%c0, %c0_0, %c0_1] : memref<2x16x192xf32, #tpu.memory_space<vmem>>, vector<1x16x192xf32>
    %1 = vector.shape_cast %0 : vector<1x16x192xf32> to vector<16x192xf32>
    %c1 = arith.constant 1 : index
    %c0_2 = arith.constant 0 : index
    %c0_3 = arith.constant 0 : index
    %2 = vector.load %arg0[%c1, %c0_2, %c0_3] : memref<2x16x192xf32, #tpu.memory_space<vmem>>, vector<1x16x192xf32>
    %3 = vector.shape_cast %2 : vector<1x16x192xf32> to vector<16x192xf32>
    %4 = arith.addf %1, %3 : vector<16x192xf32>
    %cst = arith.constant 5.000000e-01 : f32
    %5 = vector.broadcast %cst : f32 to vector<16x192xf32>
    %6 = arith.mulf %4, %5 : vector<16x192xf32>
    %c0_4 = arith.constant 0 : index
    %c0_5 = arith.constant 0 : index
    %7 = vector.load %arg1[%c0_4, %c0_5] : memref<16x192xf32, #tpu.memory_space<vmem>>, vector<16x192xf32>
    tpu.vector_store %arg1[%c0_4, %c0_5], %6 {strides = array<i32>} : memref<16x192xf32, #tpu.memory_space<vmem>>, vector<16x192xf32>,
    return
  }
}

module attributes {stable_mosaic.version = 11 : i64} {
  func.func @fused_gnn_kernel(%arg0: i32, %arg1: memref<16x16xf32, #tpu.memory_space<vmem>>, %arg2: memref<16x64xf32, #tpu.memory_space<vmem>>, %arg3: memref<1x8x128xf32, #tpu.memory_space<vmem>>, %arg4: memref<1x8x256xf32, #tpu.memory_space<vmem>>, %arg5: memref<1x128x256xf32, #tpu.memory_space<vmem>>, %arg6: memref<1x1x256xf32, #tpu.memory_space<vmem>>, %arg7: memref<1x256x256xf32, #tpu.memory_space<vmem>>, %arg8: memref<1x1x256xf32, #tpu.memory_space<vmem>>, %arg9: memref<1x256x64xf32, #tpu.memory_space<vmem>>, %arg10: memref<1x1x64xf32, #tpu.memory_space<vmem>>, %arg11: memref<1x256x64xf32, #tpu.memory_space<vmem>>, %arg12: memref<1x1x64xf32, #tpu.memory_space<vmem>>, %arg13: memref<1x64x64xf32, #tpu.memory_space<vmem>>, %arg14: memref<1x1x64xf32, #tpu.memory_space<vmem>>, %arg15: memref<1x64x64xf32, #tpu.memory_space<vmem>>, %arg16: memref<1x1x64xf32, #tpu.memory_space<vmem>>, %arg17: memref<1x64x64xf32, #tpu.memory_space<vmem>>, %arg18: memref<1x1x64xf32, #tpu.memory_space<vmem>>, %arg19: memref<1x64x64xf32, #tpu.memory_space<vmem>>, %arg20: memref<1x1x64xf32, #tpu.memory_space<vmem>>, %arg21: memref<1x64x64xf32, #tpu.memory_space<vmem>>, %arg22: memref<1x1x64xf32, #tpu.memory_space<vmem>>, %arg23: memref<1x64x64xf32, #tpu.memory_space<vmem>>, %arg24: memref<1x1x64xf32, #tpu.memory_space<vmem>>, %arg25: memref<1x16x192xf32, #tpu.memory_space<vmem>>, %arg26: memref<16x256xf32, #tpu.memory_space<vmem>>) attributes {dimension_semantics = [#tpu.dimension_semantics<parallel>], iteration_bounds = array<i64: 2>, scalar_prefetch = 0 : i64, scratch_operands = 1 : i64, tpu.core_type = #tpu.core_type<tc>, window_params = [{pipeline_mode = #tpu.pipeline_mode<synchronous>, transform_indices = @transform_0, window_bounds = array<i64: 16, 16>}, {pipeline_mode = #tpu.pipeline_mode<synchronous>, transform_indices = @transform_1, window_bounds = array<i64: 16, 64>}, {transform_indices = @transform_2, window_bounds = array<i64: 1, 8, 128>}, {transform_indices = @transform_3, window_bounds = array<i64: 1, 8, 256>}, {transform_indices = @transform_4, window_bounds = array<i64: 1, 128, 256>}, {transform_indices = @transform_5, window_bounds = array<i64: 1, 1, 256>}, {transform_indices = @transform_6, window_bounds = array<i64: 1, 256, 256>}, {transform_indices = @transform_7, window_bounds = array<i64: 1, 1, 256>}, {transform_indices = @transform_8, window_bounds = array<i64: 1, 256, 64>}, {transform_indices = @transform_9, window_bounds = array<i64: 1, 1, 64>}, {transform_indices = @transform_10, window_bounds = array<i64: 1, 256, 64>}, {transform_indices = @transform_11, window_bounds = array<i64: 1, 1, 64>}, {transform_indices = @transform_12, window_bounds = array<i64: 1, 64, 64>}, {transform_indices = @transform_13, window_bounds = array<i64: 1, 1, 64>}, {transform_indices = @transform_14, window_bounds = array<i64: 1, 64, 64>}, {transform_indices = @transform_15, window_bounds = array<i64: 1, 1, 64>}, {transform_indices = @transform_16, window_bounds = array<i64: 1, 64, 64>}, {transform_indices = @transform_17, window_bounds = array<i64: 1, 1, 64>}, {transform_indices = @transform_18, window_bounds = array<i64: 1, 64, 64>}, {transform_indices = @transform_19, window_bounds = array<i64: 1, 1, 64>}, {transform_indices = @transform_20, window_bounds = array<i64: 1, 64, 64>}, {transform_indices = @transform_21, window_bounds = array<i64: 1, 1, 64>}, {transform_indices = @transform_22, window_bounds = array<i64: 1, 64, 64>}, {transform_indices = @transform_23, window_bounds = array<i64: 1, 1, 64>}, {transform_indices = @transform_24, window_bounds = array<i64: 1, 16, 192>}]} {
    %c0 = arith.constant 0 : index
    %c0_0 = arith.constant 0 : index
    %0 = vector.load %arg1[%c0, %c0_0] : memref<16x16xf32, #tpu.memory_space<vmem>>, vector<16x16xf32>
    %cst = arith.constant 5.000000e-01 : f32
    %1 = vector.broadcast %cst : f32 to vector<16x16xf32>
    %2 = arith.cmpf ogt, %0, %1 : vector<16x16xf32>
    %cst_1 = arith.constant dense<0.000000e+00> : vector<16xf32>
    %3 = vector.multi_reduction <add>, %0, %cst_1 [0] : vector<16x16xf32> to vector<16xf32>
    %4 = vector.shape_cast %3 : vector<16xf32> to vector<1x16xf32>
    %cst_2 = arith.constant 0.000000e+00 : f32
    %5 = vector.broadcast %cst_2 : f32 to vector<1x16xf32>
    %6 = arith.cmpf ogt, %4, %5 : vector<1x16xf32>
    %7 = math.rsqrt %4 : vector<1x16xf32>
    %cst_3 = arith.constant 0.000000e+00 : f32
    %8 = vector.broadcast %cst_3 : f32 to vector<1x16xf32>
    %9 = arith.select %6, %7, %8 : vector<1x16xi1>, vector<1x16xf32>
    %c0_4 = arith.constant 0 : index
    %c0_5 = arith.constant 0 : index
    %10 = vector.load %arg2[%c0_4, %c0_5] : memref<16x64xf32, #tpu.memory_space<vmem>>, vector<16x64xf32>
    %c0_6 = arith.constant 0 : index
    %c0_7 = arith.constant 0 : index
    %c0_8 = arith.constant 0 : index
    %11 = vector.load %arg3[%c0_6, %c0_7, %c0_8] : memref<1x8x128xf32, #tpu.memory_space<vmem>>, vector<1x8x128xf32>
    %12 = vector.shape_cast %11 : vector<1x8x128xf32> to vector<8x128xf32>
    %c0_9 = arith.constant 0 : index
    %c0_10 = arith.constant 0 : index
    %c0_11 = arith.constant 0 : index
    %13 = vector.load %arg5[%c0_9, %c0_10, %c0_11] : memref<1x128x256xf32, #tpu.memory_space<vmem>>, vector<1x128x256xf32>
    %14 = vector.shape_cast %13 : vector<1x128x256xf32> to vector<128x256xf32>
    %cst_12 = arith.constant dense<0.000000e+00> : vector<8x256xf32>
    %15 = tpu.matmul %12, %14, %cst_12 {dimension_numbers = #tpu.dot_dimension_numbers<[1], [0], [0], [1], [0, 0, 1, 1], [], []>} : vector<8x128xf32>, vector<128x256xf32>, vector<8x256xf32> -> vector<8x256xf32>
    %c0_13 = arith.constant 0 : index
    %c0_14 = arith.constant 0 : index
    %c0_15 = arith.constant 0 : index
    %16 = vector.load %arg6[%c0_13, %c0_14, %c0_15] : memref<1x1x256xf32, #tpu.memory_space<vmem>>, vector<1x1x256xf32>
    %17 = vector.shape_cast %16 : vector<1x1x256xf32> to vector<1x256xf32>
    %18 = vector.broadcast %17 : vector<1x256xf32> to vector<8x256xf32>
    %19 = arith.addf %15, %18 : vector<8x256xf32>
    %20 = math.tanh %19 : vector<8x256xf32>
    %c0_16 = arith.constant 0 : index
    %c0_17 = arith.constant 0 : index
    %c0_18 = arith.constant 0 : index
    %21 = vector.load %arg4[%c0_16, %c0_17, %c0_18] : memref<1x8x256xf32, #tpu.memory_space<vmem>>, vector<1x8x256xf32>
    %22 = vector.shape_cast %21 : vector<1x8x256xf32> to vector<8x256xf32>
    %c0_19 = arith.constant 0 : index
    %c0_20 = arith.constant 0 : index
    %23 = vector.load %arg26[%c0_19, %c0_20] : memref<16x256xf32, #tpu.memory_space<vmem>>, vector<8x256xf32>
    tpu.vector_store %arg26[%c0_19, %c0_20], %22 {strides = array<i32>} : memref<16x256xf32, #tpu.memory_space<vmem>>, vector<8x256xf32>,
    %c8 = arith.constant 8 : index
    %c0_21 = arith.constant 0 : index
    %24 = vector.load %arg26[%c8, %c0_21] : memref<16x256xf32, #tpu.memory_space<vmem>>, vector<8x256xf32>
    tpu.vector_store %arg26[%c8, %c0_21], %20 {strides = array<i32>} : memref<16x256xf32, #tpu.memory_space<vmem>>, vector<8x256xf32>,
    %c0_22 = arith.constant 0 : index
    %c0_23 = arith.constant 0 : index
    %25 = vector.load %arg26[%c0_22, %c0_23] : memref<16x256xf32, #tpu.memory_space<vmem>>, vector<16x256xf32>
    %26 = arith.mulf %25, %25 : vector<16x256xf32>
    %cst_24 = arith.constant dense<0.000000e+00> : vector<16xf32>
    %27 = vector.multi_reduction <add>, %26, %cst_24 [1] : vector<16x256xf32> to vector<16xf32>
    %28 = vector.shape_cast %27 : vector<16xf32> to vector<16x1xf32>
    %cst_25 = arith.constant 1.000000e-24 : f32
    %29 = vector.broadcast %cst_25 : f32 to vector<16x1xf32>
    %30 = arith.maximumf %28, %29 : vector<16x1xf32>
    %31 = math.rsqrt %30 : vector<16x1xf32>
    %32 = vector.broadcast %31 : vector<16x1xf32> to vector<16x256xf32>
    %33 = arith.mulf %25, %32 : vector<16x256xf32>
    %c0_26 = arith.constant 0 : index
    %c0_27 = arith.constant 0 : index
    %c0_28 = arith.constant 0 : index
    %34 = vector.load %arg7[%c0_26, %c0_27, %c0_28] : memref<1x256x256xf32, #tpu.memory_space<vmem>>, vector<1x256x256xf32>
    %35 = vector.shape_cast %34 : vector<1x256x256xf32> to vector<256x256xf32>
    %cst_29 = arith.constant dense<0.000000e+00> : vector<16x256xf32>
    %36 = tpu.matmul %33, %35, %cst_29 {dimension_numbers = #tpu.dot_dimension_numbers<[1], [0], [0], [1], [0, 0, 1, 1], [], []>} : vector<16x256xf32>, vector<256x256xf32>, vector<16x256xf32> -> vector<16x256xf32>
    %cst_30 = arith.constant 0.000000e+00 : f32
    %37 = vector.broadcast %cst_30 : f32 to vector<16x256xf32>
    %38 = arith.cmpf oge, %36, %37 : vector<16x256xf32>
    %cst_31 = arith.constant 0.00999999977 : f32
    %39 = vector.broadcast %cst_31 : f32 to vector<16x256xf32>
    %40 = arith.mulf %39, %36 : vector<16x256xf32>
    %41 = arith.select %38, %36, %40 : vector<16x256xi1>, vector<16x256xf32>
    %cst_32 = arith.constant dense<0.000000e+00> : vector<16x16xf32>
    %42 = tpu.matmul %36, %41, %cst_32 {dimension_numbers = #tpu.dot_dimension_numbers<[1], [1], [0], [0], [0, 0, 1, 0], [], []>} : vector<16x256xf32>, vector<16x256xf32>, vector<16x16xf32> -> vector<16x16xf32>
    %43 = vector.broadcast %9 : vector<1x16xf32> to vector<16x16xf32>
    %44 = arith.mulf %42, %43 : vector<16x16xf32>
    %45 = arith.negf %44 : vector<16x16xf32>
    %46 = math.exp %45 : vector<16x16xf32>
    %cst_33 = arith.constant 1.000000e+00 : f32
    %47 = vector.broadcast %cst_33 : f32 to vector<16x16xf32>
    %48 = arith.addf %47, %46 : vector<16x16xf32>
    %49 = arith.divf %47, %48 : vector<16x16xf32>
    %50 = arith.mulf %42, %49 : vector<16x16xf32>
    %cst_34 = arith.constant -1.000000e+30 : f32
    %51 = vector.broadcast %cst_34 : f32 to vector<16x16xf32>
    %52 = arith.select %2, %50, %51 : vector<16x16xi1>, vector<16x16xf32>
    %cst_35 = arith.constant dense<0xFF800000> : vector<16xf32>
    %53 = vector.multi_reduction <maximumf>, %52, %cst_35 [1] : vector<16x16xf32> to vector<16xf32>
    %54 = vector.shape_cast %53 : vector<16xf32> to vector<16x1xf32>
    %55 = vector.broadcast %54 : vector<16x1xf32> to vector<16x16xf32>
    %56 = arith.subf %52, %55 : vector<16x16xf32>
    %57 = math.exp %56 : vector<16x16xf32>
    %cst_36 = arith.constant 0.000000e+00 : f32
    %58 = vector.broadcast %cst_36 : f32 to vector<16x16xf32>
    %59 = arith.select %2, %57, %58 : vector<16x16xi1>, vector<16x16xf32>
    %cst_37 = arith.constant dense<0.000000e+00> : vector<16xf32>
    %60 = vector.multi_reduction <add>, %59, %cst_37 [1] : vector<16x16xf32> to vector<16xf32>
    %61 = vector.shape_cast %60 : vector<16xf32> to vector<16x1xf32>
    %cst_38 = arith.constant 1.000000e-16 : f32
    %62 = vector.broadcast %cst_38 : f32 to vector<16x1xf32>
    %63 = arith.addf %61, %62 : vector<16x1xf32>
    %64 = tpu.reciprocal %63 {approx = true} : vector<16x1xf32> -> vector<16x1xf32>
    %65 = vector.broadcast %64 : vector<16x1xf32> to vector<16x16xf32>
    %66 = arith.mulf %59, %65 : vector<16x16xf32>
    %cst_39 = arith.constant dense<0.000000e+00> : vector<16x256xf32>
    %67 = tpu.matmul %66, %36, %cst_39 {dimension_numbers = #tpu.dot_dimension_numbers<[1], [0], [0], [1], [0, 0, 1, 1], [], []>} : vector<16x16xf32>, vector<16x256xf32>, vector<16x256xf32> -> vector<16x256xf32>
    %c0_40 = arith.constant 0 : index
    %c0_41 = arith.constant 0 : index
    %c0_42 = arith.constant 0 : index
    %68 = vector.load %arg8[%c0_40, %c0_41, %c0_42] : memref<1x1x256xf32, #tpu.memory_space<vmem>>, vector<1x1x256xf32>
    %69 = vector.shape_cast %68 : vector<1x1x256xf32> to vector<1x256xf32>
    %70 = vector.broadcast %69 : vector<1x256xf32> to vector<16x256xf32>
    %71 = arith.addf %67, %70 : vector<16x256xf32>
    %72 = arith.mulf %71, %71 : vector<16x256xf32>
    %cst_43 = arith.constant dense<0.000000e+00> : vector<16xf32>
    %73 = vector.multi_reduction <add>, %72, %cst_43 [1] : vector<16x256xf32> to vector<16xf32>
    %74 = vector.shape_cast %73 : vector<16xf32> to vector<16x1xf32>
    %cst_44 = arith.constant 1.000000e-24 : f32
    %75 = vector.broadcast %cst_44 : f32 to vector<16x1xf32>
    %76 = arith.maximumf %74, %75 : vector<16x1xf32>
    %77 = math.rsqrt %76 : vector<16x1xf32>
    %78 = vector.broadcast %77 : vector<16x1xf32> to vector<16x256xf32>
    %79 = arith.mulf %71, %78 : vector<16x256xf32>
    %cst_45 = arith.constant 0.000000e+00 : f32
    %80 = vector.broadcast %cst_45 : f32 to vector<16x256xf32>
    %81 = arith.cmpf oge, %79, %80 : vector<16x256xf32>
    %cst_46 = arith.constant 0.00999999977 : f32
    %82 = vector.broadcast %cst_46 : f32 to vector<16x256xf32>
    %83 = arith.mulf %82, %79 : vector<16x256xf32>
    %84 = arith.select %81, %79, %83 : vector<16x256xi1>, vector<16x256xf32>
    %c0_47 = arith.constant 0 : index
    %c0_48 = arith.constant 0 : index
    %c0_49 = arith.constant 0 : index
    %85 = vector.load %arg9[%c0_47, %c0_48, %c0_49] : memref<1x256x64xf32, #tpu.memory_space<vmem>>, vector<1x256x64xf32>
    %86 = vector.shape_cast %85 : vector<1x256x64xf32> to vector<256x64xf32>
    %cst_50 = arith.constant dense<0.000000e+00> : vector<16x64xf32>
    %87 = tpu.matmul %33, %86, %cst_50 {dimension_numbers = #tpu.dot_dimension_numbers<[1], [0], [0], [1], [0, 0, 1, 1], [], []>} : vector<16x256xf32>, vector<256x64xf32>, vector<16x64xf32> -> vector<16x64xf32>
    %c0_51 = arith.constant 0 : index
    %c0_52 = arith.constant 0 : index
    %c0_53 = arith.constant 0 : index
    %88 = vector.load %arg10[%c0_51, %c0_52, %c0_53] : memref<1x1x64xf32, #tpu.memory_space<vmem>>, vector<1x1x64xf32>
    %89 = vector.shape_cast %88 : vector<1x1x64xf32> to vector<1x64xf32>
    %90 = vector.broadcast %89 : vector<1x64xf32> to vector<16x64xf32>
    %91 = arith.addf %87, %90 : vector<16x64xf32>
    %cst_54 = arith.constant 0.000000e+00 : f32
    %92 = vector.broadcast %cst_54 : f32 to vector<16x64xf32>
    %93 = arith.cmpf oge, %91, %92 : vector<16x64xf32>
    %cst_55 = arith.constant 0.00999999977 : f32
    %94 = vector.broadcast %cst_55 : f32 to vector<16x64xf32>
    %95 = arith.mulf %94, %91 : vector<16x64xf32>
    %96 = arith.select %93, %91, %95 : vector<16x64xi1>, vector<16x64xf32>
    %97 = arith.addf %96, %10 : vector<16x64xf32>
    %c0_56 = arith.constant 0 : index
    %c0_57 = arith.constant 0 : index
    %c0_58 = arith.constant 0 : index
    %98 = vector.load %arg11[%c0_56, %c0_57, %c0_58] : memref<1x256x64xf32, #tpu.memory_space<vmem>>, vector<1x256x64xf32>
    %99 = vector.shape_cast %98 : vector<1x256x64xf32> to vector<256x64xf32>
    %cst_59 = arith.constant dense<0.000000e+00> : vector<16x64xf32>
    %100 = tpu.matmul %84, %99, %cst_59 {dimension_numbers = #tpu.dot_dimension_numbers<[1], [0], [0], [1], [0, 0, 1, 1], [], []>} : vector<16x256xf32>, vector<256x64xf32>, vector<16x64xf32> -> vector<16x64xf32>
    %c0_60 = arith.constant 0 : index
    %c0_61 = arith.constant 0 : index
    %c0_62 = arith.constant 0 : index
    %101 = vector.load %arg12[%c0_60, %c0_61, %c0_62] : memref<1x1x64xf32, #tpu.memory_space<vmem>>, vector<1x1x64xf32>
    %102 = vector.shape_cast %101 : vector<1x1x64xf32> to vector<1x64xf32>
    %103 = vector.broadcast %102 : vector<1x64xf32> to vector<16x64xf32>
    %104 = arith.addf %100, %103 : vector<16x64xf32>
    %105 = arith.addf %104, %97 : vector<16x64xf32>
    %cst_63 = arith.constant 0.000000e+00 : f32
    %106 = vector.broadcast %cst_63 : f32 to vector<16x64xf32>
    %107 = arith.cmpf oge, %105, %106 : vector<16x64xf32>
    %cst_64 = arith.constant 0.00999999977 : f32
    %108 = vector.broadcast %cst_64 : f32 to vector<16x64xf32>
    %109 = arith.mulf %108, %105 : vector<16x64xf32>
    %110 = arith.select %107, %105, %109 : vector<16x64xi1>, vector<16x64xf32>
    %c0_65 = arith.constant 0 : index
    %c0_66 = arith.constant 0 : index
    %c0_67 = arith.constant 0 : index
    %111 = vector.load %arg13[%c0_65, %c0_66, %c0_67] : memref<1x64x64xf32, #tpu.memory_space<vmem>>, vector<1x64x64xf32>
    %112 = vector.shape_cast %111 : vector<1x64x64xf32> to vector<64x64xf32>
    %cst_68 = arith.constant dense<0.000000e+00> : vector<16x64xf32>
    %113 = tpu.matmul %110, %112, %cst_68 {dimension_numbers = #tpu.dot_dimension_numbers<[1], [0], [0], [1], [0, 0, 1, 1], [], []>} : vector<16x64xf32>, vector<64x64xf32>, vector<16x64xf32> -> vector<16x64xf32>
    %cst_69 = arith.constant 0.000000e+00 : f32
    %114 = vector.broadcast %cst_69 : f32 to vector<16x64xf32>
    %115 = arith.cmpf oge, %113, %114 : vector<16x64xf32>
    %cst_70 = arith.constant 0.00999999977 : f32
    %116 = vector.broadcast %cst_70 : f32 to vector<16x64xf32>
    %117 = arith.mulf %116, %113 : vector<16x64xf32>
    %118 = arith.select %115, %113, %117 : vector<16x64xi1>, vector<16x64xf32>
    %cst_71 = arith.constant dense<0.000000e+00> : vector<16x16xf32>
    %119 = tpu.matmul %113, %118, %cst_71 {dimension_numbers = #tpu.dot_dimension_numbers<[1], [1], [0], [0], [0, 0, 1, 0], [], []>} : vector<16x64xf32>, vector<16x64xf32>, vector<16x16xf32> -> vector<16x16xf32>
    %120 = vector.broadcast %9 : vector<1x16xf32> to vector<16x16xf32>
    %121 = arith.mulf %119, %120 : vector<16x16xf32>
    %122 = arith.negf %121 : vector<16x16xf32>
    %123 = math.exp %122 : vector<16x16xf32>
    %cst_72 = arith.constant 1.000000e+00 : f32
    %124 = vector.broadcast %cst_72 : f32 to vector<16x16xf32>
    %125 = arith.addf %124, %123 : vector<16x16xf32>
    %126 = arith.divf %124, %125 : vector<16x16xf32>
    %127 = arith.mulf %119, %126 : vector<16x16xf32>
    %cst_73 = arith.constant -1.000000e+30 : f32
    %128 = vector.broadcast %cst_73 : f32 to vector<16x16xf32>
    %129 = arith.select %2, %127, %128 : vector<16x16xi1>, vector<16x16xf32>
    %cst_74 = arith.constant dense<0xFF800000> : vector<16xf32>
    %130 = vector.multi_reduction <maximumf>, %129, %cst_74 [1] : vector<16x16xf32> to vector<16xf32>
    %131 = vector.shape_cast %130 : vector<16xf32> to vector<16x1xf32>
    %132 = vector.broadcast %131 : vector<16x1xf32> to vector<16x16xf32>
    %133 = arith.subf %129, %132 : vector<16x16xf32>
    %134 = math.exp %133 : vector<16x16xf32>
    %cst_75 = arith.constant 0.000000e+00 : f32
    %135 = vector.broadcast %cst_75 : f32 to vector<16x16xf32>
    %136 = arith.select %2, %134, %135 : vector<16x16xi1>, vector<16x16xf32>
    %cst_76 = arith.constant dense<0.000000e+00> : vector<16xf32>
    %137 = vector.multi_reduction <add>, %136, %cst_76 [1] : vector<16x16xf32> to vector<16xf32>
    %138 = vector.shape_cast %137 : vector<16xf32> to vector<16x1xf32>
    %cst_77 = arith.constant 1.000000e-16 : f32
    %139 = vector.broadcast %cst_77 : f32 to vector<16x1xf32>
    %140 = arith.addf %138, %139 : vector<16x1xf32>
    %141 = tpu.reciprocal %140 {approx = true} : vector<16x1xf32> -> vector<16x1xf32>
    %142 = vector.broadcast %141 : vector<16x1xf32> to vector<16x16xf32>
    %143 = arith.mulf %136, %142 : vector<16x16xf32>
    %cst_78 = arith.constant dense<0.000000e+00> : vector<16x64xf32>
    %144 = tpu.matmul %143, %113, %cst_78 {dimension_numbers = #tpu.dot_dimension_numbers<[1], [0], [0], [1], [0, 0, 1, 1], [], []>} : vector<16x16xf32>, vector<16x64xf32>, vector<16x64xf32> -> vector<16x64xf32>
    %c0_79 = arith.constant 0 : index
    %c0_80 = arith.constant 0 : index
    %c0_81 = arith.constant 0 : index
    %145 = vector.load %arg14[%c0_79, %c0_80, %c0_81] : memref<1x1x64xf32, #tpu.memory_space<vmem>>, vector<1x1x64xf32>
    %146 = vector.shape_cast %145 : vector<1x1x64xf32> to vector<1x64xf32>
    %147 = vector.broadcast %146 : vector<1x64xf32> to vector<16x64xf32>
    %148 = arith.addf %144, %147 : vector<16x64xf32>
    %149 = arith.mulf %148, %148 : vector<16x64xf32>
    %cst_82 = arith.constant dense<0.000000e+00> : vector<16xf32>
    %150 = vector.multi_reduction <add>, %149, %cst_82 [1] : vector<16x64xf32> to vector<16xf32>
    %151 = vector.shape_cast %150 : vector<16xf32> to vector<16x1xf32>
    %cst_83 = arith.constant 1.000000e-24 : f32
    %152 = vector.broadcast %cst_83 : f32 to vector<16x1xf32>
    %153 = arith.maximumf %151, %152 : vector<16x1xf32>
    %154 = math.rsqrt %153 : vector<16x1xf32>
    %155 = vector.broadcast %154 : vector<16x1xf32> to vector<16x64xf32>
    %156 = arith.mulf %148, %155 : vector<16x64xf32>
    %cst_84 = arith.constant 0.000000e+00 : f32
    %157 = vector.broadcast %cst_84 : f32 to vector<16x64xf32>
    %158 = arith.cmpf oge, %156, %157 : vector<16x64xf32>
    %cst_85 = arith.constant 0.00999999977 : f32
    %159 = vector.broadcast %cst_85 : f32 to vector<16x64xf32>
    %160 = arith.mulf %159, %156 : vector<16x64xf32>
    %161 = arith.select %158, %156, %160 : vector<16x64xi1>, vector<16x64xf32>
    %c0_86 = arith.constant 0 : index
    %c0_87 = arith.constant 0 : index
    %c0_88 = arith.constant 0 : index
    %162 = vector.load %arg15[%c0_86, %c0_87, %c0_88] : memref<1x64x64xf32, #tpu.memory_space<vmem>>, vector<1x64x64xf32>
    %163 = vector.shape_cast %162 : vector<1x64x64xf32> to vector<64x64xf32>
    %cst_89 = arith.constant dense<0.000000e+00> : vector<16x64xf32>
    %164 = tpu.matmul %110, %163, %cst_89 {dimension_numbers = #tpu.dot_dimension_numbers<[1], [0], [0], [1], [0, 0, 1, 1], [], []>} : vector<16x64xf32>, vector<64x64xf32>, vector<16x64xf32> -> vector<16x64xf32>
    %c0_90 = arith.constant 0 : index
    %c0_91 = arith.constant 0 : index
    %c0_92 = arith.constant 0 : index
    %165 = vector.load %arg16[%c0_90, %c0_91, %c0_92] : memref<1x1x64xf32, #tpu.memory_space<vmem>>, vector<1x1x64xf32>
    %166 = vector.shape_cast %165 : vector<1x1x64xf32> to vector<1x64xf32>
    %167 = vector.broadcast %166 : vector<1x64xf32> to vector<16x64xf32>
    %168 = arith.addf %164, %167 : vector<16x64xf32>
    %cst_93 = arith.constant 0.000000e+00 : f32
    %169 = vector.broadcast %cst_93 : f32 to vector<16x64xf32>
    %170 = arith.cmpf oge, %168, %169 : vector<16x64xf32>
    %cst_94 = arith.constant 0.00999999977 : f32
    %171 = vector.broadcast %cst_94 : f32 to vector<16x64xf32>
    %172 = arith.mulf %171, %168 : vector<16x64xf32>
    %173 = arith.select %170, %168, %172 : vector<16x64xi1>, vector<16x64xf32>
    %174 = arith.addf %173, %10 : vector<16x64xf32>
    %c0_95 = arith.constant 0 : index
    %c0_96 = arith.constant 0 : index
    %c0_97 = arith.constant 0 : index
    %175 = vector.load %arg17[%c0_95, %c0_96, %c0_97] : memref<1x64x64xf32, #tpu.memory_space<vmem>>, vector<1x64x64xf32>
    %176 = vector.shape_cast %175 : vector<1x64x64xf32> to vector<64x64xf32>
    %cst_98 = arith.constant dense<0.000000e+00> : vector<16x64xf32>
    %177 = tpu.matmul %161, %176, %cst_98 {dimension_numbers = #tpu.dot_dimension_numbers<[1], [0], [0], [1], [0, 0, 1, 1], [], []>} : vector<16x64xf32>, vector<64x64xf32>, vector<16x64xf32> -> vector<16x64xf32>
    %c0_99 = arith.constant 0 : index
    %c0_100 = arith.constant 0 : index
    %c0_101 = arith.constant 0 : index
    %178 = vector.load %arg18[%c0_99, %c0_100, %c0_101] : memref<1x1x64xf32, #tpu.memory_space<vmem>>, vector<1x1x64xf32>
    %179 = vector.shape_cast %178 : vector<1x1x64xf32> to vector<1x64xf32>
    %180 = vector.broadcast %179 : vector<1x64xf32> to vector<16x64xf32>
    %181 = arith.addf %177, %180 : vector<16x64xf32>
    %182 = arith.addf %181, %174 : vector<16x64xf32>
    %cst_102 = arith.constant 0.000000e+00 : f32
    %183 = vector.broadcast %cst_102 : f32 to vector<16x64xf32>
    %184 = arith.cmpf oge, %182, %183 : vector<16x64xf32>
    %cst_103 = arith.constant 0.00999999977 : f32
    %185 = vector.broadcast %cst_103 : f32 to vector<16x64xf32>
    %186 = arith.mulf %185, %182 : vector<16x64xf32>
    %187 = arith.select %184, %182, %186 : vector<16x64xi1>, vector<16x64xf32>
    %c0_104 = arith.constant 0 : index
    %c0_105 = arith.constant 0 : index
    %c0_106 = arith.constant 0 : index
    %188 = vector.load %arg19[%c0_104, %c0_105, %c0_106] : memref<1x64x64xf32, #tpu.memory_space<vmem>>, vector<1x64x64xf32>
    %189 = vector.shape_cast %188 : vector<1x64x64xf32> to vector<64x64xf32>
    %cst_107 = arith.constant dense<0.000000e+00> : vector<16x64xf32>
    %190 = tpu.matmul %187, %189, %cst_107 {dimension_numbers = #tpu.dot_dimension_numbers<[1], [0], [0], [1], [0, 0, 1, 1], [], []>} : vector<16x64xf32>, vector<64x64xf32>, vector<16x64xf32> -> vector<16x64xf32>
    %cst_108 = arith.constant 0.000000e+00 : f32
    %191 = vector.broadcast %cst_108 : f32 to vector<16x64xf32>
    %192 = arith.cmpf oge, %190, %191 : vector<16x64xf32>
    %cst_109 = arith.constant 0.00999999977 : f32
    %193 = vector.broadcast %cst_109 : f32 to vector<16x64xf32>
    %194 = arith.mulf %193, %190 : vector<16x64xf32>
    %195 = arith.select %192, %190, %194 : vector<16x64xi1>, vector<16x64xf32>
    %cst_110 = arith.constant dense<0.000000e+00> : vector<16x16xf32>
    %196 = tpu.matmul %190, %195, %cst_110 {dimension_numbers = #tpu.dot_dimension_numbers<[1], [1], [0], [0], [0, 0, 1, 0], [], []>} : vector<16x64xf32>, vector<16x64xf32>, vector<16x16xf32> -> vector<16x16xf32>
    %197 = vector.broadcast %9 : vector<1x16xf32> to vector<16x16xf32>
    %198 = arith.mulf %196, %197 : vector<16x16xf32>
    %199 = arith.negf %198 : vector<16x16xf32>
    %200 = math.exp %199 : vector<16x16xf32>
    %cst_111 = arith.constant 1.000000e+00 : f32
    %201 = vector.broadcast %cst_111 : f32 to vector<16x16xf32>
    %202 = arith.addf %201, %200 : vector<16x16xf32>
    %203 = arith.divf %201, %202 : vector<16x16xf32>
    %204 = arith.mulf %196, %203 : vector<16x16xf32>
    %cst_112 = arith.constant -1.000000e+30 : f32
    %205 = vector.broadcast %cst_112 : f32 to vector<16x16xf32>
    %206 = arith.select %2, %204, %205 : vector<16x16xi1>, vector<16x16xf32>
    %cst_113 = arith.constant dense<0xFF800000> : vector<16xf32>
    %207 = vector.multi_reduction <maximumf>, %206, %cst_113 [1] : vector<16x16xf32> to vector<16xf32>
    %208 = vector.shape_cast %207 : vector<16xf32> to vector<16x1xf32>
    %209 = vector.broadcast %208 : vector<16x1xf32> to vector<16x16xf32>
    %210 = arith.subf %206, %209 : vector<16x16xf32>
    %211 = math.exp %210 : vector<16x16xf32>
    %cst_114 = arith.constant 0.000000e+00 : f32
    %212 = vector.broadcast %cst_114 : f32 to vector<16x16xf32>
    %213 = arith.select %2, %211, %212 : vector<16x16xi1>, vector<16x16xf32>
    %cst_115 = arith.constant dense<0.000000e+00> : vector<16xf32>
    %214 = vector.multi_reduction <add>, %213, %cst_115 [1] : vector<16x16xf32> to vector<16xf32>
    %215 = vector.shape_cast %214 : vector<16xf32> to vector<16x1xf32>
    %cst_116 = arith.constant 1.000000e-16 : f32
    %216 = vector.broadcast %cst_116 : f32 to vector<16x1xf32>
    %217 = arith.addf %215, %216 : vector<16x1xf32>
    %218 = tpu.reciprocal %217 {approx = true} : vector<16x1xf32> -> vector<16x1xf32>
    %219 = vector.broadcast %218 : vector<16x1xf32> to vector<16x16xf32>
    %220 = arith.mulf %213, %219 : vector<16x16xf32>
    %cst_117 = arith.constant dense<0.000000e+00> : vector<16x64xf32>
    %221 = tpu.matmul %220, %190, %cst_117 {dimension_numbers = #tpu.dot_dimension_numbers<[1], [0], [0], [1], [0, 0, 1, 1], [], []>} : vector<16x16xf32>, vector<16x64xf32>, vector<16x64xf32> -> vector<16x64xf32>
    %c0_118 = arith.constant 0 : index
    %c0_119 = arith.constant 0 : index
    %c0_120 = arith.constant 0 : index
    %222 = vector.load %arg20[%c0_118, %c0_119, %c0_120] : memref<1x1x64xf32, #tpu.memory_space<vmem>>, vector<1x1x64xf32>
    %223 = vector.shape_cast %222 : vector<1x1x64xf32> to vector<1x64xf32>
    %224 = vector.broadcast %223 : vector<1x64xf32> to vector<16x64xf32>
    %225 = arith.addf %221, %224 : vector<16x64xf32>
    %226 = arith.mulf %225, %225 : vector<16x64xf32>
    %cst_121 = arith.constant dense<0.000000e+00> : vector<16xf32>
    %227 = vector.multi_reduction <add>, %226, %cst_121 [1] : vector<16x64xf32> to vector<16xf32>
    %228 = vector.shape_cast %227 : vector<16xf32> to vector<16x1xf32>
    %cst_122 = arith.constant 1.000000e-24 : f32
    %229 = vector.broadcast %cst_122 : f32 to vector<16x1xf32>
    %230 = arith.maximumf %228, %229 : vector<16x1xf32>
    %231 = math.rsqrt %230 : vector<16x1xf32>
    %232 = vector.broadcast %231 : vector<16x1xf32> to vector<16x64xf32>
    %233 = arith.mulf %225, %232 : vector<16x64xf32>
    %cst_123 = arith.constant 0.000000e+00 : f32
    %234 = vector.broadcast %cst_123 : f32 to vector<16x64xf32>
    %235 = arith.cmpf oge, %233, %234 : vector<16x64xf32>
    %cst_124 = arith.constant 0.00999999977 : f32
    %236 = vector.broadcast %cst_124 : f32 to vector<16x64xf32>
    %237 = arith.mulf %236, %233 : vector<16x64xf32>
    %238 = arith.select %235, %233, %237 : vector<16x64xi1>, vector<16x64xf32>
    %c0_125 = arith.constant 0 : index
    %c0_126 = arith.constant 0 : index
    %c0_127 = arith.constant 0 : index
    %239 = vector.load %arg21[%c0_125, %c0_126, %c0_127] : memref<1x64x64xf32, #tpu.memory_space<vmem>>, vector<1x64x64xf32>
    %240 = vector.shape_cast %239 : vector<1x64x64xf32> to vector<64x64xf32>
    %cst_128 = arith.constant dense<0.000000e+00> : vector<16x64xf32>
    %241 = tpu.matmul %187, %240, %cst_128 {dimension_numbers = #tpu.dot_dimension_numbers<[1], [0], [0], [1], [0, 0, 1, 1], [], []>} : vector<16x64xf32>, vector<64x64xf32>, vector<16x64xf32> -> vector<16x64xf32>
    %c0_129 = arith.constant 0 : index
    %c0_130 = arith.constant 0 : index
    %c0_131 = arith.constant 0 : index
    %242 = vector.load %arg22[%c0_129, %c0_130, %c0_131] : memref<1x1x64xf32, #tpu.memory_space<vmem>>, vector<1x1x64xf32>
    %243 = vector.shape_cast %242 : vector<1x1x64xf32> to vector<1x64xf32>
    %244 = vector.broadcast %243 : vector<1x64xf32> to vector<16x64xf32>
    %245 = arith.addf %241, %244 : vector<16x64xf32>
    %cst_132 = arith.constant 0.000000e+00 : f32
    %246 = vector.broadcast %cst_132 : f32 to vector<16x64xf32>
    %247 = arith.cmpf oge, %245, %246 : vector<16x64xf32>
    %cst_133 = arith.constant 0.00999999977 : f32
    %248 = vector.broadcast %cst_133 : f32 to vector<16x64xf32>
    %249 = arith.mulf %248, %245 : vector<16x64xf32>
    %250 = arith.select %247, %245, %249 : vector<16x64xi1>, vector<16x64xf32>
    %251 = arith.addf %250, %10 : vector<16x64xf32>
    %c0_134 = arith.constant 0 : index
    %c0_135 = arith.constant 0 : index
    %c0_136 = arith.constant 0 : index
    %252 = vector.load %arg23[%c0_134, %c0_135, %c0_136] : memref<1x64x64xf32, #tpu.memory_space<vmem>>, vector<1x64x64xf32>
    %253 = vector.shape_cast %252 : vector<1x64x64xf32> to vector<64x64xf32>
    %cst_137 = arith.constant dense<0.000000e+00> : vector<16x64xf32>
    %254 = tpu.matmul %238, %253, %cst_137 {dimension_numbers = #tpu.dot_dimension_numbers<[1], [0], [0], [1], [0, 0, 1, 1], [], []>} : vector<16x64xf32>, vector<64x64xf32>, vector<16x64xf32> -> vector<16x64xf32>
    %c0_138 = arith.constant 0 : index
    %c0_139 = arith.constant 0 : index
    %c0_140 = arith.constant 0 : index
    %255 = vector.load %arg24[%c0_138, %c0_139, %c0_140] : memref<1x1x64xf32, #tpu.memory_space<vmem>>, vector<1x1x64xf32>
    %256 = vector.shape_cast %255 : vector<1x1x64xf32> to vector<1x64xf32>
    %257 = vector.broadcast %256 : vector<1x64xf32> to vector<16x64xf32>
    %258 = arith.addf %254, %257 : vector<16x64xf32>
    %259 = arith.addf %258, %251 : vector<16x64xf32>
    %cst_141 = arith.constant 0.000000e+00 : f32
    %260 = vector.broadcast %cst_141 : f32 to vector<16x64xf32>
    %261 = arith.cmpf oge, %259, %260 : vector<16x64xf32>
    %cst_142 = arith.constant 0.00999999977 : f32
    %262 = vector.broadcast %cst_142 : f32 to vector<16x64xf32>
    %263 = arith.mulf %262, %259 : vector<16x64xf32>
    %264 = arith.select %261, %259, %263 : vector<16x64xi1>, vector<16x64xf32>
    %c0_143 = arith.constant 0 : index
    %c0_144 = arith.constant 0 : index
    %c0_145 = arith.constant 0 : index
    %265 = vector.load %arg25[%c0_143, %c0_144, %c0_145] : memref<1x16x192xf32, #tpu.memory_space<vmem>>, vector<1x16x64xf32>
    %266 = vector.shape_cast %265 : vector<1x16x64xf32> to vector<16x64xf32>
    %267 = vector.shape_cast %110 : vector<16x64xf32> to vector<1x16x64xf32>
    tpu.vector_store %arg25[%c0_143, %c0_144, %c0_145], %267 {strides = array<i32>} : memref<1x16x192xf32, #tpu.memory_space<vmem>>, vector<1x16x64xf32>,
    %c0_146 = arith.constant 0 : index
    %c0_147 = arith.constant 0 : index
    %c64 = arith.constant 64 : index
    %268 = vector.load %arg25[%c0_146, %c0_147, %c64] : memref<1x16x192xf32, #tpu.memory_space<vmem>>, vector<1x16x64xf32>
    %269 = vector.shape_cast %268 : vector<1x16x64xf32> to vector<16x64xf32>
    %270 = vector.shape_cast %187 : vector<16x64xf32> to vector<1x16x64xf32>
    tpu.vector_store %arg25[%c0_146, %c0_147, %c64], %270 {strides = array<i32>} : memref<1x16x192xf32, #tpu.memory_space<vmem>>, vector<1x16x64xf32>,
    %c0_148 = arith.constant 0 : index
    %c0_149 = arith.constant 0 : index
    %c128 = arith.constant 128 : index
    %271 = vector.load %arg25[%c0_148, %c0_149, %c128] : memref<1x16x192xf32, #tpu.memory_space<vmem>>, vector<1x16x64xf32>
    %272 = vector.shape_cast %271 : vector<1x16x64xf32> to vector<16x64xf32>
    %273 = vector.shape_cast %264 : vector<16x64xf32> to vector<1x16x64xf32>
    tpu.vector_store %arg25[%c0_148, %c0_149, %c128], %273 {strides = array<i32>} : memref<1x16x192xf32, #tpu.memory_space<vmem>>, vector<1x16x64xf32>,
    return
  }
  func.func @transform_0(%arg0: i32) -> (i32, i32) {
    %c0_i32 = arith.constant 0 : i32
    %c0_i32_0 = arith.constant 0 : i32
    %c0_i32_1 = arith.constant 0 : i32
    return %c0_i32, %c0_i32_0 : i32, i32
  }
  func.func @transform_1(%arg0: i32) -> (i32, i32) {
    %c0_i32 = arith.constant 0 : i32
    %c0_i32_0 = arith.constant 0 : i32
    %c0_i32_1 = arith.constant 0 : i32
    return %c0_i32, %c0_i32_0 : i32, i32
  }
  func.func @transform_2(%arg0: i32) -> (i32, i32, i32) {
    %c0_i32 = arith.constant 0 : i32
    %c0_i32_0 = arith.constant 0 : i32
    %c0_i32_1 = arith.constant 0 : i32
    return %arg0, %c0_i32, %c0_i32_0 : i32, i32, i32
  }
  func.func @transform_3(%arg0: i32) -> (i32, i32, i32) {
    %c0_i32 = arith.constant 0 : i32
    %c0_i32_0 = arith.constant 0 : i32
    %c0_i32_1 = arith.constant 0 : i32
    return %arg0, %c0_i32, %c0_i32_0 : i32, i32, i32
  }
  func.func @transform_4(%arg0: i32) -> (i32, i32, i32) {
    %c0_i32 = arith.constant 0 : i32
    %c0_i32_0 = arith.constant 0 : i32
    %c0_i32_1 = arith.constant 0 : i32
    return %arg0, %c0_i32, %c0_i32_0 : i32, i32, i32
  }
  func.func @transform_5(%arg0: i32) -> (i32, i32, i32) {
    %c0_i32 = arith.constant 0 : i32
    %c0_i32_0 = arith.constant 0 : i32
    %c0_i32_1 = arith.constant 0 : i32
    return %arg0, %c0_i32, %c0_i32_0 : i32, i32, i32
  }
  func.func @transform_6(%arg0: i32) -> (i32, i32, i32) {
    %c0_i32 = arith.constant 0 : i32
    %c0_i32_0 = arith.constant 0 : i32
    %c0_i32_1 = arith.constant 0 : i32
    return %arg0, %c0_i32, %c0_i32_0 : i32, i32, i32
  }
  func.func @transform_7(%arg0: i32) -> (i32, i32, i32) {
    %c0_i32 = arith.constant 0 : i32
    %c0_i32_0 = arith.constant 0 : i32
    %c0_i32_1 = arith.constant 0 : i32
    return %arg0, %c0_i32, %c0_i32_0 : i32, i32, i32
  }
  func.func @transform_8(%arg0: i32) -> (i32, i32, i32) {
    %c0_i32 = arith.constant 0 : i32
    %c0_i32_0 = arith.constant 0 : i32
    %c0_i32_1 = arith.constant 0 : i32
    return %arg0, %c0_i32, %c0_i32_0 : i32, i32, i32
  }
  func.func @transform_9(%arg0: i32) -> (i32, i32, i32) {
    %c0_i32 = arith.constant 0 : i32
    %c0_i32_0 = arith.constant 0 : i32
    %c0_i32_1 = arith.constant 0 : i32
    return %arg0, %c0_i32, %c0_i32_0 : i32, i32, i32
  }
  func.func @transform_10(%arg0: i32) -> (i32, i32, i32) {
    %c0_i32 = arith.constant 0 : i32
    %c0_i32_0 = arith.constant 0 : i32
    %c0_i32_1 = arith.constant 0 : i32
    return %arg0, %c0_i32, %c0_i32_0 : i32, i32, i32
  }
  func.func @transform_11(%arg0: i32) -> (i32, i32, i32) {
    %c0_i32 = arith.constant 0 : i32
    %c0_i32_0 = arith.constant 0 : i32
    %c0_i32_1 = arith.constant 0 : i32
    return %arg0, %c0_i32, %c0_i32_0 : i32, i32, i32
  }
  func.func @transform_12(%arg0: i32) -> (i32, i32, i32) {
    %c0_i32 = arith.constant 0 : i32
    %c0_i32_0 = arith.constant 0 : i32
    %c0_i32_1 = arith.constant 0 : i32
    return %arg0, %c0_i32, %c0_i32_0 : i32, i32, i32
  }
  func.func @transform_13(%arg0: i32) -> (i32, i32, i32) {
    %c0_i32 = arith.constant 0 : i32
    %c0_i32_0 = arith.constant 0 : i32
    %c0_i32_1 = arith.constant 0 : i32
    return %arg0, %c0_i32, %c0_i32_0 : i32, i32, i32
  }
  func.func @transform_14(%arg0: i32) -> (i32, i32, i32) {
    %c0_i32 = arith.constant 0 : i32
    %c0_i32_0 = arith.constant 0 : i32
    %c0_i32_1 = arith.constant 0 : i32
    return %arg0, %c0_i32, %c0_i32_0 : i32, i32, i32
  }
  func.func @transform_15(%arg0: i32) -> (i32, i32, i32) {
    %c0_i32 = arith.constant 0 : i32
    %c0_i32_0 = arith.constant 0 : i32
    %c0_i32_1 = arith.constant 0 : i32
    return %arg0, %c0_i32, %c0_i32_0 : i32, i32, i32
  }
  func.func @transform_16(%arg0: i32) -> (i32, i32, i32) {
    %c0_i32 = arith.constant 0 : i32
    %c0_i32_0 = arith.constant 0 : i32
    %c0_i32_1 = arith.constant 0 : i32
    return %arg0, %c0_i32, %c0_i32_0 : i32, i32, i32
  }
  func.func @transform_17(%arg0: i32) -> (i32, i32, i32) {
    %c0_i32 = arith.constant 0 : i32
    %c0_i32_0 = arith.constant 0 : i32
    %c0_i32_1 = arith.constant 0 : i32
    return %arg0, %c0_i32, %c0_i32_0 : i32, i32, i32
  }
  func.func @transform_18(%arg0: i32) -> (i32, i32, i32) {
    %c0_i32 = arith.constant 0 : i32
    %c0_i32_0 = arith.constant 0 : i32
    %c0_i32_1 = arith.constant 0 : i32
    return %arg0, %c0_i32, %c0_i32_0 : i32, i32, i32
  }
  func.func @transform_19(%arg0: i32) -> (i32, i32, i32) {
    %c0_i32 = arith.constant 0 : i32
    %c0_i32_0 = arith.constant 0 : i32
    %c0_i32_1 = arith.constant 0 : i32
    return %arg0, %c0_i32, %c0_i32_0 : i32, i32, i32
  }
  func.func @transform_20(%arg0: i32) -> (i32, i32, i32) {
    %c0_i32 = arith.constant 0 : i32
    %c0_i32_0 = arith.constant 0 : i32
    %c0_i32_1 = arith.constant 0 : i32
    return %arg0, %c0_i32, %c0_i32_0 : i32, i32, i32
  }
  func.func @transform_21(%arg0: i32) -> (i32, i32, i32) {
    %c0_i32 = arith.constant 0 : i32
    %c0_i32_0 = arith.constant 0 : i32
    %c0_i32_1 = arith.constant 0 : i32
    return %arg0, %c0_i32, %c0_i32_0 : i32, i32, i32
  }
  func.func @transform_22(%arg0: i32) -> (i32, i32, i32) {
    %c0_i32 = arith.constant 0 : i32
    %c0_i32_0 = arith.constant 0 : i32
    %c0_i32_1 = arith.constant 0 : i32
    return %arg0, %c0_i32, %c0_i32_0 : i32, i32, i32
  }
  func.func @transform_23(%arg0: i32) -> (i32, i32, i32) {
    %c0_i32 = arith.constant 0 : i32
    %c0_i32_0 = arith.constant 0 : i32
    %c0_i32_1 = arith.constant 0 : i32
    return %arg0, %c0_i32, %c0_i32_0 : i32, i32, i32
  }
  func.func @transform_24(%arg0: i32) -> (i32, i32, i32) {
    %c0_i32 = arith.constant 0 : i32
    %c0_i32_0 = arith.constant 0 : i32
    %c0_i32_1 = arith.constant 0 : i32
    return %arg0, %c0_i32, %c0_i32_0 : i32, i32, i32
  }
}

</mosaic_0001>

<llo_original>
// kernel: mgat_forward.3
$region0: #{mgat_forward.3}
  #allocation0 [shape = 'u32[]', space=smem, size = 0x4, offset = 0x4, fixed_abs, tag = 'smem constant byte address 0x4 - core index']
  #allocation1 [shape = 'u32[144,128]{1,0:T(1,128)}', space=vmem, size = 0x12000, scoped, tag = 'internal scratch']
  %s0 = inlined_call_operand.vmem [shape: f32[2,16,192], index: 0, kind: input, shape index: {}]
  %s1 = inlined_call_operand.hbm [shape: f32[16,192], index: 1, kind: output, shape index: {}]
  %s2 = sld [smem:[#allocation0]]
  $region14: #{mgat_forward.3} parent=0
    _
  %s4 = ssub.s32 1, %s2
  %s5 = scalar_select 0, %s4, %s2
  $region1: #{mgat_forward.3} parent=0
    #allocation2 [shape = 'u8[16384]{0}', space=vmem, size = 0x4000, scoped, tag = 'output window, operand 0, single buffered']
    #allocation3 [shape = 's32[1]{0}', space=sflag, size = 0x4, scoped, tag = 'scoped memory for mgat_forward.3']
    %6 = vsyncpa [#allocation3], 0
    // Predicated region
    $region2: #{mgat_forward.3} parent=1 // pred_check
      _
    $region3: #{mgat_forward.3} parent=1 // pred_check_branch
      %8 = sbr.rel (0) target = $region5
    $region4: #{mgat_forward.3} parent=1 // pred_region
      _
    $region5: #{mgat_forward.3} parent=1 // pred_fallthru
      _
    %v9 = vld [vmem:[%s0] sm:$0xff]
    %v10 = vld [vmem:[%s0 + $0x8] sm:$0xff]
    %v11 = vld [vmem:[%s0 + $0x10] sm:$0xff]
    %v12 = vld [vmem:[%s0 + $0x18] sm:$0xff]
    %s13 = scalar_lea.vmem %s0, 32
    %v14 = vld [vmem:[%s13] sm:$0xff]
    %v15 = vld [vmem:[%s13 + $0x8] sm:$0xff]
    %v16 = vld [vmem:[%s13 + $0x10] sm:$0xff]
    %v17 = vld [vmem:[%s13 + $0x18] sm:$0xff]
    %v18 = vadd.f32 %v9, %v14
    %v19 = vadd.f32 %v10, %v15
    %v20 = vadd.f32 %v11, %v16
    %v21 = vadd.f32 %v12, %v17
    %v22 = vmul.f32 %v18, 0.5
    %v23 = vmul.f32 %v19, 0.5
    %v24 = vmul.f32 %v20, 0.5
    %v25 = vmul.f32 %v21, 0.5
    %26 = vst [vmem:[#allocation2] sm:$0xff] %v22
    %vm27 = vcmask 523264
    %28 = vst.msk [vmem:[#allocation2 + $0x8] sm:$0xff] %vm27, %v23
    %29 = vst [vmem:[#allocation2 + $0x10] sm:$0xff] %v24
    %30 = vst.msk [vmem:[#allocation2 + $0x18] sm:$0xff] %vm27, %v25
    // Predicated region
    $region6: #{mgat_forward.3} parent=1 // pred_check
      _
    $region7: #{mgat_forward.3} parent=1 // pred_check_branch
      %32 = sbr.rel (0) target = $region9
    $region8: #{mgat_forward.3} parent=1 // pred_region
      %s34 = ssub.s32 512, 512
      %35 = vsyncadd [#allocation3], %s34
      %s36 = sshll.u32 [#allocation2], 4
      %s37 = int_to_ptr.vmem [resolvable:$true] %s36
      %42 = dma.vmem_to_hbm [thread:$0]  %s37, 512, %s1, [#allocation3], 256, 256, 16
    $region9: #{mgat_forward.3} parent=1 // pred_fallthru
      _
    // Predicated region
    $region10: #{mgat_forward.3} parent=1 // pred_check
      _
    $region11: #{mgat_forward.3} parent=1 // pred_check_branch
      %44 = sbr.rel (0) target = $region13
    $region12: #{mgat_forward.3} parent=1 // pred_region
      %45 = dma.done [#allocation3], 512
    $region13: #{mgat_forward.3} parent=1 // pred_fallthru
      _
    %46 = vsyncpa [#allocation3], 1

// kernel: mgat_forward.2
$region0: #{mgat_forward.2}
  #allocation0 [shape = 'u32[]', space=smem, size = 0x4, offset = 0x4, fixed_abs, tag = 'smem constant byte address 0x4 - core index']
  #allocation1 [shape = 'u32[144,128]{1,0:T(1,128)}', space=vmem, size = 0x12000, scoped, tag = 'internal scratch']
  #allocation2 [shape = 'f32[16,256]{1,0:T(8,128)}', space=vmem, size = 0x4000, scoped, tag = 'scratch operand']
  %s0 = inlined_call_operand.vmem [shape: f32[16,16], index: 0, kind: input, shape index: {}]
  %s1 = inlined_call_operand.vmem [shape: f32[16,64], index: 1, kind: input, shape index: {}]
  %s2 = inlined_call_operand.hbm [shape: f32[2,8,128], index: 2, kind: input, shape index: {}]
  %s3 = inlined_call_operand.vmem [shape: f32[2,8,256], index: 3, kind: input, shape index: {}]
  %s4 = inlined_call_operand.vmem [shape: f32[2,128,256], index: 4, kind: input, shape index: {}]
  %s5 = inlined_call_operand.vmem [shape: f32[2,1,256], index: 5, kind: input, shape index: {}]
  %s6 = inlined_call_operand.vmem [shape: f32[2,256,256], index: 6, kind: input, shape index: {}]
  %s7 = inlined_call_operand.hbm [shape: f32[2,1,256], index: 7, kind: input, shape index: {}]
  %s8 = inlined_call_operand.vmem [shape: f32[2,256,64], index: 8, kind: input, shape index: {}]
  %s9 = inlined_call_operand.hbm [shape: f32[2,1,64], index: 9, kind: input, shape index: {}]
  %s10 = inlined_call_operand.vmem [shape: f32[2,256,64], index: 10, kind: input, shape index: {}]
  %s11 = inlined_call_operand.hbm [shape: f32[2,1,64], index: 11, kind: input, shape index: {}]
  %s12 = inlined_call_operand.hbm [shape: f32[2,64,64], index: 12, kind: input, shape index: {}]
  %s13 = inlined_call_operand.hbm [shape: f32[2,1,64], index: 13, kind: input, shape index: {}]
  %s14 = inlined_call_operand.hbm [shape: f32[2,64,64], index: 14, kind: input, shape index: {}]
  %s15 = inlined_call_operand.vmem [shape: f32[2,1,64], index: 15, kind: input, shape index: {}]
  %s16 = inlined_call_operand.hbm [shape: f32[2,64,64], index: 16, kind: input, shape index: {}]
  %s17 = inlined_call_operand.hbm [shape: f32[2,1,64], index: 17, kind: input, shape index: {}]
  %s18 = inlined_call_operand.hbm [shape: f32[2,64,64], index: 18, kind: input, shape index: {}]
  %s19 = inlined_call_operand.hbm [shape: f32[2,1,64], index: 19, kind: input, shape index: {}]
  %s20 = inlined_call_operand.hbm [shape: f32[2,64,64], index: 20, kind: input, shape index: {}]
  %s21 = inlined_call_operand.vmem [shape: f32[2,1,64], index: 21, kind: input, shape index: {}]
  %s22 = inlined_call_operand.hbm [shape: f32[2,64,64], index: 22, kind: input, shape index: {}]
  %s23 = inlined_call_operand.hbm [shape: f32[2,1,64], index: 23, kind: input, shape index: {}]
  %s24 = inlined_call_operand.vmem [shape: f32[2,16,192], index: 24, kind: output, shape index: {}]
  %s25 = sld [smem:[#allocation0]]
  $region185: #{mgat_forward.2} parent=0
    _
  %s27 = ssub.s32 1, %s25
  %s28 = scalar_select 0, %s27, %s25
  $region1: #{mgat_forward.2} parent=0
    #allocation3 [shape = 'u8[8192]{0}', space=vmem, size = 0x2000, scoped, tag = 'input window, operand 2']
    #allocation4 [shape = 's32[2]{0}', space=sflag, size = 0x8, scoped, tag = 'scoped memory for mgat_forward.2']
    #allocation5 [shape = 'u8[2048]{0}', space=vmem, size = 0x800, scoped, tag = 'input window, operand 7']
    #allocation6 [shape = 's32[2]{0}', space=sflag, size = 0x8, scoped, tag = 'scoped memory for mgat_forward.2']
    #allocation7 [shape = 'u8[1024]{0}', space=vmem, size = 0x400, scoped, tag = 'input window, operand 9']
    #allocation8 [shape = 'u8[1024]{0}', space=vmem, size = 0x400, scoped, tag = 'input window, operand 11']
    #allocation9 [shape = 's32[2]{0}', space=sflag, size = 0x8, scoped, tag = 'scoped memory for mgat_forward.2']
    #allocation10 [shape = 'u8[65536]{0}', space=vmem, size = 0x10000, scoped, tag = 'input window, operand 12']
    #allocation11 [shape = 'u8[1024]{0}', space=vmem, size = 0x400, scoped, tag = 'input window, operand 13']
    #allocation12 [shape = 's32[2]{0}', space=sflag, size = 0x8, scoped, tag = 'scoped memory for mgat_forward.2']
    #allocation13 [shape = 'u8[65536]{0}', space=vmem, size = 0x10000, scoped, tag = 'input window, operand 14']
    #allocation14 [shape = 'u8[65536]{0}', space=vmem, size = 0x10000, scoped, tag = 'input window, operand 16']
    #allocation15 [shape = 's32[2]{0}', space=sflag, size = 0x8, scoped, tag = 'scoped memory for mgat_forward.2']
    #allocation16 [shape = 'u8[1024]{0}', space=vmem, size = 0x400, scoped, tag = 'input window, operand 17']
    #allocation17 [shape = 'u8[65536]{0}', space=vmem, size = 0x10000, scoped, tag = 'input window, operand 18']
    #allocation18 [shape = 's32[2]{0}', space=sflag, size = 0x8, scoped, tag = 'scoped memory for mgat_forward.2']
    #allocation19 [shape = 'u8[1024]{0}', space=vmem, size = 0x400, scoped, tag = 'input window, operand 19']
    #allocation20 [shape = 'u8[65536]{0}', space=vmem, size = 0x10000, scoped, tag = 'input window, operand 20']
    #allocation21 [shape = 's32[2]{0}', space=sflag, size = 0x8, scoped, tag = 'scoped memory for mgat_forward.2']
    #allocation22 [shape = 'u8[65536]{0}', space=vmem, size = 0x10000, scoped, tag = 'input window, operand 22']
    #allocation23 [shape = 'u8[1024]{0}', space=vmem, size = 0x400, scoped, tag = 'input window, operand 23']
    #allocation24 [shape = 's32[2]{0}', space=sflag, size = 0x8, scoped, tag = 'scoped memory for mgat_forward.2']
    %29 = vsyncpa [#allocation4], 0
    %s30 = scalar_lea.sflag [#allocation4], 1
    %31 = vsyncpa %s30, 0
    %32 = vsyncpa [#allocation6], 0
    %s33 = scalar_lea.sflag [#allocation6], 1
    %34 = vsyncpa %s33, 0
    %35 = vsyncpa [#allocation9], 0
    %s36 = scalar_lea.sflag [#allocation9], 1
    %37 = vsyncpa %s36, 0
    %38 = vsyncpa [#allocation12], 0
    %s39 = scalar_lea.sflag [#allocation12], 1
    %40 = vsyncpa %s39, 0
    %41 = vsyncpa [#allocation15], 0
    %s42 = scalar_lea.sflag [#allocation15], 1
    %43 = vsyncpa %s42, 0
    %44 = vsyncpa [#allocation18], 0
    %s45 = scalar_lea.sflag [#allocation18], 1
    %46 = vsyncpa %s45, 0
    %47 = vsyncpa [#allocation21], 0
    %s48 = scalar_lea.sflag [#allocation21], 1
    %49 = vsyncpa %s48, 0
    %50 = vsyncpa [#allocation24], 0
    %s51 = scalar_lea.sflag [#allocation24], 1
    %52 = vsyncpa %s51, 0
    loop: start=0, step=1, limit=4
    $region2: #{mgat_forward.2} parent=1 // loop_pre_header
      _
    $region3: #{mgat_forward.2} parent=1 // loop_header
      %s54 = sphi 0, %s58
      %p55 = scmp.ge.s32.totalorder %s54, 4
      %s62 = sphi 0, %s62
      %s64 = sphi 0, %s62
      %s65 = sphi 0, %s64
      %s79 = sphi 0, %s65
      %s83 = sphi 0, %s83
      %s85 = sphi 0, %s83
      %s86 = sphi 0, %s85
      %s100 = sphi 0, %s86
      %s106 = sphi 0, %s108
      %s109 = sphi 0, %s106
      %s110 = sphi 0, %s109
      %s126 = sphi 0, %s110
      %s132 = sphi 0, %s134
      %s135 = sphi 0, %s132
      %s136 = sphi 0, %s135
      %s152 = sphi 0, %s136
      %s158 = sphi 0, %s160
      %s161 = sphi 0, %s158
      %s162 = sphi 0, %s161
      %s178 = sphi 0, %s162
      %s184 = sphi 0, %s186
      %s187 = sphi 0, %s184
      %s188 = sphi 0, %s187
      %s204 = sphi 0, %s188
      %s210 = sphi 0, %s212
      %s213 = sphi 0, %s210
      %s214 = sphi 0, %s213
      %s230 = sphi 0, %s214
      %s236 = sphi 0, %s238
      %s239 = sphi 0, %s236
      %s240 = sphi 0, %s239
      %s256 = sphi 0, %s240
      %s262 = sphi 0, %s264
      %s265 = sphi 0, %s262
      %s266 = sphi 0, %s265
      %s282 = sphi 0, %s266
      %s288 = sphi 0, %s290
      %s291 = sphi 0, %s288
      %s292 = sphi 0, %s291
      %s308 = sphi 0, %s292
      %s314 = sphi 0, %s316
      %s317 = sphi 0, %s314
      %s318 = sphi 0, %s317
      %s334 = sphi 0, %s318
      %s340 = sphi 0, %s342
      %s343 = sphi 0, %s340
      %s344 = sphi 0, %s343
      %s360 = sphi 0, %s344
      %s366 = sphi 0, %s368
      %s369 = sphi 0, %s366
      %s370 = sphi 0, %s369
      %s386 = sphi 0, %s370
      %s392 = sphi 0, %s394
      %s395 = sphi 0, %s392
      %s396 = sphi 0, %s395
      %s412 = sphi 0, %s396
      %s418 = sphi 0, %s420
      %s421 = sphi 0, %s418
      %s422 = sphi 0, %s421
      %s438 = sphi 0, %s422
      %s444 = sphi 0, %s446
      %s447 = sphi 0, %s444
      %s448 = sphi 0, %s447
      %s464 = sphi 0, %s448
      %s470 = sphi 0, %s472
      %s473 = sphi 0, %s470
      %s474 = sphi 0, %s473
      %s490 = sphi 0, %s474
      %s496 = sphi 0, %s498
      %s499 = sphi 0, %s496
      %s500 = sphi 0, %s499
      %s516 = sphi 0, %s500
      %s522 = sphi 0, %s524
      %s525 = sphi 0, %s522
      %s526 = sphi 0, %s525
      %s542 = sphi 0, %s526
      %s548 = sphi 0, %s550
      %s551 = sphi 0, %s548
      %s552 = sphi 0, %s551
      %s568 = sphi 0, %s552
      %s574 = sphi 0, %s576
      %s577 = sphi 0, %s574
      %s578 = sphi 0, %s577
      %s594 = sphi 0, %s578
      %s600 = sphi 0, %s602
      %s603 = sphi 0, %s600
      %s604 = sphi 0, %s603
      %s620 = sphi 0, %s604
      %s626 = sphi 0, %s628
      %s629 = sphi 0, %s626
      %s630 = sphi 0, %s629
      %s646 = sphi 0, %s630
      %s652 = sphi 0, %s654
      %s655 = sphi 0, %s652
      %s656 = sphi 0, %s655
      %s672 = sphi 0, %s656
      %s678 = sphi 0, %s680
      %s681 = sphi 0, %s678
      %s682 = sphi 0, %s681
      %s698 = sphi 0, %s682
    $region4: #{mgat_forward.2} parent=1 // loop_header_branch
      %57 = sbr.rel (%p55) target = $region8
    $region5: #{mgat_forward.2} parent=1 // loop_body
      %s59 = ssub.s32 %s54, 1
      %s60 = ssub.s32 %s54, 2
      %s61 = sadd.s32 %s54, 1
      %s63 = sadd.s32 %s62, 1
      %p66 = scmp.eq.s32.totalorder %s54, 1
      %p67 = scmp.ne.s32.totalorder %s62, %s64
      %p68 = scmp.eq.s32.totalorder %s54, 0
      %p69 = por %p67, %p68
      %p70 = scmp.ne.s32.totalorder %s62, %s64
      %p71 = scmp.eq.s32.totalorder %s59, 1
      %p72 = por %p70, %p71
      %p73 = scmp.ne.s32.totalorder %s64, %s65
      %p74 = scmp.eq.s32.totalorder %s59, 0
      %p75 = por %p73, %p74
      %p76 = scmp.ne.s32.totalorder %s64, %s65
      %p77 = scmp.eq.s32.totalorder %s60, 1
      %p78 = por %p76, %p77
      %p80 = scmp.ne.s32.totalorder %s65, %s79
      %p81 = scmp.eq.s32.totalorder %s60, 0
      %p82 = por %p80, %p81
      %s84 = sadd.s32 %s83, 1
      %p87 = scmp.eq.s32.totalorder %s54, 1
      %p88 = scmp.ne.s32.totalorder %s83, %s85
      %p89 = scmp.eq.s32.totalorder %s54, 0
      %p90 = por %p88, %p89
      %p91 = scmp.ne.s32.totalorder %s83, %s85
      %p92 = scmp.eq.s32.totalorder %s59, 1
      %p93 = por %p91, %p92
      %p94 = scmp.ne.s32.totalorder %s85, %s86
      %p95 = scmp.eq.s32.totalorder %s59, 0
      %p96 = por %p94, %p95
      %p97 = scmp.ne.s32.totalorder %s85, %s86
      %p98 = scmp.eq.s32.totalorder %s60, 1
      %p99 = por %p97, %p98
      %p101 = scmp.ne.s32.totalorder %s86, %s100
      %p102 = scmp.eq.s32.totalorder %s60, 0
      %p103 = por %p101, %p102
      %s104 = ssub.s32 %s54, %s61
      %p105 = scmp.eq.s32.totalorder %s104, 0
      %s107 = sadd.s32 %s106, 1
      %s108 = scalar_select %p105, %s106, %s107
      %p111 = pneg %p105
      %p112 = scmp.eq.s32.totalorder %s54, 1
      %p113 = por %p111, %p112
      %p114 = scmp.ne.s32.totalorder %s106, %s109
      %p115 = scmp.eq.s32.totalorder %s54, 0
      %p116 = por %p114, %p115
      %p117 = scmp.ne.s32.totalorder %s106, %s109
      %p118 = scmp.eq.s32.totalorder %s59, 1
      %p119 = por %p117, %p118
      %p120 = scmp.ne.s32.totalorder %s109, %s110
      %p121 = scmp.eq.s32.totalorder %s59, 0
      %p122 = por %p120, %p121
      %p123 = scmp.ne.s32.totalorder %s109, %s110
      %p124 = scmp.eq.s32.totalorder %s60, 1
      %p125 = por %p123, %p124
      %p127 = scmp.ne.s32.totalorder %s110, %s126
      %p128 = scmp.eq.s32.totalorder %s60, 0
      %p129 = por %p127, %p128
      %s130 = ssub.s32 %s54, %s61
      %p131 = scmp.eq.s32.totalorder %s130, 0
      %s133 = sadd.s32 %s132, 1
      %s134 = scalar_select %p131, %s132, %s133
      %p137 = pneg %p131
      %p138 = scmp.eq.s32.totalorder %s54, 1
      %p139 = por %p137, %p138
      %p140 = scmp.ne.s32.totalorder %s132, %s135
      %p141 = scmp.eq.s32.totalorder %s54, 0
      %p142 = por %p140, %p141
      %p143 = scmp.ne.s32.totalorder %s132, %s135
      %p144 = scmp.eq.s32.totalorder %s59, 1
      %p145 = por %p143, %p144
      %p146 = scmp.ne.s32.totalorder %s135, %s136
      %p147 = scmp.eq.s32.totalorder %s59, 0
      %p148 = por %p146, %p147
      %p149 = scmp.ne.s32.totalorder %s135, %s136
      %p150 = scmp.eq.s32.totalorder %s60, 1
      %p151 = por %p149, %p150
      %p153 = scmp.ne.s32.totalorder %s136, %s152
      %p154 = scmp.eq.s32.totalorder %s60, 0
      %p155 = por %p153, %p154
      %s156 = ssub.s32 %s54, %s61
      %p157 = scmp.eq.s32.totalorder %s156, 0
      %s159 = sadd.s32 %s158, 1
      %s160 = scalar_select %p157, %s158, %s159
      %p163 = pneg %p157
      %p164 = scmp.eq.s32.totalorder %s54, 1
      %p165 = por %p163, %p164
      %p166 = scmp.ne.s32.totalorder %s158, %s161
      %p167 = scmp.eq.s32.totalorder %s54, 0
      %p168 = por %p166, %p167
      %p169 = scmp.ne.s32.totalorder %s158, %s161
      %p170 = scmp.eq.s32.totalorder %s59, 1
      %p171 = por %p169, %p170
      %p172 = scmp.ne.s32.totalorder %s161, %s162
      %p173 = scmp.eq.s32.totalorder %s59, 0
      %p174 = por %p172, %p173
      %p175 = scmp.ne.s32.totalorder %s161, %s162
      %p176 = scmp.eq.s32.totalorder %s60, 1
      %p177 = por %p175, %p176
      %p179 = scmp.ne.s32.totalorder %s162, %s178
      %p180 = scmp.eq.s32.totalorder %s60, 0
      %p181 = por %p179, %p180
      %s182 = ssub.s32 %s54, %s61
      %p183 = scmp.eq.s32.totalorder %s182, 0
      %s185 = sadd.s32 %s184, 1
      %s186 = scalar_select %p183, %s184, %s185
      %p189 = pneg %p183
      %p190 = scmp.eq.s32.totalorder %s54, 1
      %p191 = por %p189, %p190
      %p192 = scmp.ne.s32.totalorder %s184, %s187
      %p193 = scmp.eq.s32.totalorder %s54, 0
      %p194 = por %p192, %p193
      %p195 = scmp.ne.s32.totalorder %s184, %s187
      %p196 = scmp.eq.s32.totalorder %s59, 1
      %p197 = por %p195, %p196
      %p198 = scmp.ne.s32.totalorder %s187, %s188
      %p199 = scmp.eq.s32.totalorder %s59, 0
      %p200 = por %p198, %p199
      %p201 = scmp.ne.s32.totalorder %s187, %s188
      %p202 = scmp.eq.s32.totalorder %s60, 1
      %p203 = por %p201, %p202
      %p205 = scmp.ne.s32.totalorder %s188, %s204
      %p206 = scmp.eq.s32.totalorder %s60, 0
      %p207 = por %p205, %p206
      %s208 = ssub.s32 %s54, %s61
      %p209 = scmp.eq.s32.totalorder %s208, 0
      %s211 = sadd.s32 %s210, 1
      %s212 = scalar_select %p209, %s210, %s211
      %p215 = pneg %p209
      %p216 = scmp.eq.s32.totalorder %s54, 1
      %p217 = por %p215, %p216
      %p218 = scmp.ne.s32.totalorder %s210, %s213
      %p219 = scmp.eq.s32.totalorder %s54, 0
      %p220 = por %p218, %p219
      %p221 = scmp.ne.s32.totalorder %s210, %s213
      %p222 = scmp.eq.s32.totalorder %s59, 1
      %p223 = por %p221, %p222
      %p224 = scmp.ne.s32.totalorder %s213, %s214
      %p225 = scmp.eq.s32.totalorder %s59, 0
      %p226 = por %p224, %p225
      %p227 = scmp.ne.s32.totalorder %s213, %s214
      %p228 = scmp.eq.s32.totalorder %s60, 1
      %p229 = por %p227, %p228
      %p231 = scmp.ne.s32.totalorder %s214, %s230
      %p232 = scmp.eq.s32.totalorder %s60, 0
      %p233 = por %p231, %p232
      %s234 = ssub.s32 %s54, %s61
      %p235 = scmp.eq.s32.totalorder %s234, 0
      %s237 = sadd.s32 %s236, 1
      %s238 = scalar_select %p235, %s236, %s237
      %p241 = pneg %p235
      %p242 = scmp.eq.s32.totalorder %s54, 1
      %p243 = por %p241, %p242
      %p244 = scmp.ne.s32.totalorder %s236, %s239
      %p245 = scmp.eq.s32.totalorder %s54, 0
      %p246 = por %p244, %p245
      %p247 = scmp.ne.s32.totalorder %s236, %s239
      %p248 = scmp.eq.s32.totalorder %s59, 1
      %p249 = por %p247, %p248
      %p250 = scmp.ne.s32.totalorder %s239, %s240
      %p251 = scmp.eq.s32.totalorder %s59, 0
      %p252 = por %p250, %p251
      %p253 = scmp.ne.s32.totalorder %s239, %s240
      %p254 = scmp.eq.s32.totalorder %s60, 1
      %p255 = por %p253, %p254
      %p257 = scmp.ne.s32.totalorder %s240, %s256
      %p258 = scmp.eq.s32.totalorder %s60, 0
      %p259 = por %p257, %p258
      %s260 = ssub.s32 %s54, %s61
      %p261 = scmp.eq.s32.totalorder %s260, 0
      %s263 = sadd.s32 %s262, 1
      %s264 = scalar_select %p261, %s262, %s263
      %p267 = pneg %p261
      %p268 = scmp.eq.s32.totalorder %s54, 1
      %p269 = por %p267, %p268
      %p270 = scmp.ne.s32.totalorder %s262, %s265
      %p271 = scmp.eq.s32.totalorder %s54, 0
      %p272 = por %p270, %p271
      %p273 = scmp.ne.s32.totalorder %s262, %s265
      %p274 = scmp.eq.s32.totalorder %s59, 1
      %p275 = por %p273, %p274
      %p276 = scmp.ne.s32.totalorder %s265, %s266
      %p277 = scmp.eq.s32.totalorder %s59, 0
      %p278 = por %p276, %p277
      %p279 = scmp.ne.s32.totalorder %s265, %s266
      %p280 = scmp.eq.s32.totalorder %s60, 1
      %p281 = por %p279, %p280
      %p283 = scmp.ne.s32.totalorder %s266, %s282
      %p284 = scmp.eq.s32.totalorder %s60, 0
      %p285 = por %p283, %p284
      %s286 = ssub.s32 %s54, %s61
      %p287 = scmp.eq.s32.totalorder %s286, 0
      %s289 = sadd.s32 %s288, 1
      %s290 = scalar_select %p287, %s288, %s289
      %p293 = pneg %p287
      %p294 = scmp.eq.s32.totalorder %s54, 1
      %p295 = por %p293, %p294
      %p296 = scmp.ne.s32.totalorder %s288, %s291
      %p297 = scmp.eq.s32.totalorder %s54, 0
      %p298 = por %p296, %p297
      %p299 = scmp.ne.s32.totalorder %s288, %s291
      %p300 = scmp.eq.s32.totalorder %s59, 1
      %p301 = por %p299, %p300
      %p302 = scmp.ne.s32.totalorder %s291, %s292
      %p303 = scmp.eq.s32.totalorder %s59, 0
      %p304 = por %p302, %p303
      %p305 = scmp.ne.s32.totalorder %s291, %s292
      %p306 = scmp.eq.s32.totalorder %s60, 1
      %p307 = por %p305, %p306
      %p309 = scmp.ne.s32.totalorder %s292, %s308
      %p310 = scmp.eq.s32.totalorder %s60, 0
      %p311 = por %p309, %p310
      %s312 = ssub.s32 %s54, %s61
      %p313 = scmp.eq.s32.totalorder %s312, 0
      %s315 = sadd.s32 %s314, 1
      %s316 = scalar_select %p313, %s314, %s315
      %p319 = pneg %p313
      %p320 = scmp.eq.s32.totalorder %s54, 1
      %p321 = por %p319, %p320
      %p322 = scmp.ne.s32.totalorder %s314, %s317
      %p323 = scmp.eq.s32.totalorder %s54, 0
      %p324 = por %p322, %p323
      %p325 = scmp.ne.s32.totalorder %s314, %s317
      %p326 = scmp.eq.s32.totalorder %s59, 1
      %p327 = por %p325, %p326
      %p328 = scmp.ne.s32.totalorder %s317, %s318
      %p329 = scmp.eq.s32.totalorder %s59, 0
      %p330 = por %p328, %p329
      %p331 = scmp.ne.s32.totalorder %s317, %s318
      %p332 = scmp.eq.s32.totalorder %s60, 1
      %p333 = por %p331, %p332
      %p335 = scmp.ne.s32.totalorder %s318, %s334
      %p336 = scmp.eq.s32.totalorder %s60, 0
      %p337 = por %p335, %p336
      %s338 = ssub.s32 %s54, %s61
      %p339 = scmp.eq.s32.totalorder %s338, 0
      %s341 = sadd.s32 %s340, 1
      %s342 = scalar_select %p339, %s340, %s341
      %p345 = pneg %p339
      %p346 = scmp.eq.s32.totalorder %s54, 1
      %p347 = por %p345, %p346
      %p348 = scmp.ne.s32.totalorder %s340, %s343
      %p349 = scmp.eq.s32.totalorder %s54, 0
      %p350 = por %p348, %p349
      %p351 = scmp.ne.s32.totalorder %s340, %s343
      %p352 = scmp.eq.s32.totalorder %s59, 1
      %p353 = por %p351, %p352
      %p354 = scmp.ne.s32.totalorder %s343, %s344
      %p355 = scmp.eq.s32.totalorder %s59, 0
      %p356 = por %p354, %p355
      %p357 = scmp.ne.s32.totalorder %s343, %s344
      %p358 = scmp.eq.s32.totalorder %s60, 1
      %p359 = por %p357, %p358
      %p361 = scmp.ne.s32.totalorder %s344, %s360
      %p362 = scmp.eq.s32.totalorder %s60, 0
      %p363 = por %p361, %p362
      %s364 = ssub.s32 %s54, %s61
      %p365 = scmp.eq.s32.totalorder %s364, 0
      %s367 = sadd.s32 %s366, 1
      %s368 = scalar_select %p365, %s366, %s367
      %p371 = pneg %p365
      %p372 = scmp.eq.s32.totalorder %s54, 1
      %p373 = por %p371, %p372
      %p374 = scmp.ne.s32.totalorder %s366, %s369
      %p375 = scmp.eq.s32.totalorder %s54, 0
      %p376 = por %p374, %p375
      %p377 = scmp.ne.s32.totalorder %s366, %s369
      %p378 = scmp.eq.s32.totalorder %s59, 1
      %p379 = por %p377, %p378
      %p380 = scmp.ne.s32.totalorder %s369, %s370
      %p381 = scmp.eq.s32.totalorder %s59, 0
      %p382 = por %p380, %p381
      %p383 = scmp.ne.s32.totalorder %s369, %s370
      %p384 = scmp.eq.s32.totalorder %s60, 1
      %p385 = por %p383, %p384
      %p387 = scmp.ne.s32.totalorder %s370, %s386
      %p388 = scmp.eq.s32.totalorder %s60, 0
      %p389 = por %p387, %p388
      %s390 = ssub.s32 %s54, %s61
      %p391 = scmp.eq.s32.totalorder %s390, 0
      %s393 = sadd.s32 %s392, 1
      %s394 = scalar_select %p391, %s392, %s393
      %p397 = pneg %p391
      %p398 = scmp.eq.s32.totalorder %s54, 1
      %p399 = por %p397, %p398
      %p400 = scmp.ne.s32.totalorder %s392, %s395
      %p401 = scmp.eq.s32.totalorder %s54, 0
      %p402 = por %p400, %p401
      %p403 = scmp.ne.s32.totalorder %s392, %s395
      %p404 = scmp.eq.s32.totalorder %s59, 1
      %p405 = por %p403, %p404
      %p406 = scmp.ne.s32.totalorder %s395, %s396
      %p407 = scmp.eq.s32.totalorder %s59, 0
      %p408 = por %p406, %p407
      %p409 = scmp.ne.s32.totalorder %s395, %s396
      %p410 = scmp.eq.s32.totalorder %s60, 1
      %p411 = por %p409, %p410
      %p413 = scmp.ne.s32.totalorder %s396, %s412
      %p414 = scmp.eq.s32.totalorder %s60, 0
      %p415 = por %p413, %p414
      %s416 = ssub.s32 %s54, %s61
      %p417 = scmp.eq.s32.totalorder %s416, 0
      %s419 = sadd.s32 %s418, 1
      %s420 = scalar_select %p417, %s418, %s419
      %p423 = pneg %p417
      %p424 = scmp.eq.s32.totalorder %s54, 1
      %p425 = por %p423, %p424
      %p426 = scmp.ne.s32.totalorder %s418, %s421
      %p427 = scmp.eq.s32.totalorder %s54, 0
      %p428 = por %p426, %p427
      %p429 = scmp.ne.s32.totalorder %s418, %s421
      %p430 = scmp.eq.s32.totalorder %s59, 1
      %p431 = por %p429, %p430
      %p432 = scmp.ne.s32.totalorder %s421, %s422
      %p433 = scmp.eq.s32.totalorder %s59, 0
      %p434 = por %p432, %p433
      %p435 = scmp.ne.s32.totalorder %s421, %s422
      %p436 = scmp.eq.s32.totalorder %s60, 1
      %p437 = por %p435, %p436
      %p439 = scmp.ne.s32.totalorder %s422, %s438
      %p440 = scmp.eq.s32.totalorder %s60, 0
      %p441 = por %p439, %p440
      %s442 = ssub.s32 %s54, %s61
      %p443 = scmp.eq.s32.totalorder %s442, 0
      %s445 = sadd.s32 %s444, 1
      %s446 = scalar_select %p443, %s444, %s445
      %p449 = pneg %p443
      %p450 = scmp.eq.s32.totalorder %s54, 1
      %p451 = por %p449, %p450
      %p452 = scmp.ne.s32.totalorder %s444, %s447
      %p453 = scmp.eq.s32.totalorder %s54, 0
      %p454 = por %p452, %p453
      %p455 = scmp.ne.s32.totalorder %s444, %s447
      %p456 = scmp.eq.s32.totalorder %s59, 1
      %p457 = por %p455, %p456
      %p458 = scmp.ne.s32.totalorder %s447, %s448
      %p459 = scmp.eq.s32.totalorder %s59, 0
      %p460 = por %p458, %p459
      %p461 = scmp.ne.s32.totalorder %s447, %s448
      %p462 = scmp.eq.s32.totalorder %s60, 1
      %p463 = por %p461, %p462
      %p465 = scmp.ne.s32.totalorder %s448, %s464
      %p466 = scmp.eq.s32.totalorder %s60, 0
      %p467 = por %p465, %p466
      %s468 = ssub.s32 %s54, %s61
      %p469 = scmp.eq.s32.totalorder %s468, 0
      %s471 = sadd.s32 %s470, 1
      %s472 = scalar_select %p469, %s470, %s471
      %p475 = pneg %p469
      %p476 = scmp.eq.s32.totalorder %s54, 1
      %p477 = por %p475, %p476
      %p478 = scmp.ne.s32.totalorder %s470, %s473
      %p479 = scmp.eq.s32.totalorder %s54, 0
      %p480 = por %p478, %p479
      %p481 = scmp.ne.s32.totalorder %s470, %s473
      %p482 = scmp.eq.s32.totalorder %s59, 1
      %p483 = por %p481, %p482
      %p484 = scmp.ne.s32.totalorder %s473, %s474
      %p485 = scmp.eq.s32.totalorder %s59, 0
      %p486 = por %p484, %p485
      %p487 = scmp.ne.s32.totalorder %s473, %s474
      %p488 = scmp.eq.s32.totalorder %s60, 1
      %p489 = por %p487, %p488
      %p491 = scmp.ne.s32.totalorder %s474, %s490
      %p492 = scmp.eq.s32.totalorder %s60, 0
      %p493 = por %p491, %p492
      %s494 = ssub.s32 %s54, %s61
      %p495 = scmp.eq.s32.totalorder %s494, 0
      %s497 = sadd.s32 %s496, 1
      %s498 = scalar_select %p495, %s496, %s497
      %p501 = pneg %p495
      %p502 = scmp.eq.s32.totalorder %s54, 1
      %p503 = por %p501, %p502
      %p504 = scmp.ne.s32.totalorder %s496, %s499
      %p505 = scmp.eq.s32.totalorder %s54, 0
      %p506 = por %p504, %p505
      %p507 = scmp.ne.s32.totalorder %s496, %s499
      %p508 = scmp.eq.s32.totalorder %s59, 1
      %p509 = por %p507, %p508
      %p510 = scmp.ne.s32.totalorder %s499, %s500
      %p511 = scmp.eq.s32.totalorder %s59, 0
      %p512 = por %p510, %p511
      %p513 = scmp.ne.s32.totalorder %s499, %s500
      %p514 = scmp.eq.s32.totalorder %s60, 1
      %p515 = por %p513, %p514
      %p517 = scmp.ne.s32.totalorder %s500, %s516
      %p518 = scmp.eq.s32.totalorder %s60, 0
      %p519 = por %p517, %p518
      %s520 = ssub.s32 %s54, %s61
      %p521 = scmp.eq.s32.totalorder %s520, 0
      %s523 = sadd.s32 %s522, 1
      %s524 = scalar_select %p521, %s522, %s523
      %p527 = pneg %p521
      %p528 = scmp.eq.s32.totalorder %s54, 1
      %p529 = por %p527, %p528
      %p530 = scmp.ne.s32.totalorder %s522, %s525
      %p531 = scmp.eq.s32.totalorder %s54, 0
      %p532 = por %p530, %p531
      %p533 = scmp.ne.s32.totalorder %s522, %s525
      %p534 = scmp.eq.s32.totalorder %s59, 1
      %p535 = por %p533, %p534
      %p536 = scmp.ne.s32.totalorder %s525, %s526
      %p537 = scmp.eq.s32.totalorder %s59, 0
      %p538 = por %p536, %p537
      %p539 = scmp.ne.s32.totalorder %s525, %s526
      %p540 = scmp.eq.s32.totalorder %s60, 1
      %p541 = por %p539, %p540
      %p543 = scmp.ne.s32.totalorder %s526, %s542
      %p544 = scmp.eq.s32.totalorder %s60, 0
      %p545 = por %p543, %p544
      %s546 = ssub.s32 %s54, %s61
      %p547 = scmp.eq.s32.totalorder %s546, 0
      %s549 = sadd.s32 %s548, 1
      %s550 = scalar_select %p547, %s548, %s549
      %p553 = pneg %p547
      %p554 = scmp.eq.s32.totalorder %s54, 1
      %p555 = por %p553, %p554
      %p556 = scmp.ne.s32.totalorder %s548, %s551
      %p557 = scmp.eq.s32.totalorder %s54, 0
      %p558 = por %p556, %p557
      %p559 = scmp.ne.s32.totalorder %s548, %s551
      %p560 = scmp.eq.s32.totalorder %s59, 1
      %p561 = por %p559, %p560
      %p562 = scmp.ne.s32.totalorder %s551, %s552
      %p563 = scmp.eq.s32.totalorder %s59, 0
      %p564 = por %p562, %p563
      %p565 = scmp.ne.s32.totalorder %s551, %s552
      %p566 = scmp.eq.s32.totalorder %s60, 1
      %p567 = por %p565, %p566
      %p569 = scmp.ne.s32.totalorder %s552, %s568
      %p570 = scmp.eq.s32.totalorder %s60, 0
      %p571 = por %p569, %p570
      %s572 = ssub.s32 %s54, %s61
      %p573 = scmp.eq.s32.totalorder %s572, 0
      %s575 = sadd.s32 %s574, 1
      %s576 = scalar_select %p573, %s574, %s575
      %p579 = pneg %p573
      %p580 = scmp.eq.s32.totalorder %s54, 1
      %p581 = por %p579, %p580
      %p582 = scmp.ne.s32.totalorder %s574, %s577
      %p583 = scmp.eq.s32.totalorder %s54, 0
      %p584 = por %p582, %p583
      %p585 = scmp.ne.s32.totalorder %s574, %s577
      %p586 = scmp.eq.s32.totalorder %s59, 1
      %p587 = por %p585, %p586
      %p588 = scmp.ne.s32.totalorder %s577, %s578
      %p589 = scmp.eq.s32.totalorder %s59, 0
      %p590 = por %p588, %p589
      %p591 = scmp.ne.s32.totalorder %s577, %s578
      %p592 = scmp.eq.s32.totalorder %s60, 1
      %p593 = por %p591, %p592
      %p595 = scmp.ne.s32.totalorder %s578, %s594
      %p596 = scmp.eq.s32.totalorder %s60, 0
      %p597 = por %p595, %p596
      %s598 = ssub.s32 %s54, %s61
      %p599 = scmp.eq.s32.totalorder %s598, 0
      %s601 = sadd.s32 %s600, 1
      %s602 = scalar_select %p599, %s600, %s601
      %p605 = pneg %p599
      %p606 = scmp.eq.s32.totalorder %s54, 1
      %p607 = por %p605, %p606
      %p608 = scmp.ne.s32.totalorder %s600, %s603
      %p609 = scmp.eq.s32.totalorder %s54, 0
      %p610 = por %p608, %p609
      %p611 = scmp.ne.s32.totalorder %s600, %s603
      %p612 = scmp.eq.s32.totalorder %s59, 1
      %p613 = por %p611, %p612
      %p614 = scmp.ne.s32.totalorder %s603, %s604
      %p615 = scmp.eq.s32.totalorder %s59, 0
      %p616 = por %p614, %p615
      %p617 = scmp.ne.s32.totalorder %s603, %s604
      %p618 = scmp.eq.s32.totalorder %s60, 1
      %p619 = por %p617, %p618
      %p621 = scmp.ne.s32.totalorder %s604, %s620
      %p622 = scmp.eq.s32.totalorder %s60, 0
      %p623 = por %p621, %p622
      %s624 = ssub.s32 %s54, %s61
      %p625 = scmp.eq.s32.totalorder %s624, 0
      %s627 = sadd.s32 %s626, 1
      %s628 = scalar_select %p625, %s626, %s627
      %p631 = pneg %p625
      %p632 = scmp.eq.s32.totalorder %s54, 1
      %p633 = por %p631, %p632
      %p634 = scmp.ne.s32.totalorder %s626, %s629
      %p635 = scmp.eq.s32.totalorder %s54, 0
      %p636 = por %p634, %p635
      %p637 = scmp.ne.s32.totalorder %s626, %s629
      %p638 = scmp.eq.s32.totalorder %s59, 1
      %p639 = por %p637, %p638
      %p640 = scmp.ne.s32.totalorder %s629, %s630
      %p641 = scmp.eq.s32.totalorder %s59, 0
      %p642 = por %p640, %p641
      %p643 = scmp.ne.s32.totalorder %s629, %s630
      %p644 = scmp.eq.s32.totalorder %s60, 1
      %p645 = por %p643, %p644
      %p647 = scmp.ne.s32.totalorder %s630, %s646
      %p648 = scmp.eq.s32.totalorder %s60, 0
      %p649 = por %p647, %p648
      %s650 = ssub.s32 %s54, %s61
      %p651 = scmp.eq.s32.totalorder %s650, 0
      %s653 = sadd.s32 %s652, 1
      %s654 = scalar_select %p651, %s652, %s653
      %p657 = pneg %p651
      %p658 = scmp.eq.s32.totalorder %s54, 1
      %p659 = por %p657, %p658
      %p660 = scmp.ne.s32.totalorder %s652, %s655
      %p661 = scmp.eq.s32.totalorder %s54, 0
      %p662 = por %p660, %p661
      %p663 = scmp.ne.s32.totalorder %s652, %s655
      %p664 = scmp.eq.s32.totalorder %s59, 1
      %p665 = por %p663, %p664
      %p666 = scmp.ne.s32.totalorder %s655, %s656
      %p667 = scmp.eq.s32.totalorder %s59, 0
      %p668 = por %p666, %p667
      %p669 = scmp.ne.s32.totalorder %s655, %s656
      %p670 = scmp.eq.s32.totalorder %s60, 1
      %p671 = por %p669, %p670
      %p673 = scmp.ne.s32.totalorder %s656, %s672
      %p674 = scmp.eq.s32.totalorder %s60, 0
      %p675 = por %p673, %p674
      %s676 = ssub.s32 %s54, %s61
      %p677 = scmp.eq.s32.totalorder %s676, 0
      %s679 = sadd.s32 %s678, 1
      %s680 = scalar_select %p677, %s678, %s679
      %p683 = pneg %p677
      %p684 = scmp.eq.s32.totalorder %s54, 1
      %p685 = por %p683, %p684
      %p686 = scmp.ne.s32.totalorder %s678, %s681
      %p687 = scmp.eq.s32.totalorder %s54, 0
      %p688 = por %p686, %p687
      %p689 = scmp.ne.s32.totalorder %s678, %s681
      %p690 = scmp.eq.s32.totalorder %s59, 1
      %p691 = por %p689, %p690
      %p692 = scmp.ne.s32.totalorder %s681, %s682
      %p693 = scmp.eq.s32.totalorder %s59, 0
      %p694 = por %p692, %p693
      %p695 = scmp.ne.s32.totalorder %s681, %s682
      %p696 = scmp.eq.s32.totalorder %s60, 1
      %p697 = por %p695, %p696
      %p699 = scmp.ne.s32.totalorder %s682, %s698
      %p700 = scmp.eq.s32.totalorder %s60, 0
      %p701 = por %p699, %p700
      %p702 = scmp.le.s32.totalorder 1, %s54
      %p703 = scmp.lt.s32.totalorder %s54, 3
      %p704 = pnand %p702, %p703
      %p705 = pneg %p704
      // Predicated region
      $region9: #{mgat_forward.2} parent=5 // pred_check
        _
      $region10: #{mgat_forward.2} parent=5 // pred_check_branch
        %707 = sbr.rel (%p704) target = $region12
      $region11: #{mgat_forward.2} parent=5 // pred_region
        %s708 = ssub.s32 %s54, 1
        // Predicated region
        $region13: #{mgat_forward.2} parent=11 // pred_check
          %p709 = pneg %p75
        $region14: #{mgat_forward.2} parent=11 // pred_check_branch
          %711 = sbr.rel (%p709) target = $region16
        $region15: #{mgat_forward.2} parent=11 // pred_region
          _
        $region16: #{mgat_forward.2} parent=11 // pred_fallthru
          _
        // Predicated region
        $region17: #{mgat_forward.2} parent=11 // pred_check
          %p712 = pneg %p96
        $region18: #{mgat_forward.2} parent=11 // pred_check_branch
          %714 = sbr.rel (%p712) target = $region20
        $region19: #{mgat_forward.2} parent=11 // pred_region
          _
        $region20: #{mgat_forward.2} parent=11 // pred_fallthru
          _
      $region12: #{mgat_forward.2} parent=5 // pred_fallthru
        _
      %p715 = scmp.lt.s32.totalorder %s54, 2
      // Predicated region
      $region21: #{mgat_forward.2} parent=5 // pred_check
        %p716 = pneg %p715
      $region22: #{mgat_forward.2} parent=5 // pred_check_branch
        %718 = sbr.rel (%p716) target = $region24
      $region23: #{mgat_forward.2} parent=5 // pred_region
        // Predicated region
        $region25: #{mgat_forward.2} parent=23 // pred_check
          %p719 = pneg %p116
        $region26: #{mgat_forward.2} parent=23 // pred_check_branch
          %721 = sbr.rel (%p719) target = $region28
        $region27: #{mgat_forward.2} parent=23 // pred_region
          %s722 = sand.u32 %s106, 1
          %s723 = scalar_lea.sflag [#allocation4], %s722
          %s724 = sand.u32 %s106, 1
          %s725 = smul.addr %s724, 8
          %s726 = scalar_lea.vmem [#allocation3], %s725
          %s728 = ssub.s32 128, 128
          %729 = vsyncadd %s723, %s728
          %s730 = smul.addr %s54, 128
          %s731 = scalar_lea.hbm %s2, %s730
          %s733 = sshll.u32 %s726, 4
          %s734 = int_to_ptr.vmem [resolvable:$true] %s733
          %736 = dma.hbm_to_vmem [thread:$0]  %s731, 128, %s734, %s723
        $region28: #{mgat_forward.2} parent=23 // pred_fallthru
          _
        // Predicated region
        $region29: #{mgat_forward.2} parent=23 // pred_check
          %p737 = pneg %p142
        $region30: #{mgat_forward.2} parent=23 // pred_check_branch
          %739 = sbr.rel (%p737) target = $region32
        $region31: #{mgat_forward.2} parent=23 // pred_region
          %p740 = scmp.lt.s32.totalorder %s54, 1
          %s741 = scalar_select %p740, %s54, 1
          %s742 = smul.addr %s741, 2
          %s743 = smul.addr %s742, 8
          %s744 = scalar_lea.vmem %s3, %s743
        $region32: #{mgat_forward.2} parent=23 // pred_fallthru
          _
        // Predicated region
        $region33: #{mgat_forward.2} parent=23 // pred_check
          %p745 = pneg %p168
        $region34: #{mgat_forward.2} parent=23 // pred_check_branch
          %747 = sbr.rel (%p745) target = $region36
        $region35: #{mgat_forward.2} parent=23 // pred_region
          %p748 = scmp.lt.s32.totalorder %s54, 1
          %s749 = scalar_select %p748, %s54, 1
          %s750 = smul.addr %s749, 32
          %s751 = smul.addr %s750, 8
          %s752 = scalar_lea.vmem %s4, %s751
        $region36: #{mgat_forward.2} parent=23 // pred_fallthru
          _
        // Predicated region
        $region37: #{mgat_forward.2} parent=23 // pred_check
          %p753 = pneg %p194
        $region38: #{mgat_forward.2} parent=23 // pred_check_branch
          %755 = sbr.rel (%p753) target = $region40
        $region39: #{mgat_forward.2} parent=23 // pred_region
          %p756 = scmp.lt.s32.totalorder %s54, 1
          %s757 = scalar_select %p756, %s54, 1
          %s758 = smul.addr %s757, 2
          %s759 = scalar_lea.vmem %s5, %s758
        $region40: #{mgat_forward.2} parent=23 // pred_fallthru
          _
        // Predicated region
        $region41: #{mgat_forward.2} parent=23 // pred_check
          %p760 = pneg %p220
        $region42: #{mgat_forward.2} parent=23 // pred_check_branch
          %762 = sbr.rel (%p760) target = $region44
        $region43: #{mgat_forward.2} parent=23 // pred_region
          %p763 = scmp.lt.s32.totalorder %s54, 1
          %s764 = scalar_select %p763, %s54, 1
          %s765 = smul.addr %s764, 64
          %s766 = smul.addr %s765, 8
          %s767 = scalar_lea.vmem %s6, %s766
        $region44: #{mgat_forward.2} parent=23 // pred_fallthru
          _
        // Predicated region
        $region45: #{mgat_forward.2} parent=23 // pred_check
          %p768 = pneg %p246
        $region46: #{mgat_forward.2} parent=23 // pred_check_branch
          %770 = sbr.rel (%p768) target = $region48
        $region47: #{mgat_forward.2} parent=23 // pred_region
          %s771 = sand.u32 %s54, 1
          %s772 = scalar_lea.sflag [#allocation6], %s771
          %s773 = sand.u32 %s236, 1
          %s774 = smul.addr %s773, 2
          %s775 = scalar_lea.vmem [#allocation5], %s774
          %s777 = ssub.s32 32, 32
          %778 = vsyncadd %s772, %s777
          %s779 = smul.addr %s54, 2
          %s780 = smul.addr %s779, 16
          %s781 = scalar_lea.hbm %s7, %s780
          %s783 = sshll.u32 %s775, 4
          %s784 = int_to_ptr.vmem [resolvable:$true] %s783
          %786 = dma.hbm_to_vmem [thread:$0]  %s781, 32, %s784, %s772
        $region48: #{mgat_forward.2} parent=23 // pred_fallthru
          _
        // Predicated region
        $region49: #{mgat_forward.2} parent=23 // pred_check
          %p787 = pneg %p272
        $region50: #{mgat_forward.2} parent=23 // pred_check_branch
          %789 = sbr.rel (%p787) target = $region52
        $region51: #{mgat_forward.2} parent=23 // pred_region
          %p790 = scmp.lt.s32.totalorder %s54, 1
          %s791 = scalar_select %p790, %s54, 1
          %s792 = smul.addr %s791, 32
          %s793 = smul.addr %s792, 8
          %s794 = scalar_lea.vmem %s8, %s793
        $region52: #{mgat_forward.2} parent=23 // pred_fallthru
          _
        // Predicated region
        $region53: #{mgat_forward.2} parent=23 // pred_check
          %p795 = pneg %p298
        $region54: #{mgat_forward.2} parent=23 // pred_check_branch
          %797 = sbr.rel (%p795) target = $region56
        $region55: #{mgat_forward.2} parent=23 // pred_region
          %s798 = sand.u32 %s54, 1
          %s799 = scalar_lea.sflag [#allocation6], %s798
          %s800 = sand.u32 %s288, 1
          %s801 = scalar_lea.vmem [#allocation7], %s800
          %s803 = ssub.s32 16, 16
          %804 = vsyncadd %s799, %s803
          %s805 = smul.addr %s54, 16
          %s806 = scalar_lea.hbm %s9, %s805
          %s808 = sshll.u32 %s801, 4
          %s809 = int_to_ptr.vmem [resolvable:$true] %s808
          %811 = dma.hbm_to_vmem [thread:$0]  %s806, 16, %s809, %s799
        $region56: #{mgat_forward.2} parent=23 // pred_fallthru
          _
        // Predicated region
        $region57: #{mgat_forward.2} parent=23 // pred_check
          %p812 = pneg %p324
        $region58: #{mgat_forward.2} parent=23 // pred_check_branch
          %814 = sbr.rel (%p812) target = $region60
        $region59: #{mgat_forward.2} parent=23 // pred_region
          %p815 = scmp.lt.s32.totalorder %s54, 1
          %s816 = scalar_select %p815, %s54, 1
          %s817 = smul.addr %s816, 32
          %s818 = smul.addr %s817, 8
          %s819 = scalar_lea.vmem %s10, %s818
        $region60: #{mgat_forward.2} parent=23 // pred_fallthru
          _
        // Predicated region
        $region61: #{mgat_forward.2} parent=23 // pred_check
          %p820 = pneg %p350
        $region62: #{mgat_forward.2} parent=23 // pred_check_branch
          %822 = sbr.rel (%p820) target = $region64
        $region63: #{mgat_forward.2} parent=23 // pred_region
          %s823 = sand.u32 %s54, 1
          %s824 = scalar_lea.sflag [#allocation9], %s823
          %s825 = sand.u32 %s340, 1
          %s826 = scalar_lea.vmem [#allocation8], %s825
          %s828 = ssub.s32 16, 16
          %829 = vsyncadd %s824, %s828
          %s830 = smul.addr %s54, 16
          %s831 = scalar_lea.hbm %s11, %s830
          %s833 = sshll.u32 %s826, 4
          %s834 = int_to_ptr.vmem [resolvable:$true] %s833
          %836 = dma.hbm_to_vmem [thread:$0]  %s831, 16, %s834, %s824
        $region64: #{mgat_forward.2} parent=23 // pred_fallthru
          _
        // Predicated region
        $region65: #{mgat_forward.2} parent=23 // pred_check
          %p837 = pneg %p376
        $region66: #{mgat_forward.2} parent=23 // pred_check_branch
          %839 = sbr.rel (%p837) target = $region68
        $region67: #{mgat_forward.2} parent=23 // pred_region
          %s840 = sand.u32 %s54, 1
          %s841 = scalar_lea.sflag [#allocation9], %s840
          %s842 = sand.u32 %s366, 1
          %s843 = smul.addr %s842, 64
          %s844 = scalar_lea.vmem [#allocation10], %s843
          %s846 = ssub.s32 1024, 1024
          %847 = vsyncadd %s841, %s846
          %s848 = smul.addr %s54, 8
          %s849 = smul.addr %s848, 128
          %s850 = scalar_lea.hbm %s12, %s849
          %s851 = sshll.u32 %s844, 4
          %s852 = int_to_ptr.vmem [resolvable:$true] %s851
          %857 = dma.hbm_to_vmem [thread:$0]  %s850, 1024, %s852, %s841, 128, 128, 8
        $region68: #{mgat_forward.2} parent=23 // pred_fallthru
          _
        // Predicated region
        $region69: #{mgat_forward.2} parent=23 // pred_check
          %p858 = pneg %p402
        $region70: #{mgat_forward.2} parent=23 // pred_check_branch
          %860 = sbr.rel (%p858) target = $region72
        $region71: #{mgat_forward.2} parent=23 // pred_region
          %s861 = sand.u32 %s54, 1
          %s862 = scalar_lea.sflag [#allocation12], %s861
          %s863 = sand.u32 %s392, 1
          %s864 = scalar_lea.vmem [#allocation11], %s863
          %s866 = ssub.s32 16, 16
          %867 = vsyncadd %s862, %s866
          %s868 = smul.addr %s54, 16
          %s869 = scalar_lea.hbm %s13, %s868
          %s871 = sshll.u32 %s864, 4
          %s872 = int_to_ptr.vmem [resolvable:$true] %s871
          %874 = dma.hbm_to_vmem [thread:$0]  %s869, 16, %s872, %s862
        $region72: #{mgat_forward.2} parent=23 // pred_fallthru
          _
        // Predicated region
        $region73: #{mgat_forward.2} parent=23 // pred_check
          %p875 = pneg %p428
        $region74: #{mgat_forward.2} parent=23 // pred_check_branch
          %877 = sbr.rel (%p875) target = $region76
        $region75: #{mgat_forward.2} parent=23 // pred_region
          %s878 = sand.u32 %s54, 1
          %s879 = scalar_lea.sflag [#allocation12], %s878
          %s880 = sand.u32 %s418, 1
          %s881 = smul.addr %s880, 64
          %s882 = scalar_lea.vmem [#allocation13], %s881
          %s884 = ssub.s32 1024, 1024
          %885 = vsyncadd %s879, %s884
          %s886 = smul.addr %s54, 8
          %s887 = smul.addr %s886, 128
          %s888 = scalar_lea.hbm %s14, %s887
          %s889 = sshll.u32 %s882, 4
          %s890 = int_to_ptr.vmem [resolvable:$true] %s889
          %895 = dma.hbm_to_vmem [thread:$0]  %s888, 1024, %s890, %s879, 128, 128, 8
        $region76: #{mgat_forward.2} parent=23 // pred_fallthru
          _
        // Predicated region
        $region77: #{mgat_forward.2} parent=23 // pred_check
          %p896 = pneg %p454
        $region78: #{mgat_forward.2} parent=23 // pred_check_branch
          %898 = sbr.rel (%p896) target = $region80
        $region79: #{mgat_forward.2} parent=23 // pred_region
          %p899 = scmp.lt.s32.totalorder %s54, 1
          %s900 = scalar_select %p899, %s54, 1
          %s901 = scalar_lea.vmem %s15, %s900
        $region80: #{mgat_forward.2} parent=23 // pred_fallthru
          _
        // Predicated region
        $region81: #{mgat_forward.2} parent=23 // pred_check
          %p902 = pneg %p480
        $region82: #{mgat_forward.2} parent=23 // pred_check_branch
          %904 = sbr.rel (%p902) target = $region84
        $region83: #{mgat_forward.2} parent=23 // pred_region
          %s905 = sand.u32 %s54, 1
          %s906 = scalar_lea.sflag [#allocation15], %s905
          %s907 = sand.u32 %s470, 1
          %s908 = smul.addr %s907, 64
          %s909 = scalar_lea.vmem [#allocation14], %s908
          %s911 = ssub.s32 1024, 1024
          %912 = vsyncadd %s906, %s911
          %s913 = smul.addr %s54, 8
          %s914 = smul.addr %s913, 128
          %s915 = scalar_lea.hbm %s16, %s914
          %s916 = sshll.u32 %s909, 4
          %s917 = int_to_ptr.vmem [resolvable:$true] %s916
          %922 = dma.hbm_to_vmem [thread:$0]  %s915, 1024, %s917, %s906, 128, 128, 8
        $region84: #{mgat_forward.2} parent=23 // pred_fallthru
          _
        // Predicated region
        $region85: #{mgat_forward.2} parent=23 // pred_check
          %p923 = pneg %p506
        $region86: #{mgat_forward.2} parent=23 // pred_check_branch
          %925 = sbr.rel (%p923) target = $region88
        $region87: #{mgat_forward.2} parent=23 // pred_region
          %s926 = sand.u32 %s54, 1
          %s927 = scalar_lea.sflag [#allocation15], %s926
          %s928 = sand.u32 %s496, 1
          %s929 = scalar_lea.vmem [#allocation16], %s928
          %s931 = ssub.s32 16, 16
          %932 = vsyncadd %s927, %s931
          %s933 = smul.addr %s54, 16
          %s934 = scalar_lea.hbm %s17, %s933
          %s936 = sshll.u32 %s929, 4
          %s937 = int_to_ptr.vmem [resolvable:$true] %s936
          %939 = dma.hbm_to_vmem [thread:$0]  %s934, 16, %s937, %s927
        $region88: #{mgat_forward.2} parent=23 // pred_fallthru
          _
        // Predicated region
        $region89: #{mgat_forward.2} parent=23 // pred_check
          %p940 = pneg %p532
        $region90: #{mgat_forward.2} parent=23 // pred_check_branch
          %942 = sbr.rel (%p940) target = $region92
        $region91: #{mgat_forward.2} parent=23 // pred_region
          %s943 = sand.u32 %s54, 1
          %s944 = scalar_lea.sflag [#allocation18], %s943
          %s945 = sand.u32 %s522, 1
          %s946 = smul.addr %s945, 64
          %s947 = scalar_lea.vmem [#allocation17], %s946
          %s949 = ssub.s32 1024, 1024
          %950 = vsyncadd %s944, %s949
          %s951 = smul.addr %s54, 8
          %s952 = smul.addr %s951, 128
          %s953 = scalar_lea.hbm %s18, %s952
          %s954 = sshll.u32 %s947, 4
          %s955 = int_to_ptr.vmem [resolvable:$true] %s954
          %960 = dma.hbm_to_vmem [thread:$0]  %s953, 1024, %s955, %s944, 128, 128, 8
        $region92: #{mgat_forward.2} parent=23 // pred_fallthru
          _
        // Predicated region
        $region93: #{mgat_forward.2} parent=23 // pred_check
          %p961 = pneg %p558
        $region94: #{mgat_forward.2} parent=23 // pred_check_branch
          %963 = sbr.rel (%p961) target = $region96
        $region95: #{mgat_forward.2} parent=23 // pred_region
          %s964 = sand.u32 %s54, 1
          %s965 = scalar_lea.sflag [#allocation18], %s964
          %s966 = sand.u32 %s548, 1
          %s967 = scalar_lea.vmem [#allocation19], %s966
          %s969 = ssub.s32 16, 16
          %970 = vsyncadd %s965, %s969
          %s971 = smul.addr %s54, 16
          %s972 = scalar_lea.hbm %s19, %s971
          %s974 = sshll.u32 %s967, 4
          %s975 = int_to_ptr.vmem [resolvable:$true] %s974
          %977 = dma.hbm_to_vmem [thread:$0]  %s972, 16, %s975, %s965
        $region96: #{mgat_forward.2} parent=23 // pred_fallthru
          _
        // Predicated region
        $region97: #{mgat_forward.2} parent=23 // pred_check
          %p978 = pneg %p584
        $region98: #{mgat_forward.2} parent=23 // pred_check_branch
          %980 = sbr.rel (%p978) target = $region100
        $region99: #{mgat_forward.2} parent=23 // pred_region
          %s981 = sand.u32 %s54, 1
          %s982 = scalar_lea.sflag [#allocation21], %s981
          %s983 = sand.u32 %s574, 1
          %s984 = smul.addr %s983, 64
          %s985 = scalar_lea.vmem [#allocation20], %s984
          %s987 = ssub.s32 1024, 1024
          %988 = vsyncadd %s982, %s987
          %s989 = smul.addr %s54, 8
          %s990 = smul.addr %s989, 128
          %s991 = scalar_lea.hbm %s20, %s990
          %s992 = sshll.u32 %s985, 4
          %s993 = int_to_ptr.vmem [resolvable:$true] %s992
          %998 = dma.hbm_to_vmem [thread:$0]  %s991, 1024, %s993, %s982, 128, 128, 8
        $region100: #{mgat_forward.2} parent=23 // pred_fallthru
          _
        // Predicated region
        $region101: #{mgat_forward.2} parent=23 // pred_check
          %p999 = pneg %p610
        $region102: #{mgat_forward.2} parent=23 // pred_check_branch
          %1001 = sbr.rel (%p999) target = $region104
        $region103: #{mgat_forward.2} parent=23 // pred_region
          %p1002 = scmp.lt.s32.totalorder %s54, 1
          %s1003 = scalar_select %p1002, %s54, 1
          %s1004 = scalar_lea.vmem %s21, %s1003
        $region104: #{mgat_forward.2} parent=23 // pred_fallthru
          _
        // Predicated region
        $region105: #{mgat_forward.2} parent=23 // pred_check
          %p1005 = pneg %p636
        $region106: #{mgat_forward.2} parent=23 // pred_check_branch
          %1007 = sbr.rel (%p1005) target = $region108
        $region107: #{mgat_forward.2} parent=23 // pred_region
          %s1008 = sand.u32 %s54, 1
          %s1009 = scalar_lea.sflag [#allocation21], %s1008
          %s1010 = sand.u32 %s626, 1
          %s1011 = smul.addr %s1010, 64
          %s1012 = scalar_lea.vmem [#allocation22], %s1011
          %s1014 = ssub.s32 1024, 1024
          %1015 = vsyncadd %s1009, %s1014
          %s1016 = smul.addr %s54, 8
          %s1017 = smul.addr %s1016, 128
          %s1018 = scalar_lea.hbm %s22, %s1017
          %s1019 = sshll.u32 %s1012, 4
          %s1020 = int_to_ptr.vmem [resolvable:$true] %s1019
          %1025 = dma.hbm_to_vmem [thread:$0]  %s1018, 1024, %s1020, %s1009, 128, 128, 8
        $region108: #{mgat_forward.2} parent=23 // pred_fallthru
          _
        // Predicated region
        $region109: #{mgat_forward.2} parent=23 // pred_check
          %p1026 = pneg %p662
        $region110: #{mgat_forward.2} parent=23 // pred_check_branch
          %1028 = sbr.rel (%p1026) target = $region112
        $region111: #{mgat_forward.2} parent=23 // pred_region
          %s1029 = sand.u32 %s652, 1
          %s1030 = scalar_lea.sflag [#allocation24], %s1029
          %s1031 = sand.u32 %s652, 1
          %s1032 = scalar_lea.vmem [#allocation23], %s1031
          %s1034 = ssub.s32 16, 16
          %1035 = vsyncadd %s1030, %s1034
          %s1036 = smul.addr %s54, 16
          %s1037 = scalar_lea.hbm %s23, %s1036
          %s1039 = sshll.u32 %s1032, 4
          %s1040 = int_to_ptr.vmem [resolvable:$true] %s1039
          %1042 = dma.hbm_to_vmem [thread:$0]  %s1037, 16, %s1040, %s1030
        $region112: #{mgat_forward.2} parent=23 // pred_fallthru
          _
      $region24: #{mgat_forward.2} parent=5 // pred_fallthru
        _
      %p1043 = scmp.le.s32.totalorder 1, %s54
      %p1044 = scmp.lt.s32.totalorder %s54, 3
      %p1045 = pnand %p1043, %p1044
      %p1046 = pneg %p1045
      // Predicated region
      $region113: #{mgat_forward.2} parent=5 // pred_check
        _
      $region114: #{mgat_forward.2} parent=5 // pred_check_branch
        %1048 = sbr.rel (%p1045) target = $region116
      $region115: #{mgat_forward.2} parent=5 // pred_region
        %s1049 = ssub.s32 %s54, 1
        %s1050 = sand.u32 %s109, 1
        %s1051 = scalar_lea.sflag [#allocation4], %s1050
        %s1052 = sand.u32 %s109, 1
        %s1053 = smul.addr %s1052, 8
        %s1054 = scalar_lea.vmem [#allocation3], %s1053
        // Predicated region
        $region117: #{mgat_forward.2} parent=115 // pred_check
          %p1055 = pneg %p122
        $region118: #{mgat_forward.2} parent=115 // pred_check_branch
          %1057 = sbr.rel (%p1055) target = $region120
        $region119: #{mgat_forward.2} parent=115 // pred_region
          %1058 = dma.done %s1051, 128
        $region120: #{mgat_forward.2} parent=115 // pred_fallthru
          _
        %s1059 = sand.u32 %s59, 1
        %s1060 = scalar_lea.sflag [#allocation6], %s1059
        %s1061 = sand.u32 %s239, 1
        %s1062 = smul.addr %s1061, 2
        %s1063 = scalar_lea.vmem [#allocation5], %s1062
        // Predicated region
        $region121: #{mgat_forward.2} parent=115 // pred_check
          %p1064 = pneg %p252
        $region122: #{mgat_forward.2} parent=115 // pred_check_branch
          %1066 = sbr.rel (%p1064) target = $region124
        $region123: #{mgat_forward.2} parent=115 // pred_region
          %1067 = dma.done %s1060, 32
        $region124: #{mgat_forward.2} parent=115 // pred_fallthru
          _
        %s1068 = sand.u32 %s59, 1
        %s1069 = scalar_lea.sflag [#allocation6], %s1068
        %s1070 = sand.u32 %s291, 1
        %s1071 = scalar_lea.vmem [#allocation7], %s1070
        // Predicated region
        $region125: #{mgat_forward.2} parent=115 // pred_check
          %p1072 = pneg %p304
        $region126: #{mgat_forward.2} parent=115 // pred_check_branch
          %1074 = sbr.rel (%p1072) target = $region128
        $region127: #{mgat_forward.2} parent=115 // pred_region
          %1075 = dma.done %s1069, 16
        $region128: #{mgat_forward.2} parent=115 // pred_fallthru
          _
        %s1076 = sand.u32 %s59, 1
        %s1077 = scalar_lea.sflag [#allocation9], %s1076
        %s1078 = sand.u32 %s343, 1
        %s1079 = scalar_lea.vmem [#allocation8], %s1078
        // Predicated region
        $region129: #{mgat_forward.2} parent=115 // pred_check
          %p1080 = pneg %p356
        $region130: #{mgat_forward.2} parent=115 // pred_check_branch
          %1082 = sbr.rel (%p1080) target = $region132
        $region131: #{mgat_forward.2} parent=115 // pred_region
          %1083 = dma.done %s1077, 16
        $region132: #{mgat_forward.2} parent=115 // pred_fallthru
          _
        %s1084 = sand.u32 %s59, 1
        %s1085 = scalar_lea.sflag [#allocation9], %s1084
        %s1086 = sand.u32 %s369, 1
        %s1087 = smul.addr %s1086, 64
        %s1088 = scalar_lea.vmem [#allocation10], %s1087
        // Predicated region
        $region133: #{mgat_forward.2} parent=115 // pred_check
          %p1089 = pneg %p382
        $region134: #{mgat_forward.2} parent=115 // pred_check_branch
          %1091 = sbr.rel (%p1089) target = $region136
        $region135: #{mgat_forward.2} parent=115 // pred_region
          %1092 = dma.done %s1085, 1024
        $region136: #{mgat_forward.2} parent=115 // pred_fallthru
          _
        %s1093 = sand.u32 %s59, 1
        %s1094 = scalar_lea.sflag [#allocation12], %s1093
        %s1095 = sand.u32 %s395, 1
        %s1096 = scalar_lea.vmem [#allocation11], %s1095
        // Predicated region
        $region137: #{mgat_forward.2} parent=115 // pred_check
          %p1097 = pneg %p408
        $region138: #{mgat_forward.2} parent=115 // pred_check_branch
          %1099 = sbr.rel (%p1097) target = $region140
        $region139: #{mgat_forward.2} parent=115 // pred_region
          %1100 = dma.done %s1094, 16
        $region140: #{mgat_forward.2} parent=115 // pred_fallthru
          _
        %s1101 = sand.u32 %s59, 1
        %s1102 = scalar_lea.sflag [#allocation12], %s1101
        %s1103 = sand.u32 %s421, 1
        %s1104 = smul.addr %s1103, 64
        %s1105 = scalar_lea.vmem [#allocation13], %s1104
        // Predicated region
        $region141: #{mgat_forward.2} parent=115 // pred_check
          %p1106 = pneg %p434
        $region142: #{mgat_forward.2} parent=115 // pred_check_branch
          %1108 = sbr.rel (%p1106) target = $region144
        $region143: #{mgat_forward.2} parent=115 // pred_region
          %1109 = dma.done %s1102, 1024
        $region144: #{mgat_forward.2} parent=115 // pred_fallthru
          _
        %s1110 = sand.u32 %s59, 1
        %s1111 = scalar_lea.sflag [#allocation15], %s1110
        %s1112 = sand.u32 %s473, 1
        %s1113 = smul.addr %s1112, 64
        %s1114 = scalar_lea.vmem [#allocation14], %s1113
        // Predicated region
        $region145: #{mgat_forward.2} parent=115 // pred_check
          %p1115 = pneg %p486
        $region146: #{mgat_forward.2} parent=115 // pred_check_branch
          %1117 = sbr.rel (%p1115) target = $region148
        $region147: #{mgat_forward.2} parent=115 // pred_region
          %1118 = dma.done %s1111, 1024
        $region148: #{mgat_forward.2} parent=115 // pred_fallthru
          _
        %s1119 = sand.u32 %s59, 1
        %s1120 = scalar_lea.sflag [#allocation15], %s1119
        %s1121 = sand.u32 %s499, 1
        %s1122 = scalar_lea.vmem [#allocation16], %s1121
        // Predicated region
        $region149: #{mgat_forward.2} parent=115 // pred_check
          %p1123 = pneg %p512
        $region150: #{mgat_forward.2} parent=115 // pred_check_branch
          %1125 = sbr.rel (%p1123) target = $region152
        $region151: #{mgat_forward.2} parent=115 // pred_region
          %1126 = dma.done %s1120, 16
        $region152: #{mgat_forward.2} parent=115 // pred_fallthru
          _
        %s1127 = sand.u32 %s59, 1
        %s1128 = scalar_lea.sflag [#allocation18], %s1127
        %s1129 = sand.u32 %s525, 1
        %s1130 = smul.addr %s1129, 64
        %s1131 = scalar_lea.vmem [#allocation17], %s1130
        // Predicated region
        $region153: #{mgat_forward.2} parent=115 // pred_check
          %p1132 = pneg %p538
        $region154: #{mgat_forward.2} parent=115 // pred_check_branch
          %1134 = sbr.rel (%p1132) target = $region156
        $region155: #{mgat_forward.2} parent=115 // pred_region
          %1135 = dma.done %s1128, 1024
        $region156: #{mgat_forward.2} parent=115 // pred_fallthru
          _
        %s1136 = sand.u32 %s59, 1
        %s1137 = scalar_lea.sflag [#allocation18], %s1136
        %s1138 = sand.u32 %s551, 1
        %s1139 = scalar_lea.vmem [#allocation19], %s1138
        // Predicated region
        $region157: #{mgat_forward.2} parent=115 // pred_check
          %p1140 = pneg %p564
        $region158: #{mgat_forward.2} parent=115 // pred_check_branch
          %1142 = sbr.rel (%p1140) target = $region160
        $region159: #{mgat_forward.2} parent=115 // pred_region
          %1143 = dma.done %s1137, 16
        $region160: #{mgat_forward.2} parent=115 // pred_fallthru
          _
        %s1144 = sand.u32 %s59, 1
        %s1145 = scalar_lea.sflag [#allocation21], %s1144
        %s1146 = sand.u32 %s577, 1
        %s1147 = smul.addr %s1146, 64
        %s1148 = scalar_lea.vmem [#allocation20], %s1147
        // Predicated region
        $region161: #{mgat_forward.2} parent=115 // pred_check
          %p1149 = pneg %p590
        $region162: #{mgat_forward.2} parent=115 // pred_check_branch
          %1151 = sbr.rel (%p1149) target = $region164
        $region163: #{mgat_forward.2} parent=115 // pred_region
          %1152 = dma.done %s1145, 1024
        $region164: #{mgat_forward.2} parent=115 // pred_fallthru
          _
        %s1153 = sand.u32 %s59, 1
        %s1154 = scalar_lea.sflag [#allocation21], %s1153
        %s1155 = sand.u32 %s629, 1
        %s1156 = smul.addr %s1155, 64
        %s1157 = scalar_lea.vmem [#allocation22], %s1156
        // Predicated region
        $region165: #{mgat_forward.2} parent=115 // pred_check
          %p1158 = pneg %p642
        $region166: #{mgat_forward.2} parent=115 // pred_check_branch
          %1160 = sbr.rel (%p1158) target = $region168
        $region167: #{mgat_forward.2} parent=115 // pred_region
          %1161 = dma.done %s1154, 1024
        $region168: #{mgat_forward.2} parent=115 // pred_fallthru
          _
        %s1162 = sand.u32 %s655, 1
        %s1163 = scalar_lea.sflag [#allocation24], %s1162
        %s1164 = sand.u32 %s655, 1
        %s1165 = scalar_lea.vmem [#allocation23], %s1164
        // Predicated region
        $region169: #{mgat_forward.2} parent=115 // pred_check
          %p1166 = pneg %p668
        $region170: #{mgat_forward.2} parent=115 // pred_check_branch
          %1168 = sbr.rel (%p1166) target = $region172
        $region171: #{mgat_forward.2} parent=115 // pred_region
          %1169 = dma.done %s1163, 16
        $region172: #{mgat_forward.2} parent=115 // pred_fallthru
          _
        %p1170 = pneg %p75
        %p1171 = pneg %p72
        %p1172 = pneg %p96
        %p1173 = pneg %p93
        %s1174 = sand.u32 %s109, 1
        %s1175 = scalar_lea.sflag [#allocation4], %s1174
        %s1176 = sand.u32 %s109, 1
        %s1177 = smul.addr %s1176, 8
        %s1178 = scalar_lea.vmem [#allocation3], %s1177
        %p1179 = pneg %p122
        %p1180 = pneg %p119
        %p1181 = scmp.lt.s32.totalorder %s59, 1
        %s1182 = scalar_select %p1181, %s59, 1
        %s1183 = smul.addr %s1182, 2
        %s1184 = smul.addr %s1183, 8
        %s1185 = scalar_lea.vmem %s3, %s1184
        %p1186 = pneg %p148
        %p1187 = pneg %p145
        %p1188 = scmp.lt.s32.totalorder %s59, 1
        %s1189 = scalar_select %p1188, %s59, 1
        %s1190 = smul.addr %s1189, 32
        %s1191 = smul.addr %s1190, 8
        %s1192 = scalar_lea.vmem %s4, %s1191
        %p1193 = pneg %p174
        %p1194 = pneg %p171
        %p1195 = scmp.lt.s32.totalorder %s59, 1
        %s1196 = scalar_select %p1195, %s59, 1
        %s1197 = smul.addr %s1196, 2
        %s1198 = scalar_lea.vmem %s5, %s1197
        %p1199 = pneg %p200
        %p1200 = pneg %p197
        %p1201 = scmp.lt.s32.totalorder %s59, 1
        %s1202 = scalar_select %p1201, %s59, 1
        %s1203 = smul.addr %s1202, 64
        %s1204 = smul.addr %s1203, 8
        %s1205 = scalar_lea.vmem %s6, %s1204
        %p1206 = pneg %p226
        %p1207 = pneg %p223
        %s1208 = sand.u32 %s59, 1
        %s1209 = scalar_lea.sflag [#allocation6], %s1208
        %s1210 = sand.u32 %s239, 1
        %s1211 = smul.addr %s1210, 2
        %s1212 = scalar_lea.vmem [#allocation5], %s1211
        %p1213 = pneg %p252
        %p1214 = pneg %p249
        %p1215 = scmp.lt.s32.totalorder %s59, 1
        %s1216 = scalar_select %p1215, %s59, 1
        %s1217 = smul.addr %s1216, 32
        %s1218 = smul.addr %s1217, 8
        %s1219 = scalar_lea.vmem %s8, %s1218
        %p1220 = pneg %p278
        %p1221 = pneg %p275
        %s1222 = sand.u32 %s59, 1
        %s1223 = scalar_lea.sflag [#allocation6], %s1222
        %s1224 = sand.u32 %s291, 1
        %s1225 = scalar_lea.vmem [#allocation7], %s1224
        %p1226 = pneg %p304
        %p1227 = pneg %p301
        %p1228 = scmp.lt.s32.totalorder %s59, 1
        %s1229 = scalar_select %p1228, %s59, 1
        %s1230 = smul.addr %s1229, 32
        %s1231 = smul.addr %s1230, 8
        %s1232 = scalar_lea.vmem %s10, %s1231
        %p1233 = pneg %p330
        %p1234 = pneg %p327
        %s1235 = sand.u32 %s59, 1
        %s1236 = scalar_lea.sflag [#allocation9], %s1235
        %s1237 = sand.u32 %s343, 1
        %s1238 = scalar_lea.vmem [#allocation8], %s1237
        %p1239 = pneg %p356
        %p1240 = pneg %p353
        %s1241 = sand.u32 %s59, 1
        %s1242 = scalar_lea.sflag [#allocation9], %s1241
        %s1243 = sand.u32 %s369, 1
        %s1244 = smul.addr %s1243, 64
        %s1245 = scalar_lea.vmem [#allocation10], %s1244
        %p1246 = pneg %p382
        %p1247 = pneg %p379
        %s1248 = sand.u32 %s59, 1
        %s1249 = scalar_lea.sflag [#allocation12], %s1248
        %s1250 = sand.u32 %s395, 1
        %s1251 = scalar_lea.vmem [#allocation11], %s1250
        %p1252 = pneg %p408
        %p1253 = pneg %p405
        %s1254 = sand.u32 %s59, 1
        %s1255 = scalar_lea.sflag [#allocation12], %s1254
        %s1256 = sand.u32 %s421, 1
        %s1257 = smul.addr %s1256, 64
        %s1258 = scalar_lea.vmem [#allocation13], %s1257
        %p1259 = pneg %p434
        %p1260 = pneg %p431
        %p1261 = scmp.lt.s32.totalorder %s59, 1
        %s1262 = scalar_select %p1261, %s59, 1
        %s1263 = scalar_lea.vmem %s15, %s1262
        %p1264 = pneg %p460
        %p1265 = pneg %p457
        %s1266 = sand.u32 %s59, 1
        %s1267 = scalar_lea.sflag [#allocation15], %s1266
        %s1268 = sand.u32 %s473, 1
        %s1269 = smul.addr %s1268, 64
        %s1270 = scalar_lea.vmem [#allocation14], %s1269
        %p1271 = pneg %p486
        %p1272 = pneg %p483
        %s1273 = sand.u32 %s59, 1
        %s1274 = scalar_lea.sflag [#allocation15], %s1273
        %s1275 = sand.u32 %s499, 1
        %s1276 = scalar_lea.vmem [#allocation16], %s1275
        %p1277 = pneg %p512
        %p1278 = pneg %p509
        %s1279 = sand.u32 %s59, 1
        %s1280 = scalar_lea.sflag [#allocation18], %s1279
        %s1281 = sand.u32 %s525, 1
        %s1282 = smul.addr %s1281, 64
        %s1283 = scalar_lea.vmem [#allocation17], %s1282
        %p1284 = pneg %p538
        %p1285 = pneg %p535
        %s1286 = sand.u32 %s59, 1
        %s1287 = scalar_lea.sflag [#allocation18], %s1286
        %s1288 = sand.u32 %s551, 1
        %s1289 = scalar_lea.vmem [#allocation19], %s1288
        %p1290 = pneg %p564
        %p1291 = pneg %p561
        %s1292 = sand.u32 %s59, 1
        %s1293 = scalar_lea.sflag [#allocation21], %s1292
        %s1294 = sand.u32 %s577, 1
        %s1295 = smul.addr %s1294, 64
        %s1296 = scalar_lea.vmem [#allocation20], %s1295
        %p1297 = pneg %p590
        %p1298 = pneg %p587
        %p1299 = scmp.lt.s32.totalorder %s59, 1
        %s1300 = scalar_select %p1299, %s59, 1
        %s1301 = scalar_lea.vmem %s21, %s1300
        %p1302 = pneg %p616
        %p1303 = pneg %p613
        %s1304 = sand.u32 %s59, 1
        %s1305 = scalar_lea.sflag [#allocation21], %s1304
        %s1306 = sand.u32 %s629, 1
        %s1307 = smul.addr %s1306, 64
        %s1308 = scalar_lea.vmem [#allocation22], %s1307
        %p1309 = pneg %p642
        %p1310 = pneg %p639
        %s1311 = sand.u32 %s655, 1
        %s1312 = scalar_lea.sflag [#allocation24], %s1311
        %s1313 = sand.u32 %s655, 1
        %s1314 = scalar_lea.vmem [#allocation23], %s1313
        %p1315 = pneg %p668
        %p1316 = pneg %p665
        %p1317 = pneg %p694
        %p1318 = pneg %p691
        %p1319 = scmp.lt.s32.totalorder %s59, 1
        %s1320 = scalar_select %p1319, %s59, 1
        %s1321 = smul.addr %s1320, 4
        %s1322 = smul.addr %s1321, 8
        %s1323 = scalar_lea.vmem %s24, %s1322
        %p1324 = scmp.lt.s32.totalorder %s59, 1
        %s1325 = scalar_select %p1324, %s59, 1
        %s1326 = smul.addr %s1325, 2
        %s1327 = smul.addr %s1326, 8
        %s1328 = scalar_lea.vmem %s3, %s1327
        %p1329 = scmp.lt.s32.totalorder %s59, 1
        %s1330 = scalar_select %p1329, %s59, 1
        %s1331 = smul.addr %s1330, 32
        %s1332 = smul.addr %s1331, 8
        %s1333 = scalar_lea.vmem %s4, %s1332
        %p1334 = scmp.lt.s32.totalorder %s59, 1
        %s1335 = scalar_select %p1334, %s59, 1
        %s1336 = smul.addr %s1335, 2
        %s1337 = scalar_lea.vmem %s5, %s1336
        %p1338 = scmp.lt.s32.totalorder %s59, 1
        %s1339 = scalar_select %p1338, %s59, 1
        %s1340 = smul.addr %s1339, 64
        %s1341 = smul.addr %s1340, 8
        %s1342 = scalar_lea.vmem %s6, %s1341
        %p1343 = scmp.lt.s32.totalorder %s59, 1
        %s1344 = scalar_select %p1343, %s59, 1
        %s1345 = smul.addr %s1344, 32
        %s1346 = smul.addr %s1345, 8
        %s1347 = scalar_lea.vmem %s8, %s1346
        %p1348 = scmp.lt.s32.totalorder %s59, 1
        %s1349 = scalar_select %p1348, %s59, 1
        %s1350 = smul.addr %s1349, 32
        %s1351 = smul.addr %s1350, 8
        %s1352 = scalar_lea.vmem %s10, %s1351
        %p1353 = scmp.lt.s32.totalorder %s59, 1
        %s1354 = scalar_select %p1353, %s59, 1
        %s1355 = scalar_lea.vmem %s15, %s1354
        %p1356 = scmp.lt.s32.totalorder %s59, 1
        %s1357 = scalar_select %p1356, %s59, 1
        %s1358 = scalar_lea.vmem %s21, %s1357
        %p1359 = scmp.lt.s32.totalorder %s59, 1
        %s1360 = scalar_select %p1359, %s59, 1
        %s1361 = smul.addr %s1360, 4
        %s1362 = smul.addr %s1361, 8
        %s1363 = scalar_lea.vmem %s24, %s1362
        %v1364 = vld [vmem:[%s0] sm:$0xff]
        %v1365 = vld [vmem:[%s0 + $0x8] sm:$0xff]
        %vm1366 = vcmp.gt.f32.partialorder %v1364, 0.5
        %vm1367 = vcmp.gt.f32.partialorder %v1365, 0.5
        %vm1368 = vcmask 130048
        %v1369 = vsel %vm1368, %v1364, 0.0
        %v1370 = vsel %vm1368, %v1365, 0.0
        %v1371 = vadd.f32 %v1369, %v1370
        %v1372 = vrot.slane %v1371, 4
        %v1373 = vadd.f32 %v1371, %v1372
        %v1374 = vrot.slane %v1373, 2
        %v1375 = vadd.f32 %v1373, %v1374
        %v1376 = vrot.slane %v1375, 1
        %v1377 = vadd.f32 %v1375, %v1376
        %vm1378 = vcmp.gt.f32.partialorder %v1377, 0.0
        %v1379 = vrsqrt.pop %v1377
        %v1380 = vsel %vm1378, %v1379, 0.0
        %v1381 = vld [vmem:[%s1] sm:$0xff]
        %v1382 = vld [vmem:[%s1 + $0x8] sm:$0xff]
        %v1383 = vld [vmem:[%s1054] sm:$0xff]
        %v1384 = vld [vmem:[%s1333] sm:$0xff]
        %v1385 = vld [vmem:[%s1333 + $0x8] sm:$0xff]
        %v1386 = vld [vmem:[%s1333 + $0x10] sm:$0xff]
        %v1387 = vld [vmem:[%s1333 + $0x18] sm:$0xff]
        %v1388 = vld [vmem:[%s1333 + $0x20] sm:$0xff]
        %v1389 = vld [vmem:[%s1333 + $0x28] sm:$0xff]
        %v1390 = vld [vmem:[%s1333 + $0x30] sm:$0xff]
        %v1391 = vld [vmem:[%s1333 + $0x38] sm:$0xff]
        %v1392 = vld [vmem:[%s1333 + $0x40] sm:$0xff]
        %v1393 = vld [vmem:[%s1333 + $0x48] sm:$0xff]
        %v1394 = vld [vmem:[%s1333 + $0x50] sm:$0xff]
        %v1395 = vld [vmem:[%s1333 + $0x58] sm:$0xff]
        %v1396 = vld [vmem:[%s1333 + $0x60] sm:$0xff]
        %v1397 = vld [vmem:[%s1333 + $0x68] sm:$0xff]
        %v1398 = vld [vmem:[%s1333 + $0x70] sm:$0xff]
        %v1399 = vld [vmem:[%s1333 + $0x78] sm:$0xff]
        %v1400 = vld [vmem:[%s1333 + $0x80] sm:$0xff]
        %v1401 = vld [vmem:[%s1333 + $0x88] sm:$0xff]
        %v1402 = vld [vmem:[%s1333 + $0x90] sm:$0xff]
        %v1403 = vld [vmem:[%s1333 + $0x98] sm:$0xff]
        %v1404 = vld [vmem:[%s1333 + $0xa0] sm:$0xff]
        %v1405 = vld [vmem:[%s1333 + $0xa8] sm:$0xff]
        %v1406 = vld [vmem:[%s1333 + $0xb0] sm:$0xff]
        %v1407 = vld [vmem:[%s1333 + $0xb8] sm:$0xff]
        %v1408 = vld [vmem:[%s1333 + $0xc0] sm:$0xff]
        %v1409 = vld [vmem:[%s1333 + $0xc8] sm:$0xff]
        %v1410 = vld [vmem:[%s1333 + $0xd0] sm:$0xff]
        %v1411 = vld [vmem:[%s1333 + $0xd8] sm:$0xff]
        %v1412 = vld [vmem:[%s1333 + $0xe0] sm:$0xff]
        %v1413 = vld [vmem:[%s1333 + $0xe8] sm:$0xff]
        %v1414 = vld [vmem:[%s1333 + $0xf0] sm:$0xff]
        %v1415 = vld [vmem:[%s1333 + $0xf8] sm:$0xff]
        %v1416 = vld [vmem:[%s1337] sm:$0x3]
        %v1418 = vlaneseq
        %v1419 = vshrl.u32 %v1418, 7
        %v1420 = vsub.s32 0, %v1419
        %v1421 = vrot.slane %v1416, %v1420
        %v1422 = vlaneseq
        %v1423 = vshrl.u32 %v1422, 7
        %v1424 = vsub.s32 1, %v1423
        %v1425 = vrot.slane %v1416, %v1424
        %1428 = vmatprep.subr.mxu0 %v1385
        %1429 = vmatpush1.msra.mxu0 %v1384
        %1430 = vmatprep.subr.mxu0 %v1387
        %1431 = vmatpush1.msra.mxu0 %v1386
        %1432 = vmatprep.subr.mxu0 %v1389
        %1433 = vmatpush1.msra.mxu0 %v1388
        %1434 = vmatprep.subr.mxu0 %v1391
        %1435 = vmatpush1.msra.mxu0 %v1390
        %1436 = vmatprep.subr.mxu0 %v1393
        %1437 = vmatpush1.msra.mxu0 %v1392
        %1438 = vmatprep.subr.mxu0 %v1395
        %1439 = vmatpush1.msra.mxu0 %v1394
        %1440 = vmatprep.subr.mxu0 %v1397
        %1441 = vmatpush1.msra.mxu0 %v1396
        %1442 = vmatprep.subr.mxu0 %v1399
        %1443 = vmatpush1.msra.mxu0 %v1398
        %1444 = vmatprep.subr.mxu0 %v1401
        %1445 = vmatpush1.msra.mxu0 %v1400
        %1446 = vmatprep.subr.mxu0 %v1403
        %1447 = vmatpush1.msra.mxu0 %v1402
        %1448 = vmatprep.subr.mxu0 %v1405
        %1449 = vmatpush1.msra.mxu0 %v1404
        %1450 = vmatprep.subr.mxu0 %v1407
        %1451 = vmatpush1.msra.mxu0 %v1406
        %1452 = vmatprep.subr.mxu0 %v1409
        %1453 = vmatpush1.msra.mxu0 %v1408
        %1454 = vmatprep.subr.mxu0 %v1411
        %1455 = vmatpush1.msra.mxu0 %v1410
        %1456 = vmatprep.subr.mxu0 %v1413
        %1457 = vmatpush1.msra.mxu0 %v1412
        %1458 = vmatprep.subr.mxu0 %v1415
        %1459 = vmatpush1.msra.mxu0 %v1414
        %1460 = vmatprep.subr.mxu0 0.0
        %1461 = vmatpush1.msra.mxu0 0.0
        %1462 = vmatprep.subr.mxu0 0.0
        %1463 = vmatpush1.msra.mxu0 0.0
        %1464 = vmatprep.subr.mxu0 0.0
        %1465 = vmatpush1.msra.mxu0 0.0
        %1466 = vmatprep.subr.mxu0 0.0
        %1467 = vmatpush1.msra.mxu0 0.0
        %1468 = vmatprep.subr.mxu0 0.0
        %1469 = vmatpush1.msra.mxu0 0.0
        %1470 = vmatprep.subr.mxu0 0.0
        %1471 = vmatpush1.msra.mxu0 0.0
        %1472 = vmatprep.subr.mxu0 0.0
        %1473 = vmatpush1.msra.mxu0 0.0
        %1474 = vmatprep.subr.mxu0 0.0
        %1475 = vmatpush1.msra.mxu0 0.0
        %1476 = vmatprep.subr.mxu0 0.0
        %1477 = vmatpush1.msra.mxu0 0.0
        %1478 = vmatprep.subr.mxu0 0.0
        %1479 = vmatpush1.msra.mxu0 0.0
        %1480 = vmatprep.subr.mxu0 0.0
        %1481 = vmatpush1.msra.mxu0 0.0
        %1482 = vmatprep.subr.mxu0 0.0
        %1483 = vmatpush1.msra.mxu0 0.0
        %1484 = vmatprep.subr.mxu0 0.0
        %1485 = vmatpush1.msra.mxu0 0.0
        %1486 = vmatprep.subr.mxu0 0.0
        %1487 = vmatpush1.msra.mxu0 0.0
        %1488 = vmatprep.subr.mxu0 0.0
        %1489 = vmatpush1.msra.mxu0 0.0
        %1490 = vmatprep.subr.mxu0 0.0
        %1491 = vmatpush1.msra.mxu0 0.0
        %1492 = vmatprep.mubr.f32.mxu0 0.0
        %1493 = vmatmul.mubr.f32.gmra.mrb[0].mxu0 %v1383
        %v1494 = vpop.f32.mrb[0].mxu0
        %v1495 = vadd.f32 %v1421, %v1494
        %v1496 = vpop.f32.mrb[0].mxu0
        %v1497 = vadd.f32 %v1425, %v1496
        %1498 = vdwg.mxu0
        %v1499 = vtanh.pop %v1495
        %v1500 = vtanh.pop %v1497
        %v1501 = vld [vmem:[%s1328] sm:$0xff]
        %v1502 = vld [vmem:[%s1328 + $0x8] sm:$0xff]
        %1503 = vst [vmem:[#allocation2] sm:$0xff] %v1501
        %1504 = vst [vmem:[#allocation2 + $0x8] sm:$0xff] %v1502
        %1505 = vst [vmem:[#allocation2 + $0x10] sm:$0xff] %v1499
        %1506 = vst [vmem:[#allocation2 + $0x18] sm:$0xff] %v1500
        %v1507 = vld [vmem:[#allocation2] sm:$0xff]
        %v1508 = vld [vmem:[#allocation2 + $0x8] sm:$0xff]
        %v1509 = vld [vmem:[#allocation2 + $0x10] sm:$0xff]
        %v1510 = vld [vmem:[#allocation2 + $0x18] sm:$0xff]
        %v1511 = vmul.f32 %v1507, %v1507
        %v1512 = vmul.f32 %v1508, %v1508
        %v1513 = vmul.f32 %v1509, %v1509
        %v1514 = vmul.f32 %v1510, %v1510
        %v1515 = vadd.f32 %v1511, %v1512
        %1516 = vadd.xlane.f32.xlu0 %v1515
        %v1517 = vpop.xlane.xlu0 %1516
        %v1518 = vadd.f32 %v1513, %v1514
        %1519 = vadd.xlane.f32.xlu0 %v1518
        %v1520 = vpop.xlane.xlu0 %1519
        %v1521 = vmax.f32 %v1517, 1e-24
        %v1522 = vmax.f32 %v1520, 1e-24
        %v1523 = vrsqrt.pop %v1521
        %v1524 = vrsqrt.pop %v1522
        %v1525 = vmul.f32 %v1507, %v1523
        %v1526 = vmul.f32 %v1508, %v1523
        %v1527 = vmul.f32 %v1509, %v1524
        %v1528 = vmul.f32 %v1510, %v1524
        %v1529 = vld [vmem:[%s1342] sm:$0xff]
        %v1530 = vld [vmem:[%s1342 + $0x8] sm:$0xff]
        %v1531 = vld [vmem:[%s1342 + $0x10] sm:$0xff]
        %v1532 = vld [vmem:[%s1342 + $0x18] sm:$0xff]
        %v1533 = vld [vmem:[%s1342 + $0x20] sm:$0xff]
        %v1534 = vld [vmem:[%s1342 + $0x28] sm:$0xff]
        %v1535 = vld [vmem:[%s1342 + $0x30] sm:$0xff]
        %v1536 = vld [vmem:[%s1342 + $0x38] sm:$0xff]
        %v1537 = vld [vmem:[%s1342 + $0x40] sm:$0xff]
        %v1538 = vld [vmem:[%s1342 + $0x48] sm:$0xff]
        %v1539 = vld [vmem:[%s1342 + $0x50] sm:$0xff]
        %v1540 = vld [vmem:[%s1342 + $0x58] sm:$0xff]
        %v1541 = vld [vmem:[%s1342 + $0x60] sm:$0xff]
        %v1542 = vld [vmem:[%s1342 + $0x68] sm:$0xff]
        %v1543 = vld [vmem:[%s1342 + $0x70] sm:$0xff]
        %v1544 = vld [vmem:[%s1342 + $0x78] sm:$0xff]
        %v1545 = vld [vmem:[%s1342 + $0x80] sm:$0xff]
        %v1546 = vld [vmem:[%s1342 + $0x88] sm:$0xff]
        %v1547 = vld [vmem:[%s1342 + $0x90] sm:$0xff]
        %v1548 = vld [vmem:[%s1342 + $0x98] sm:$0xff]
        %v1549 = vld [vmem:[%s1342 + $0xa0] sm:$0xff]
        %v1550 = vld [vmem:[%s1342 + $0xa8] sm:$0xff]
        %v1551 = vld [vmem:[%s1342 + $0xb0] sm:$0xff]
        %v1552 = vld [vmem:[%s1342 + $0xb8] sm:$0xff]
        %v1553 = vld [vmem:[%s1342 + $0xc0] sm:$0xff]
        %v1554 = vld [vmem:[%s1342 + $0xc8] sm:$0xff]
        %v1555 = vld [vmem:[%s1342 + $0xd0] sm:$0xff]
        %v1556 = vld [vmem:[%s1342 + $0xd8] sm:$0xff]
        %v1557 = vld [vmem:[%s1342 + $0xe0] sm:$0xff]
        %v1558 = vld [vmem:[%s1342 + $0xe8] sm:$0xff]
        %v1559 = vld [vmem:[%s1342 + $0xf0] sm:$0xff]
        %v1560 = vld [vmem:[%s1342 + $0xf8] sm:$0xff]
        %v1561 = vld [vmem:[%s1342 + $0x100] sm:$0xff]
        %v1562 = vld [vmem:[%s1342 + $0x108] sm:$0xff]
        %v1563 = vld [vmem:[%s1342 + $0x110] sm:$0xff]
        %v1564 = vld [vmem:[%s1342 + $0x118] sm:$0xff]
        %v1565 = vld [vmem:[%s1342 + $0x120] sm:$0xff]
        %v1566 = vld [vmem:[%s1342 + $0x128] sm:$0xff]
        %v1567 = vld [vmem:[%s1342 + $0x130] sm:$0xff]
        %v1568 = vld [vmem:[%s1342 + $0x138] sm:$0xff]
        %v1569 = vld [vmem:[%s1342 + $0x140] sm:$0xff]
        %v1570 = vld [vmem:[%s1342 + $0x148] sm:$0xff]
        %v1571 = vld [vmem:[%s1342 + $0x150] sm:$0xff]
        %v1572 = vld [vmem:[%s1342 + $0x158] sm:$0xff]
        %v1573 = vld [vmem:[%s1342 + $0x160] sm:$0xff]
        %v1574 = vld [vmem:[%s1342 + $0x168] sm:$0xff]
        %v1575 = vld [vmem:[%s1342 + $0x170] sm:$0xff]
        %v1576 = vld [vmem:[%s1342 + $0x178] sm:$0xff]
        %v1577 = vld [vmem:[%s1342 + $0x180] sm:$0xff]
        %v1578 = vld [vmem:[%s1342 + $0x188] sm:$0xff]
        %v1579 = vld [vmem:[%s1342 + $0x190] sm:$0xff]
        %v1580 = vld [vmem:[%s1342 + $0x198] sm:$0xff]
        %v1581 = vld [vmem:[%s1342 + $0x1a0] sm:$0xff]
        %v1582 = vld [vmem:[%s1342 + $0x1a8] sm:$0xff]
        %v1583 = vld [vmem:[%s1342 + $0x1b0] sm:$0xff]
        %v1584 = vld [vmem:[%s1342 + $0x1b8] sm:$0xff]
        %v1585 = vld [vmem:[%s1342 + $0x1c0] sm:$0xff]
        %v1586 = vld [vmem:[%s1342 + $0x1c8] sm:$0xff]
        %v1587 = vld [vmem:[%s1342 + $0x1d0] sm:$0xff]
        %v1588 = vld [vmem:[%s1342 + $0x1d8] sm:$0xff]
        %v1589 = vld [vmem:[%s1342 + $0x1e0] sm:$0xff]
        %v1590 = vld [vmem:[%s1342 + $0x1e8] sm:$0xff]
        %v1591 = vld [vmem:[%s1342 + $0x1f0] sm:$0xff]
        %v1592 = vld [vmem:[%s1342 + $0x1f8] sm:$0xff]
        %1593 = vmatprep.subr.mxu0 %v1530
        %1594 = vmatpush1.msra.mxu0 %v1529
        %1595 = vmatprep.subr.mxu0 %v1532
        %1596 = vmatpush1.msra.mxu0 %v1531
        %1597 = vmatprep.subr.mxu0 %v1534
        %1598 = vmatpush1.msra.mxu0 %v1533
        %1599 = vmatprep.subr.mxu0 %v1536
        %1600 = vmatpush1.msra.mxu0 %v1535
        %1601 = vmatprep.subr.mxu0 %v1538
        %1602 = vmatpush1.msra.mxu0 %v1537
        %1603 = vmatprep.subr.mxu0 %v1540
        %1604 = vmatpush1.msra.mxu0 %v1539
        %1605 = vmatprep.subr.mxu0 %v1542
        %1606 = vmatpush1.msra.mxu0 %v1541
        %1607 = vmatprep.subr.mxu0 %v1544
        %1608 = vmatpush1.msra.mxu0 %v1543
        %1609 = vmatprep.subr.mxu0 %v1546
        %1610 = vmatpush1.msra.mxu0 %v1545
        %1611 = vmatprep.subr.mxu0 %v1548
        %1612 = vmatpush1.msra.mxu0 %v1547
        %1613 = vmatprep.subr.mxu0 %v1550
        %1614 = vmatpush1.msra.mxu0 %v1549
        %1615 = vmatprep.subr.mxu0 %v1552
        %1616 = vmatpush1.msra.mxu0 %v1551
        %1617 = vmatprep.subr.mxu0 %v1554
        %1618 = vmatpush1.msra.mxu0 %v1553
        %1619 = vmatprep.subr.mxu0 %v1556
        %1620 = vmatpush1.msra.mxu0 %v1555
        %1621 = vmatprep.subr.mxu0 %v1558
        %1622 = vmatpush1.msra.mxu0 %v1557
        %1623 = vmatprep.subr.mxu0 %v1560
        %1624 = vmatpush1.msra.mxu0 %v1559
        %1625 = vmatprep.subr.mxu0 %v1562
        %1626 = vmatpush1.msra.mxu0 %v1561
        %1627 = vmatprep.subr.mxu0 %v1564
        %1628 = vmatpush1.msra.mxu0 %v1563
        %1629 = vmatprep.subr.mxu0 %v1566
        %1630 = vmatpush1.msra.mxu0 %v1565
        %1631 = vmatprep.subr.mxu0 %v1568
        %1632 = vmatpush1.msra.mxu0 %v1567
        %1633 = vmatprep.subr.mxu0 %v1570
        %1634 = vmatpush1.msra.mxu0 %v1569
        %1635 = vmatprep.subr.mxu0 %v1572
        %1636 = vmatpush1.msra.mxu0 %v1571
        %1637 = vmatprep.subr.mxu0 %v1574
        %1638 = vmatpush1.msra.mxu0 %v1573
        %1639 = vmatprep.subr.mxu0 %v1576
        %1640 = vmatpush1.msra.mxu0 %v1575
        %1641 = vmatprep.subr.mxu0 %v1578
        %1642 = vmatpush1.msra.mxu0 %v1577
        %1643 = vmatprep.subr.mxu0 %v1580
        %1644 = vmatpush1.msra.mxu0 %v1579
        %1645 = vmatprep.subr.mxu0 %v1582
        %1646 = vmatpush1.msra.mxu0 %v1581
        %1647 = vmatprep.subr.mxu0 %v1584
        %1648 = vmatpush1.msra.mxu0 %v1583
        %1649 = vmatprep.subr.mxu0 %v1586
        %1650 = vmatpush1.msra.mxu0 %v1585
        %1651 = vmatprep.subr.mxu0 %v1588
        %1652 = vmatpush1.msra.mxu0 %v1587
        %1653 = vmatprep.subr.mxu0 %v1590
        %1654 = vmatpush1.msra.mxu0 %v1589
        %1655 = vmatprep.subr.mxu0 %v1592
        %1656 = vmatpush1.msra.mxu0 %v1591
        %1657 = vmatprep.mubr.f32.mxu0 %v1526
        %1658 = vmatmul.mubr.f32.gmra.mrb[0].mxu0 %v1525
        %v1659 = vpop.f32.mrb[0].mxu0
        %v1660 = vadd.f32 0.0, %v1659
        %v1661 = vpop.f32.mrb[0].mxu0
        %v1662 = vadd.f32 0.0, %v1661
        %1663 = vmatprep.mubr.f32.mxu0 %v1528
        %1664 = vmatmul.mubr.f32.gmra.mrb[0].mxu0 %v1527
        %v1665 = vpop.f32.mrb[0].mxu0
        %v1666 = vadd.f32 0.0, %v1665
        %v1667 = vpop.f32.mrb[0].mxu0
        %v1668 = vadd.f32 0.0, %v1667
        %1669 = vdwg.mxu0
        %vm1670 = vcmp.ge.f32.partialorder %v1660, 0.0
        %vm1671 = vcmp.ge.f32.partialorder %v1662, 0.0
        %vm1672 = vcmp.ge.f32.partialorder %v1666, 0.0
        %vm1673 = vcmp.ge.f32.partialorder %v1668, 0.0
        %v1674 = vmul.f32 %v1660, 0.01
        %v1675 = vmul.f32 %v1662, 0.01
        %v1676 = vmul.f32 %v1666, 0.01
        %v1677 = vmul.f32 %v1668, 0.01
        %v1678 = vsel %vm1670, %v1660, %v1674
        %v1679 = vsel %vm1671, %v1662, %v1675
        %v1680 = vsel %vm1672, %v1666, %v1676
        %v1681 = vsel %vm1673, %v1668, %v1677
        %1682 = vmatprep.subr.mxu0 %v1679
        %1683 = vmatpush1.xpose.msra.mxu0 %v1678
        %1684 = vmatprep.subr.mxu0 %v1681
        %1685 = vmatpush1.xpose.msra.mxu0 %v1680
        %1686 = vmatprep.subr.mxu0 0.0
        %1687 = vmatpush1.xpose.msra.mxu0 0.0
        %1688 = vmatprep.subr.mxu0 0.0
        %1689 = vmatpush1.xpose.msra.mxu0 0.0
        %1690 = vmatprep.subr.mxu0 0.0
        %1691 = vmatpush1.xpose.msra.mxu0 0.0
        %1692 = vmatprep.subr.mxu0 0.0
        %1693 = vmatpush1.xpose.msra.mxu0 0.0
        %1694 = vmatprep.subr.mxu0 0.0
        %1695 = vmatpush1.xpose.msra.mxu0 0.0
        %1696 = vmatprep.subr.mxu0 0.0
        %1697 = vmatpush1.xpose.msra.mxu0 0.0
        %1698 = vmatprep.subr.mxu0 0.0
        %1699 = vmatpush1.xpose.msra.mxu0 0.0
        %1700 = vmatprep.subr.mxu0 0.0
        %1701 = vmatpush1.xpose.msra.mxu0 0.0
        %1702 = vmatprep.subr.mxu0 0.0
        %1703 = vmatpush1.xpose.msra.mxu0 0.0
        %1704 = vmatprep.subr.mxu0 0.0
        %1705 = vmatpush1.xpose.msra.mxu0 0.0
        %1706 = vmatprep.subr.mxu0 0.0
        %1707 = vmatpush1.xpose.msra.mxu0 0.0
        %1708 = vmatprep.subr.mxu0 0.0
        %1709 = vmatpush1.xpose.msra.mxu0 0.0
        %1710 = vmatprep.subr.mxu0 0.0
        %1711 = vmatpush1.xpose.msra.mxu0 0.0
        %1712 = vmatprep.subr.mxu0 0.0
        %1713 = vmatpush1.xpose.msra.mxu0 0.0
        %1714 = vmatprep.subr.mxu0 0.0
        %1715 = vmatpush1.xpose.msra.mxu0 0.0
        %1716 = vmatprep.subr.mxu0 0.0
        %1717 = vmatpush1.xpose.msra.mxu0 0.0
        %1718 = vmatprep.subr.mxu0 0.0
        %1719 = vmatpush1.xpose.msra.mxu0 0.0
        %1720 = vmatprep.subr.mxu0 0.0
        %1721 = vmatpush1.xpose.msra.mxu0 0.0
        %1722 = vmatprep.subr.mxu0 0.0
        %1723 = vmatpush1.xpose.msra.mxu0 0.0
        %1724 = vmatprep.subr.mxu0 0.0
        %1725 = vmatpush1.xpose.msra.mxu0 0.0
        %1726 = vmatprep.subr.mxu0 0.0
        %1727 = vmatpush1.xpose.msra.mxu0 0.0
        %1728 = vmatprep.subr.mxu0 0.0
        %1729 = vmatpush1.xpose.msra.mxu0 0.0
        %1730 = vmatprep.subr.mxu0 0.0
        %1731 = vmatpush1.xpose.msra.mxu0 0.0
        %1732 = vmatprep.subr.mxu0 0.0
        %1733 = vmatpush1.xpose.msra.mxu0 0.0
        %1734 = vmatprep.subr.mxu0 0.0
        %1735 = vmatpush1.xpose.msra.mxu0 0.0
        %1736 = vmatprep.subr.mxu0 0.0
        %1737 = vmatpush1.xpose.msra.mxu0 0.0
        %1738 = vmatprep.subr.mxu0 0.0
        %1739 = vmatpush1.xpose.msra.mxu0 0.0
        %1740 = vmatprep.subr.mxu0 0.0
        %1741 = vmatpush1.xpose.msra.mxu0 0.0
        %1742 = vmatprep.subr.mxu0 0.0
        %1743 = vmatpush1.xpose.msra.mxu0 0.0
        %1744 = vmatprep.subr.mxu0 0.0
        %1745 = vmatpush1.xpose.msra.mxu0 0.0
        %1746 = vmatprep.mubr.f32.mxu0 %v1662
        %1747 = vmatmul.mubr.f32.gmra.mrb[0].mxu0 %v1660
        %v1748 = vpop.f32.mrb[0].mxu0
        %v1749 = vadd.f32 0.0, %v1748
        %v1750 = vpop.f32.mrb[0].mxu0
        %1751 = vmatprep.mubr.f32.mxu0 %v1668
        %1752 = vmatmul.mubr.f32.gmra.mrb[0].mxu0 %v1666
        %v1753 = vpop.f32.mrb[0].mxu0
        %v1754 = vadd.f32 0.0, %v1753
        %v1755 = vpop.f32.mrb[0].mxu0
        %1756 = vdwg.mxu0
        %v1757 = vmul.f32 %v1749, %v1380
        %v1758 = vmul.f32 %v1754, %v1380
        %v1759 = vxor.u32 %v1757, 2147483648
        %v1760 = vxor.u32 %v1758, 2147483648
        %v1761 = vmul.f32 %v1759, 1.442695
        %v1762 = vpow.pop %v1761
        %v1763 = vmul.f32 %v1760, 1.442695
        %v1764 = vpow.pop %v1763
        %v1765 = vadd.f32 %v1762, 1.0
        %v1766 = vadd.f32 %v1764, 1.0
        %v1767 = vrcp.pop %v1765
        %v1768 = vmul.f32 1.0, %v1767
        %v1769 = vrcp.pop %v1766
        %v1770 = vmul.f32 1.0, %v1769
        %v1771 = vmul.f32 %v1749, %v1768
        %v1772 = vmul.f32 %v1754, %v1770
        %v1773 = vsel %vm1366, %v1771, -1e+30
        %v1774 = vsel %vm1367, %v1772, -1e+30
        %v1775 = vsel %vm1368, %v1773, -inf
        %1776 = vmax.xlane.f32.xlu0 %v1775
        %v1777 = vpop.xlane.xlu0 %1776
        %v1778 = vsel %vm1368, %v1774, -inf
        %1779 = vmax.xlane.f32.xlu0 %v1778
        %v1780 = vpop.xlane.xlu0 %1779
        %v1781 = vsub.f32 %v1773, %v1777
        %v1782 = vsub.f32 %v1774, %v1780
        %v1783 = vmul.f32 %v1781, 1.442695
        %v1784 = vpow.pop %v1783
        %v1785 = vmul.f32 %v1782, 1.442695
        %v1786 = vpow.pop %v1785
        %v1787 = vsel %vm1366, %v1784, 0.0
        %v1788 = vsel %vm1367, %v1786, 0.0
        %v1789 = vsel %vm1368, %v1787, 0.0
        %1790 = vadd.xlane.f32.xlu0 %v1789
        %v1791 = vpop.xlane.xlu0 %1790
        %v1792 = vsel %vm1368, %v1788, 0.0
        %1793 = vadd.xlane.f32.xlu0 %v1792
        %v1794 = vpop.xlane.xlu0 %1793
        %v1795 = vadd.f32 %v1791, 1e-16
        %v1796 = vadd.f32 %v1794, 1e-16
        %v1797 = vrcp.pop %v1795
        %v1798 = vrcp.pop %v1796
        %v1799 = vmul.f32 %v1787, %v1797
        %v1800 = vmul.f32 %v1788, %v1798
        %v1801 = vld [vmem:[%s1063] sm:$0x3]
        %v1803 = vlaneseq
        %v1804 = vshrl.u32 %v1803, 7
        %v1805 = vsub.s32 0, %v1804
        %v1806 = vrot.slane %v1801, %v1805
        %v1807 = vlaneseq
        %v1808 = vshrl.u32 %v1807, 7
        %v1809 = vsub.s32 1, %v1808
        %v1810 = vrot.slane %v1801, %v1809
        %v1814 = vsel %vm1368, %v1799, 0
        %v1817 = vsel %vm1368, %v1800, 0
        %1819 = vmatprep.subr.mxu0 %v1662
        %1820 = vmatpush1.msra.mxu0 %v1660
        %1821 = vmatprep.subr.mxu0 %v1668
        %1822 = vmatpush1.msra.mxu0 %v1666
        %1823 = vmatprep.subr.mxu0 0.0
        %1824 = vmatpush1.msra.mxu0 0.0
        %1825 = vmatprep.subr.mxu0 0.0
        %1826 = vmatpush1.msra.mxu0 0.0
        %1827 = vmatprep.subr.mxu0 0.0
        %1828 = vmatpush1.msra.mxu0 0.0
        %1829 = vmatprep.subr.mxu0 0.0
        %1830 = vmatpush1.msra.mxu0 0.0
        %1831 = vmatprep.subr.mxu0 0.0
        %1832 = vmatpush1.msra.mxu0 0.0
        %1833 = vmatprep.subr.mxu0 0.0
        %1834 = vmatpush1.msra.mxu0 0.0
        %1835 = vmatprep.subr.mxu0 0.0
        %1836 = vmatpush1.msra.mxu0 0.0
        %1837 = vmatprep.subr.mxu0 0.0
        %1838 = vmatpush1.msra.mxu0 0.0
        %1839 = vmatprep.subr.mxu0 0.0
        %1840 = vmatpush1.msra.mxu0 0.0
        %1841 = vmatprep.subr.mxu0 0.0
        %1842 = vmatpush1.msra.mxu0 0.0
        %1843 = vmatprep.subr.mxu0 0.0
        %1844 = vmatpush1.msra.mxu0 0.0
        %1845 = vmatprep.subr.mxu0 0.0
        %1846 = vmatpush1.msra.mxu0 0.0
        %1847 = vmatprep.subr.mxu0 0.0
        %1848 = vmatpush1.msra.mxu0 0.0
        %1849 = vmatprep.subr.mxu0 0.0
        %1850 = vmatpush1.msra.mxu0 0.0
        %1851 = vmatprep.subr.mxu0 0.0
        %1852 = vmatpush1.msra.mxu0 0.0
        %1853 = vmatprep.subr.mxu0 0.0
        %1854 = vmatpush1.msra.mxu0 0.0
        %1855 = vmatprep.subr.mxu0 0.0
        %1856 = vmatpush1.msra.mxu0 0.0
        %1857 = vmatprep.subr.mxu0 0.0
        %1858 = vmatpush1.msra.mxu0 0.0
        %1859 = vmatprep.subr.mxu0 0.0
        %1860 = vmatpush1.msra.mxu0 0.0
        %1861 = vmatprep.subr.mxu0 0.0
        %1862 = vmatpush1.msra.mxu0 0.0
        %1863 = vmatprep.subr.mxu0 0.0
        %1864 = vmatpush1.msra.mxu0 0.0
        %1865 = vmatprep.subr.mxu0 0.0
        %1866 = vmatpush1.msra.mxu0 0.0
        %1867 = vmatprep.subr.mxu0 0.0
        %1868 = vmatpush1.msra.mxu0 0.0
        %1869 = vmatprep.subr.mxu0 0.0
        %1870 = vmatpush1.msra.mxu0 0.0
        %1871 = vmatprep.subr.mxu0 0.0
        %1872 = vmatpush1.msra.mxu0 0.0
        %1873 = vmatprep.subr.mxu0 0.0
        %1874 = vmatpush1.msra.mxu0 0.0
        %1875 = vmatprep.subr.mxu0 0.0
        %1876 = vmatpush1.msra.mxu0 0.0
        %1877 = vmatprep.subr.mxu0 0.0
        %1878 = vmatpush1.msra.mxu0 0.0
        %1879 = vmatprep.subr.mxu0 0.0
        %1880 = vmatpush1.msra.mxu0 0.0
        %1881 = vmatprep.subr.mxu0 0.0
        %1882 = vmatpush1.msra.mxu0 0.0
        %1883 = vmatprep.mubr.f32.mxu0 0.0
        %1884 = vmatmul.mubr.f32.gmra.mrb[0].mxu0 %v1814
        %v1885 = vpop.f32.mrb[0].mxu0
        %v1886 = vadd.f32 %v1806, %v1885
        %v1887 = vpop.f32.mrb[0].mxu0
        %v1888 = vadd.f32 %v1810, %v1887
        %1889 = vmatprep.mubr.f32.mxu0 0.0
        %1890 = vmatmul.mubr.f32.gmra.mrb[0].mxu0 %v1817
        %v1891 = vpop.f32.mrb[0].mxu0
        %v1892 = vadd.f32 %v1806, %v1891
        %v1893 = vpop.f32.mrb[0].mxu0
        %v1894 = vadd.f32 %v1810, %v1893
        %1895 = vdwg.mxu0
        %v1896 = vmul.f32 %v1886, %v1886
        %v1897 = vmul.f32 %v1888, %v1888
        %v1898 = vmul.f32 %v1892, %v1892
        %v1899 = vmul.f32 %v1894, %v1894
        %v1900 = vadd.f32 %v1896, %v1897
        %1901 = vadd.xlane.f32.xlu0 %v1900
        %v1902 = vpop.xlane.xlu0 %1901
        %v1903 = vadd.f32 %v1898, %v1899
        %1904 = vadd.xlane.f32.xlu0 %v1903
        %v1905 = vpop.xlane.xlu0 %1904
        %v1906 = vmax.f32 %v1902, 1e-24
        %v1907 = vmax.f32 %v1905, 1e-24
        %v1908 = vrsqrt.pop %v1906
        %v1909 = vrsqrt.pop %v1907
        %v1910 = vmul.f32 %v1886, %v1908
        %v1911 = vmul.f32 %v1888, %v1908
        %v1912 = vmul.f32 %v1892, %v1909
        %v1913 = vmul.f32 %v1894, %v1909
        %vm1914 = vcmp.ge.f32.partialorder %v1910, 0.0
        %vm1915 = vcmp.ge.f32.partialorder %v1911, 0.0
        %vm1916 = vcmp.ge.f32.partialorder %v1912, 0.0
        %vm1917 = vcmp.ge.f32.partialorder %v1913, 0.0
        %v1918 = vmul.f32 %v1910, 0.01
        %v1919 = vmul.f32 %v1911, 0.01
        %v1920 = vmul.f32 %v1912, 0.01
        %v1921 = vmul.f32 %v1913, 0.01
        %v1922 = vsel %vm1914, %v1910, %v1918
        %v1923 = vsel %vm1915, %v1911, %v1919
        %v1924 = vsel %vm1916, %v1912, %v1920
        %v1925 = vsel %vm1917, %v1913, %v1921
        %v1926 = vld [vmem:[%s1347] sm:$0xff]
        %v1927 = vld [vmem:[%s1347 + $0x8] sm:$0xff]
        %v1928 = vld [vmem:[%s1347 + $0x10] sm:$0xff]
        %v1929 = vld [vmem:[%s1347 + $0x18] sm:$0xff]
        %v1930 = vld [vmem:[%s1347 + $0x20] sm:$0xff]
        %v1931 = vld [vmem:[%s1347 + $0x28] sm:$0xff]
        %v1932 = vld [vmem:[%s1347 + $0x30] sm:$0xff]
        %v1933 = vld [vmem:[%s1347 + $0x38] sm:$0xff]
        %v1934 = vld [vmem:[%s1347 + $0x40] sm:$0xff]
        %v1935 = vld [vmem:[%s1347 + $0x48] sm:$0xff]
        %v1936 = vld [vmem:[%s1347 + $0x50] sm:$0xff]
        %v1937 = vld [vmem:[%s1347 + $0x58] sm:$0xff]
        %v1938 = vld [vmem:[%s1347 + $0x60] sm:$0xff]
        %v1939 = vld [vmem:[%s1347 + $0x68] sm:$0xff]
        %v1940 = vld [vmem:[%s1347 + $0x70] sm:$0xff]
        %v1941 = vld [vmem:[%s1347 + $0x78] sm:$0xff]
        %v1942 = vld [vmem:[%s1347 + $0x80] sm:$0xff]
        %v1943 = vld [vmem:[%s1347 + $0x88] sm:$0xff]
        %v1944 = vld [vmem:[%s1347 + $0x90] sm:$0xff]
        %v1945 = vld [vmem:[%s1347 + $0x98] sm:$0xff]
        %v1946 = vld [vmem:[%s1347 + $0xa0] sm:$0xff]
        %v1947 = vld [vmem:[%s1347 + $0xa8] sm:$0xff]
        %v1948 = vld [vmem:[%s1347 + $0xb0] sm:$0xff]
        %v1949 = vld [vmem:[%s1347 + $0xb8] sm:$0xff]
        %v1950 = vld [vmem:[%s1347 + $0xc0] sm:$0xff]
        %v1951 = vld [vmem:[%s1347 + $0xc8] sm:$0xff]
        %v1952 = vld [vmem:[%s1347 + $0xd0] sm:$0xff]
        %v1953 = vld [vmem:[%s1347 + $0xd8] sm:$0xff]
        %v1954 = vld [vmem:[%s1347 + $0xe0] sm:$0xff]
        %v1955 = vld [vmem:[%s1347 + $0xe8] sm:$0xff]
        %v1956 = vld [vmem:[%s1347 + $0xf0] sm:$0xff]
        %v1957 = vld [vmem:[%s1347 + $0xf8] sm:$0xff]
        %v1958 = vld [vmem:[%s1071] sm:$0x1]
        %v1960 = vlaneseq
        %v1961 = vshrl.u32 %v1960, 7
        %v1962 = vsub.s32 0, %v1961
        %v1963 = vrot.slane %v1958, %v1962
        %1965 = vmatprep.subr.mxu0 0.0
        %1966 = vmatpush1.msra.mxu0 %v1926
        %1967 = vmatprep.subr.mxu0 0.0
        %1968 = vmatpush1.msra.mxu0 %v1927
        %1969 = vmatprep.subr.mxu0 0.0
        %1970 = vmatpush1.msra.mxu0 %v1928
        %1971 = vmatprep.subr.mxu0 0.0
        %1972 = vmatpush1.msra.mxu0 %v1929
        %1973 = vmatprep.subr.mxu0 0.0
        %1974 = vmatpush1.msra.mxu0 %v1930
        %1975 = vmatprep.subr.mxu0 0.0
        %1976 = vmatpush1.msra.mxu0 %v1931
        %1977 = vmatprep.subr.mxu0 0.0
        %1978 = vmatpush1.msra.mxu0 %v1932
        %1979 = vmatprep.subr.mxu0 0.0
        %1980 = vmatpush1.msra.mxu0 %v1933
        %1981 = vmatprep.subr.mxu0 0.0
        %1982 = vmatpush1.msra.mxu0 %v1934
        %1983 = vmatprep.subr.mxu0 0.0
        %1984 = vmatpush1.msra.mxu0 %v1935
        %1985 = vmatprep.subr.mxu0 0.0
        %1986 = vmatpush1.msra.mxu0 %v1936
        %1987 = vmatprep.subr.mxu0 0.0
        %1988 = vmatpush1.msra.mxu0 %v1937
        %1989 = vmatprep.subr.mxu0 0.0
        %1990 = vmatpush1.msra.mxu0 %v1938
        %1991 = vmatprep.subr.mxu0 0.0
        %1992 = vmatpush1.msra.mxu0 %v1939
        %1993 = vmatprep.subr.mxu0 0.0
        %1994 = vmatpush1.msra.mxu0 %v1940
        %1995 = vmatprep.subr.mxu0 0.0
        %1996 = vmatpush1.msra.mxu0 %v1941
        %1997 = vmatprep.subr.mxu0 0.0
        %1998 = vmatpush1.msra.mxu0 %v1942
        %1999 = vmatprep.subr.mxu0 0.0
        %2000 = vmatpush1.msra.mxu0 %v1943
        %2001 = vmatprep.subr.mxu0 0.0
        %2002 = vmatpush1.msra.mxu0 %v1944
        %2003 = vmatprep.subr.mxu0 0.0
        %2004 = vmatpush1.msra.mxu0 %v1945
        %2005 = vmatprep.subr.mxu0 0.0
        %2006 = vmatpush1.msra.mxu0 %v1946
        %2007 = vmatprep.subr.mxu0 0.0
        %2008 = vmatpush1.msra.mxu0 %v1947
        %2009 = vmatprep.subr.mxu0 0.0
        %2010 = vmatpush1.msra.mxu0 %v1948
        %2011 = vmatprep.subr.mxu0 0.0
        %2012 = vmatpush1.msra.mxu0 %v1949
        %2013 = vmatprep.subr.mxu0 0.0
        %2014 = vmatpush1.msra.mxu0 %v1950
        %2015 = vmatprep.subr.mxu0 0.0
        %2016 = vmatpush1.msra.mxu0 %v1951
        %2017 = vmatprep.subr.mxu0 0.0
        %2018 = vmatpush1.msra.mxu0 %v1952
        %2019 = vmatprep.subr.mxu0 0.0
        %2020 = vmatpush1.msra.mxu0 %v1953
        %2021 = vmatprep.subr.mxu0 0.0
        %2022 = vmatpush1.msra.mxu0 %v1954
        %2023 = vmatprep.subr.mxu0 0.0
        %2024 = vmatpush1.msra.mxu0 %v1955
        %2025 = vmatprep.subr.mxu0 0.0
        %2026 = vmatpush1.msra.mxu0 %v1956
        %2027 = vmatprep.subr.mxu0 0.0
        %2028 = vmatpush1.msra.mxu0 %v1957
        %2029 = vmatprep.mubr.f32.mxu0 %v1526
        %2030 = vmatmul.mubr.f32.gmra.mrb[0].mxu0 %v1525
        %v2031 = vpop.f32.mrb[0].mxu0
        %v2032 = vadd.f32 %v1963, %v2031
        %v2033 = vpop.f32.mrb[0].mxu0
        %2034 = vmatprep.mubr.f32.mxu0 %v1528
        %2035 = vmatmul.mubr.f32.gmra.mrb[0].mxu0 %v1527
        %v2036 = vpop.f32.mrb[0].mxu0
        %v2037 = vadd.f32 %v1963, %v2036
        %v2038 = vpop.f32.mrb[0].mxu0
        %2039 = vdwg.mxu0
        %vm2040 = vcmp.ge.f32.partialorder %v2032, 0.0
        %vm2041 = vcmp.ge.f32.partialorder %v2037, 0.0
        %v2042 = vmul.f32 %v2032, 0.01
        %v2043 = vmul.f32 %v2037, 0.01
        %v2044 = vsel %vm2040, %v2032, %v2042
        %v2045 = vsel %vm2041, %v2037, %v2043
        %v2046 = vadd.f32 %v2044, %v1381
        %v2047 = vadd.f32 %v2045, %v1382
        %v2048 = vld [vmem:[%s1352] sm:$0xff]
        %v2049 = vld [vmem:[%s1352 + $0x8] sm:$0xff]
        %v2050 = vld [vmem:[%s1352 + $0x10] sm:$0xff]
        %v2051 = vld [vmem:[%s1352 + $0x18] sm:$0xff]
        %v2052 = vld [vmem:[%s1352 + $0x20] sm:$0xff]
        %v2053 = vld [vmem:[%s1352 + $0x28] sm:$0xff]
        %v2054 = vld [vmem:[%s1352 + $0x30] sm:$0xff]
        %v2055 = vld [vmem:[%s1352 + $0x38] sm:$0xff]
        %v2056 = vld [vmem:[%s1352 + $0x40] sm:$0xff]
        %v2057 = vld [vmem:[%s1352 + $0x48] sm:$0xff]
        %v2058 = vld [vmem:[%s1352 + $0x50] sm:$0xff]
        %v2059 = vld [vmem:[%s1352 + $0x58] sm:$0xff]
        %v2060 = vld [vmem:[%s1352 + $0x60] sm:$0xff]
        %v2061 = vld [vmem:[%s1352 + $0x68] sm:$0xff]
        %v2062 = vld [vmem:[%s1352 + $0x70] sm:$0xff]
        %v2063 = vld [vmem:[%s1352 + $0x78] sm:$0xff]
        %v2064 = vld [vmem:[%s1352 + $0x80] sm:$0xff]
        %v2065 = vld [vmem:[%s1352 + $0x88] sm:$0xff]
        %v2066 = vld [vmem:[%s1352 + $0x90] sm:$0xff]
        %v2067 = vld [vmem:[%s1352 + $0x98] sm:$0xff]
        %v2068 = vld [vmem:[%s1352 + $0xa0] sm:$0xff]
        %v2069 = vld [vmem:[%s1352 + $0xa8] sm:$0xff]
        %v2070 = vld [vmem:[%s1352 + $0xb0] sm:$0xff]
        %v2071 = vld [vmem:[%s1352 + $0xb8] sm:$0xff]
        %v2072 = vld [vmem:[%s1352 + $0xc0] sm:$0xff]
        %v2073 = vld [vmem:[%s1352 + $0xc8] sm:$0xff]
        %v2074 = vld [vmem:[%s1352 + $0xd0] sm:$0xff]
        %v2075 = vld [vmem:[%s1352 + $0xd8] sm:$0xff]
        %v2076 = vld [vmem:[%s1352 + $0xe0] sm:$0xff]
        %v2077 = vld [vmem:[%s1352 + $0xe8] sm:$0xff]
        %v2078 = vld [vmem:[%s1352 + $0xf0] sm:$0xff]
        %v2079 = vld [vmem:[%s1352 + $0xf8] sm:$0xff]
        %v2080 = vld [vmem:[%s1079] sm:$0x1]
        %v2082 = vlaneseq
        %v2083 = vshrl.u32 %v2082, 7
        %v2084 = vsub.s32 0, %v2083
        %v2085 = vrot.slane %v2080, %v2084
        %2087 = vmatprep.subr.mxu0 0.0
        %2088 = vmatpush1.msra.mxu0 %v2048
        %2089 = vmatprep.subr.mxu0 0.0
        %2090 = vmatpush1.msra.mxu0 %v2049
        %2091 = vmatprep.subr.mxu0 0.0
        %2092 = vmatpush1.msra.mxu0 %v2050
        %2093 = vmatprep.subr.mxu0 0.0
        %2094 = vmatpush1.msra.mxu0 %v2051
        %2095 = vmatprep.subr.mxu0 0.0
        %2096 = vmatpush1.msra.mxu0 %v2052
        %2097 = vmatprep.subr.mxu0 0.0
        %2098 = vmatpush1.msra.mxu0 %v2053
        %2099 = vmatprep.subr.mxu0 0.0
        %2100 = vmatpush1.msra.mxu0 %v2054
        %2101 = vmatprep.subr.mxu0 0.0
        %2102 = vmatpush1.msra.mxu0 %v2055
        %2103 = vmatprep.subr.mxu0 0.0
        %2104 = vmatpush1.msra.mxu0 %v2056
        %2105 = vmatprep.subr.mxu0 0.0
        %2106 = vmatpush1.msra.mxu0 %v2057
        %2107 = vmatprep.subr.mxu0 0.0
        %2108 = vmatpush1.msra.mxu0 %v2058
        %2109 = vmatprep.subr.mxu0 0.0
        %2110 = vmatpush1.msra.mxu0 %v2059
        %2111 = vmatprep.subr.mxu0 0.0
        %2112 = vmatpush1.msra.mxu0 %v2060
        %2113 = vmatprep.subr.mxu0 0.0
        %2114 = vmatpush1.msra.mxu0 %v2061
        %2115 = vmatprep.subr.mxu0 0.0
        %2116 = vmatpush1.msra.mxu0 %v2062
        %2117 = vmatprep.subr.mxu0 0.0
        %2118 = vmatpush1.msra.mxu0 %v2063
        %2119 = vmatprep.subr.mxu0 0.0
        %2120 = vmatpush1.msra.mxu0 %v2064
        %2121 = vmatprep.subr.mxu0 0.0
        %2122 = vmatpush1.msra.mxu0 %v2065
        %2123 = vmatprep.subr.mxu0 0.0
        %2124 = vmatpush1.msra.mxu0 %v2066
        %2125 = vmatprep.subr.mxu0 0.0
        %2126 = vmatpush1.msra.mxu0 %v2067
        %2127 = vmatprep.subr.mxu0 0.0
        %2128 = vmatpush1.msra.mxu0 %v2068
        %2129 = vmatprep.subr.mxu0 0.0
        %2130 = vmatpush1.msra.mxu0 %v2069
        %2131 = vmatprep.subr.mxu0 0.0
        %2132 = vmatpush1.msra.mxu0 %v2070
        %2133 = vmatprep.subr.mxu0 0.0
        %2134 = vmatpush1.msra.mxu0 %v2071
        %2135 = vmatprep.subr.mxu0 0.0
        %2136 = vmatpush1.msra.mxu0 %v2072
        %2137 = vmatprep.subr.mxu0 0.0
        %2138 = vmatpush1.msra.mxu0 %v2073
        %2139 = vmatprep.subr.mxu0 0.0
        %2140 = vmatpush1.msra.mxu0 %v2074
        %2141 = vmatprep.subr.mxu0 0.0
        %2142 = vmatpush1.msra.mxu0 %v2075
        %2143 = vmatprep.subr.mxu0 0.0
        %2144 = vmatpush1.msra.mxu0 %v2076
        %2145 = vmatprep.subr.mxu0 0.0
        %2146 = vmatpush1.msra.mxu0 %v2077
        %2147 = vmatprep.subr.mxu0 0.0
        %2148 = vmatpush1.msra.mxu0 %v2078
        %2149 = vmatprep.subr.mxu0 0.0
        %2150 = vmatpush1.msra.mxu0 %v2079
        %2151 = vmatprep.mubr.f32.mxu0 %v1923
        %2152 = vmatmul.mubr.f32.gmra.mrb[0].mxu0 %v1922
        %v2153 = vpop.f32.mrb[0].mxu0
        %v2154 = vadd.f32 %v2085, %v2153
        %v2155 = vpop.f32.mrb[0].mxu0
        %2156 = vmatprep.mubr.f32.mxu0 %v1925
        %2157 = vmatmul.mubr.f32.gmra.mrb[0].mxu0 %v1924
        %v2158 = vpop.f32.mrb[0].mxu0
        %v2159 = vadd.f32 %v2085, %v2158
        %v2160 = vpop.f32.mrb[0].mxu0
        %2161 = vdwg.mxu0
        %v2162 = vadd.f32 %v2154, %v2046
        %v2163 = vadd.f32 %v2159, %v2047
        %vm2164 = vcmp.ge.f32.partialorder %v2162, 0.0
        %vm2165 = vcmp.ge.f32.partialorder %v2163, 0.0
        %v2166 = vmul.f32 %v2162, 0.01
        %v2167 = vmul.f32 %v2163, 0.01
        %v2168 = vsel %vm2164, %v2162, %v2166
        %v2169 = vsel %vm2165, %v2163, %v2167
        %v2170 = vld [vmem:[%s1088] sm:$0xff]
        %v2171 = vld [vmem:[%s1088 + $0x8] sm:$0xff]
        %v2172 = vld [vmem:[%s1088 + $0x10] sm:$0xff]
        %v2173 = vld [vmem:[%s1088 + $0x18] sm:$0xff]
        %v2174 = vld [vmem:[%s1088 + $0x20] sm:$0xff]
        %v2175 = vld [vmem:[%s1088 + $0x28] sm:$0xff]
        %v2176 = vld [vmem:[%s1088 + $0x30] sm:$0xff]
        %v2177 = vld [vmem:[%s1088 + $0x38] sm:$0xff]
        %vm2178 = vcmask 523264
        %v2180 = vsel %vm2178, %v2168, 0
        %v2183 = vsel %vm2178, %v2169, 0
        %2185 = vmatprep.subr.mxu0 0.0
        %2186 = vmatpush1.msra.mxu0 %v2170
        %2187 = vmatprep.subr.mxu0 0.0
        %2188 = vmatpush1.msra.mxu0 %v2171
        %2189 = vmatprep.subr.mxu0 0.0
        %2190 = vmatpush1.msra.mxu0 %v2172
        %2191 = vmatprep.subr.mxu0 0.0
        %2192 = vmatpush1.msra.mxu0 %v2173
        %2193 = vmatprep.subr.mxu0 0.0
        %2194 = vmatpush1.msra.mxu0 %v2174
        %2195 = vmatprep.subr.mxu0 0.0
        %2196 = vmatpush1.msra.mxu0 %v2175
        %2197 = vmatprep.subr.mxu0 0.0
        %2198 = vmatpush1.msra.mxu0 %v2176
        %2199 = vmatprep.subr.mxu0 0.0
        %2200 = vmatpush1.msra.mxu0 %v2177
        %2201 = vmatprep.subr.mxu0 0.0
        %2202 = vmatpush1.msra.mxu0 0.0
        %2203 = vmatprep.subr.mxu0 0.0
        %2204 = vmatpush1.msra.mxu0 0.0
        %2205 = vmatprep.subr.mxu0 0.0
        %2206 = vmatpush1.msra.mxu0 0.0
        %2207 = vmatprep.subr.mxu0 0.0
        %2208 = vmatpush1.msra.mxu0 0.0
        %2209 = vmatprep.subr.mxu0 0.0
        %2210 = vmatpush1.msra.mxu0 0.0
        %2211 = vmatprep.subr.mxu0 0.0
        %2212 = vmatpush1.msra.mxu0 0.0
        %2213 = vmatprep.subr.mxu0 0.0
        %2214 = vmatpush1.msra.mxu0 0.0
        %2215 = vmatprep.subr.mxu0 0.0
        %2216 = vmatpush1.msra.mxu0 0.0
        %2217 = vmatprep.subr.mxu0 0.0
        %2218 = vmatpush1.msra.mxu0 0.0
        %2219 = vmatprep.subr.mxu0 0.0
        %2220 = vmatpush1.msra.mxu0 0.0
        %2221 = vmatprep.subr.mxu0 0.0
        %2222 = vmatpush1.msra.mxu0 0.0
        %2223 = vmatprep.subr.mxu0 0.0
        %2224 = vmatpush1.msra.mxu0 0.0
        %2225 = vmatprep.subr.mxu0 0.0
        %2226 = vmatpush1.msra.mxu0 0.0
        %2227 = vmatprep.subr.mxu0 0.0
        %2228 = vmatpush1.msra.mxu0 0.0
        %2229 = vmatprep.subr.mxu0 0.0
        %2230 = vmatpush1.msra.mxu0 0.0
        %2231 = vmatprep.subr.mxu0 0.0
        %2232 = vmatpush1.msra.mxu0 0.0
        %2233 = vmatprep.subr.mxu0 0.0
        %2234 = vmatpush1.msra.mxu0 0.0
        %2235 = vmatprep.subr.mxu0 0.0
        %2236 = vmatpush1.msra.mxu0 0.0
        %2237 = vmatprep.subr.mxu0 0.0
        %2238 = vmatpush1.msra.mxu0 0.0
        %2239 = vmatprep.subr.mxu0 0.0
        %2240 = vmatpush1.msra.mxu0 0.0
        %2241 = vmatprep.subr.mxu0 0.0
        %2242 = vmatpush1.msra.mxu0 0.0
        %2243 = vmatprep.subr.mxu0 0.0
        %2244 = vmatpush1.msra.mxu0 0.0
        %2245 = vmatprep.subr.mxu0 0.0
        %2246 = vmatpush1.msra.mxu0 0.0
        %2247 = vmatprep.subr.mxu0 0.0
        %2248 = vmatpush1.msra.mxu0 0.0
        %2249 = vmatprep.mubr.f32.mxu0 0.0
        %2250 = vmatmul.mubr.f32.gmra.mrb[0].mxu0 %v2180
        %v2251 = vpop.f32.mrb[0].mxu0
        %v2252 = vadd.f32 0.0, %v2251
        %v2253 = vpop.f32.mrb[0].mxu0
        %2254 = vmatprep.mubr.f32.mxu0 0.0
        %2255 = vmatmul.mubr.f32.gmra.mrb[0].mxu0 %v2183
        %v2256 = vpop.f32.mrb[0].mxu0
        %v2257 = vadd.f32 0.0, %v2256
        %v2258 = vpop.f32.mrb[0].mxu0
        %2259 = vdwg.mxu0
        %vm2260 = vcmp.ge.f32.partialorder %v2252, 0.0
        %vm2261 = vcmp.ge.f32.partialorder %v2257, 0.0
        %v2262 = vmul.f32 %v2252, 0.01
        %v2263 = vmul.f32 %v2257, 0.01
        %v2264 = vsel %vm2260, %v2252, %v2262
        %v2265 = vsel %vm2261, %v2257, %v2263
        %v2267 = vsel %vm2178, %v2252, 0
        %v2270 = vsel %vm2178, %v2257, 0
        %v2273 = vsel %vm2178, %v2264, 0
        %v2276 = vsel %vm2178, %v2265, 0
        %2278 = vmatprep.subr.mxu0 0.0
        %2279 = vmatpush1.xpose.msra.mxu0 %v2273
        %2280 = vmatprep.subr.mxu0 0.0
        %2281 = vmatpush1.xpose.msra.mxu0 %v2276
        %2282 = vmatprep.subr.mxu0 0.0
        %2283 = vmatpush1.xpose.msra.mxu0 0.0
        %2284 = vmatprep.subr.mxu0 0.0
        %2285 = vmatpush1.xpose.msra.mxu0 0.0
        %2286 = vmatprep.subr.mxu0 0.0
        %2287 = vmatpush1.xpose.msra.mxu0 0.0
        %2288 = vmatprep.subr.mxu0 0.0
        %2289 = vmatpush1.xpose.msra.mxu0 0.0
        %2290 = vmatprep.subr.mxu0 0.0
        %2291 = vmatpush1.xpose.msra.mxu0 0.0
        %2292 = vmatprep.subr.mxu0 0.0
        %2293 = vmatpush1.xpose.msra.mxu0 0.0
        %2294 = vmatprep.subr.mxu0 0.0
        %2295 = vmatpush1.xpose.msra.mxu0 0.0
        %2296 = vmatprep.subr.mxu0 0.0
        %2297 = vmatpush1.xpose.msra.mxu0 0.0
        %2298 = vmatprep.subr.mxu0 0.0
        %2299 = vmatpush1.xpose.msra.mxu0 0.0
        %2300 = vmatprep.subr.mxu0 0.0
        %2301 = vmatpush1.xpose.msra.mxu0 0.0
        %2302 = vmatprep.subr.mxu0 0.0
        %2303 = vmatpush1.xpose.msra.mxu0 0.0
        %2304 = vmatprep.subr.mxu0 0.0
        %2305 = vmatpush1.xpose.msra.mxu0 0.0
        %2306 = vmatprep.subr.mxu0 0.0
        %2307 = vmatpush1.xpose.msra.mxu0 0.0
        %2308 = vmatprep.subr.mxu0 0.0
        %2309 = vmatpush1.xpose.msra.mxu0 0.0
        %2310 = vmatprep.subr.mxu0 0.0
        %2311 = vmatpush1.xpose.msra.mxu0 0.0
        %2312 = vmatprep.subr.mxu0 0.0
        %2313 = vmatpush1.xpose.msra.mxu0 0.0
        %2314 = vmatprep.subr.mxu0 0.0
        %2315 = vmatpush1.xpose.msra.mxu0 0.0
        %2316 = vmatprep.subr.mxu0 0.0
        %2317 = vmatpush1.xpose.msra.mxu0 0.0
        %2318 = vmatprep.subr.mxu0 0.0
        %2319 = vmatpush1.xpose.msra.mxu0 0.0
        %2320 = vmatprep.subr.mxu0 0.0
        %2321 = vmatpush1.xpose.msra.mxu0 0.0
        %2322 = vmatprep.subr.mxu0 0.0
        %2323 = vmatpush1.xpose.msra.mxu0 0.0
        %2324 = vmatprep.subr.mxu0 0.0
        %2325 = vmatpush1.xpose.msra.mxu0 0.0
        %2326 = vmatprep.subr.mxu0 0.0
        %2327 = vmatpush1.xpose.msra.mxu0 0.0
        %2328 = vmatprep.subr.mxu0 0.0
        %2329 = vmatpush1.xpose.msra.mxu0 0.0
        %2330 = vmatprep.subr.mxu0 0.0
        %2331 = vmatpush1.xpose.msra.mxu0 0.0
        %2332 = vmatprep.subr.mxu0 0.0
        %2333 = vmatpush1.xpose.msra.mxu0 0.0
        %2334 = vmatprep.subr.mxu0 0.0
        %2335 = vmatpush1.xpose.msra.mxu0 0.0
        %2336 = vmatprep.subr.mxu0 0.0
        %2337 = vmatpush1.xpose.msra.mxu0 0.0
        %2338 = vmatprep.subr.mxu0 0.0
        %2339 = vmatpush1.xpose.msra.mxu0 0.0
        %2340 = vmatprep.subr.mxu0 0.0
        %2341 = vmatpush1.xpose.msra.mxu0 0.0
        %2342 = vmatprep.mubr.f32.mxu0 0.0
        %2343 = vmatmul.mubr.f32.gmra.mrb[0].mxu0 %v2267
        %v2344 = vpop.f32.mrb[0].mxu0
        %v2345 = vadd.f32 0.0, %v2344
        %v2346 = vpop.f32.mrb[0].mxu0
        %2347 = vmatprep.mubr.f32.mxu0 0.0
        %2348 = vmatmul.mubr.f32.gmra.mrb[0].mxu0 %v2270
        %v2349 = vpop.f32.mrb[0].mxu0
        %v2350 = vadd.f32 0.0, %v2349
        %v2351 = vpop.f32.mrb[0].mxu0
        %2352 = vdwg.mxu0
        %v2353 = vmul.f32 %v2345, %v1380
        %v2354 = vmul.f32 %v2350, %v1380
        %v2355 = vxor.u32 %v2353, 2147483648
        %v2356 = vxor.u32 %v2354, 2147483648
        %v2357 = vmul.f32 %v2355, 1.442695
        %v2358 = vpow.pop %v2357
        %v2359 = vmul.f32 %v2356, 1.442695
        %v2360 = vpow.pop %v2359
        %v2361 = vadd.f32 %v2358, 1.0
        %v2362 = vadd.f32 %v2360, 1.0
        %v2363 = vrcp.pop %v2361
        %v2364 = vmul.f32 1.0, %v2363
        %v2365 = vrcp.pop %v2362
        %v2366 = vmul.f32 1.0, %v2365
        %v2367 = vmul.f32 %v2345, %v2364
        %v2368 = vmul.f32 %v2350, %v2366
        %v2369 = vsel %vm1366, %v2367, -1e+30
        %v2370 = vsel %vm1367, %v2368, -1e+30
        %v2371 = vsel %vm1368, %v2369, -inf
        %2372 = vmax.xlane.f32.xlu0 %v2371
        %v2373 = vpop.xlane.xlu0 %2372
        %v2374 = vsel %vm1368, %v2370, -inf
        %2375 = vmax.xlane.f32.xlu0 %v2374
        %v2376 = vpop.xlane.xlu0 %2375
        %v2377 = vsub.f32 %v2369, %v2373
        %v2378 = vsub.f32 %v2370, %v2376
        %v2379 = vmul.f32 %v2377, 1.442695
        %v2380 = vpow.pop %v2379
        %v2381 = vmul.f32 %v2378, 1.442695
        %v2382 = vpow.pop %v2381
        %v2383 = vsel %vm1366, %v2380, 0.0
        %v2384 = vsel %vm1367, %v2382, 0.0
        %v2385 = vsel %vm1368, %v2383, 0.0
        %2386 = vadd.xlane.f32.xlu0 %v2385
        %v2387 = vpop.xlane.xlu0 %2386
        %v2388 = vsel %vm1368, %v2384, 0.0
        %2389 = vadd.xlane.f32.xlu0 %v2388
        %v2390 = vpop.xlane.xlu0 %2389
        %v2391 = vadd.f32 %v2387, 1e-16
        %v2392 = vadd.f32 %v2390, 1e-16
        %v2393 = vrcp.pop %v2391
        %v2394 = vrcp.pop %v2392
        %v2395 = vmul.f32 %v2383, %v2393
        %v2396 = vmul.f32 %v2384, %v2394
        %v2397 = vld [vmem:[%s1096] sm:$0x1]
        %v2399 = vlaneseq
        %v2400 = vshrl.u32 %v2399, 7
        %v2401 = vsub.s32 0, %v2400
        %v2402 = vrot.slane %v2397, %v2401
        %v2405 = vsel %vm1368, %v2395, 0
        %v2408 = vsel %vm1368, %v2396, 0
        %2410 = vmatprep.subr.mxu0 0.0
        %2411 = vmatpush1.msra.mxu0 %v2252
        %2412 = vmatprep.subr.mxu0 0.0
        %2413 = vmatpush1.msra.mxu0 %v2257
        %2414 = vmatprep.subr.mxu0 0.0
        %2415 = vmatpush1.msra.mxu0 0.0
        %2416 = vmatprep.subr.mxu0 0.0
        %2417 = vmatpush1.msra.mxu0 0.0
        %2418 = vmatprep.subr.mxu0 0.0
        %2419 = vmatpush1.msra.mxu0 0.0
        %2420 = vmatprep.subr.mxu0 0.0
        %2421 = vmatpush1.msra.mxu0 0.0
        %2422 = vmatprep.subr.mxu0 0.0
        %2423 = vmatpush1.msra.mxu0 0.0
        %2424 = vmatprep.subr.mxu0 0.0
        %2425 = vmatpush1.msra.mxu0 0.0
        %2426 = vmatprep.subr.mxu0 0.0
        %2427 = vmatpush1.msra.mxu0 0.0
        %2428 = vmatprep.subr.mxu0 0.0
        %2429 = vmatpush1.msra.mxu0 0.0
        %2430 = vmatprep.subr.mxu0 0.0
        %2431 = vmatpush1.msra.mxu0 0.0
        %2432 = vmatprep.subr.mxu0 0.0
        %2433 = vmatpush1.msra.mxu0 0.0
        %2434 = vmatprep.subr.mxu0 0.0
        %2435 = vmatpush1.msra.mxu0 0.0
        %2436 = vmatprep.subr.mxu0 0.0
        %2437 = vmatpush1.msra.mxu0 0.0
        %2438 = vmatprep.subr.mxu0 0.0
        %2439 = vmatpush1.msra.mxu0 0.0
        %2440 = vmatprep.subr.mxu0 0.0
        %2441 = vmatpush1.msra.mxu0 0.0
        %2442 = vmatprep.subr.mxu0 0.0
        %2443 = vmatpush1.msra.mxu0 0.0
        %2444 = vmatprep.subr.mxu0 0.0
        %2445 = vmatpush1.msra.mxu0 0.0
        %2446 = vmatprep.subr.mxu0 0.0
        %2447 = vmatpush1.msra.mxu0 0.0
        %2448 = vmatprep.subr.mxu0 0.0
        %2449 = vmatpush1.msra.mxu0 0.0
        %2450 = vmatprep.subr.mxu0 0.0
        %2451 = vmatpush1.msra.mxu0 0.0
        %2452 = vmatprep.subr.mxu0 0.0
        %2453 = vmatpush1.msra.mxu0 0.0
        %2454 = vmatprep.subr.mxu0 0.0
        %2455 = vmatpush1.msra.mxu0 0.0
        %2456 = vmatprep.subr.mxu0 0.0
        %2457 = vmatpush1.msra.mxu0 0.0
        %2458 = vmatprep.subr.mxu0 0.0
        %2459 = vmatpush1.msra.mxu0 0.0
        %2460 = vmatprep.subr.mxu0 0.0
        %2461 = vmatpush1.msra.mxu0 0.0
        %2462 = vmatprep.subr.mxu0 0.0
        %2463 = vmatpush1.msra.mxu0 0.0
        %2464 = vmatprep.subr.mxu0 0.0
        %2465 = vmatpush1.msra.mxu0 0.0
        %2466 = vmatprep.subr.mxu0 0.0
        %2467 = vmatpush1.msra.mxu0 0.0
        %2468 = vmatprep.subr.mxu0 0.0
        %2469 = vmatpush1.msra.mxu0 0.0
        %2470 = vmatprep.subr.mxu0 0.0
        %2471 = vmatpush1.msra.mxu0 0.0
        %2472 = vmatprep.subr.mxu0 0.0
        %2473 = vmatpush1.msra.mxu0 0.0
        %2474 = vmatprep.mubr.f32.mxu0 0.0
        %2475 = vmatmul.mubr.f32.gmra.mrb[0].mxu0 %v2405
        %v2476 = vpop.f32.mrb[0].mxu0
        %v2477 = vadd.f32 %v2402, %v2476
        %v2478 = vpop.f32.mrb[0].mxu0
        %2479 = vmatprep.mubr.f32.mxu0 0.0
        %2480 = vmatmul.mubr.f32.gmra.mrb[0].mxu0 %v2408
        %v2481 = vpop.f32.mrb[0].mxu0
        %v2482 = vadd.f32 %v2402, %v2481
        %v2483 = vpop.f32.mrb[0].mxu0
        %2484 = vdwg.mxu0
        %v2485 = vmul.f32 %v2477, %v2477
        %v2486 = vmul.f32 %v2482, %v2482
        %v2487 = vsel %vm2178, %v2485, 0.0
        %2488 = vadd.xlane.f32.xlu0 %v2487
        %v2489 = vpop.xlane.xlu0 %2488
        %v2490 = vsel %vm2178, %v2486, 0.0
        %2491 = vadd.xlane.f32.xlu0 %v2490
        %v2492 = vpop.xlane.xlu0 %2491
        %v2493 = vmax.f32 %v2489, 1e-24
        %v2494 = vmax.f32 %v2492, 1e-24
        %v2495 = vrsqrt.pop %v2493
        %v2496 = vrsqrt.pop %v2494
        %v2497 = vmul.f32 %v2477, %v2495
        %v2498 = vmul.f32 %v2482, %v2496
        %vm2499 = vcmp.ge.f32.partialorder %v2497, 0.0
        %vm2500 = vcmp.ge.f32.partialorder %v2498, 0.0
        %v2501 = vmul.f32 %v2497, 0.01
        %v2502 = vmul.f32 %v2498, 0.01
        %v2503 = vsel %vm2499, %v2497, %v2501
        %v2504 = vsel %vm2500, %v2498, %v2502
        %v2505 = vld [vmem:[%s1105] sm:$0xff]
        %v2506 = vld [vmem:[%s1105 + $0x8] sm:$0xff]
        %v2507 = vld [vmem:[%s1105 + $0x10] sm:$0xff]
        %v2508 = vld [vmem:[%s1105 + $0x18] sm:$0xff]
        %v2509 = vld [vmem:[%s1105 + $0x20] sm:$0xff]
        %v2510 = vld [vmem:[%s1105 + $0x28] sm:$0xff]
        %v2511 = vld [vmem:[%s1105 + $0x30] sm:$0xff]
        %v2512 = vld [vmem:[%s1105 + $0x38] sm:$0xff]
        %v2513 = vld [vmem:[%s1355] sm:$0x1]
        %v2515 = vlaneseq
        %v2516 = vshrl.u32 %v2515, 7
        %v2517 = vsub.s32 0, %v2516
        %v2518 = vrot.slane %v2513, %v2517
        %2520 = vmatprep.subr.mxu0 0.0
        %2521 = vmatpush1.msra.mxu0 %v2505
        %2522 = vmatprep.subr.mxu0 0.0
        %2523 = vmatpush1.msra.mxu0 %v2506
        %2524 = vmatprep.subr.mxu0 0.0
        %2525 = vmatpush1.msra.mxu0 %v2507
        %2526 = vmatprep.subr.mxu0 0.0
        %2527 = vmatpush1.msra.mxu0 %v2508
        %2528 = vmatprep.subr.mxu0 0.0
        %2529 = vmatpush1.msra.mxu0 %v2509
        %2530 = vmatprep.subr.mxu0 0.0
        %2531 = vmatpush1.msra.mxu0 %v2510
        %2532 = vmatprep.subr.mxu0 0.0
        %2533 = vmatpush1.msra.mxu0 %v2511
        %2534 = vmatprep.subr.mxu0 0.0
        %2535 = vmatpush1.msra.mxu0 %v2512
        %2536 = vmatprep.subr.mxu0 0.0
        %2537 = vmatpush1.msra.mxu0 0.0
        %2538 = vmatprep.subr.mxu0 0.0
        %2539 = vmatpush1.msra.mxu0 0.0
        %2540 = vmatprep.subr.mxu0 0.0
        %2541 = vmatpush1.msra.mxu0 0.0
        %2542 = vmatprep.subr.mxu0 0.0
        %2543 = vmatpush1.msra.mxu0 0.0
        %2544 = vmatprep.subr.mxu0 0.0
        %2545 = vmatpush1.msra.mxu0 0.0
        %2546 = vmatprep.subr.mxu0 0.0
        %2547 = vmatpush1.msra.mxu0 0.0
        %2548 = vmatprep.subr.mxu0 0.0
        %2549 = vmatpush1.msra.mxu0 0.0
        %2550 = vmatprep.subr.mxu0 0.0
        %2551 = vmatpush1.msra.mxu0 0.0
        %2552 = vmatprep.subr.mxu0 0.0
        %2553 = vmatpush1.msra.mxu0 0.0
        %2554 = vmatprep.subr.mxu0 0.0
        %2555 = vmatpush1.msra.mxu0 0.0
        %2556 = vmatprep.subr.mxu0 0.0
        %2557 = vmatpush1.msra.mxu0 0.0
        %2558 = vmatprep.subr.mxu0 0.0
        %2559 = vmatpush1.msra.mxu0 0.0
        %2560 = vmatprep.subr.mxu0 0.0
        %2561 = vmatpush1.msra.mxu0 0.0
        %2562 = vmatprep.subr.mxu0 0.0
        %2563 = vmatpush1.msra.mxu0 0.0
        %2564 = vmatprep.subr.mxu0 0.0
        %2565 = vmatpush1.msra.mxu0 0.0
        %2566 = vmatprep.subr.mxu0 0.0
        %2567 = vmatpush1.msra.mxu0 0.0
        %2568 = vmatprep.subr.mxu0 0.0
        %2569 = vmatpush1.msra.mxu0 0.0
        %2570 = vmatprep.subr.mxu0 0.0
        %2571 = vmatpush1.msra.mxu0 0.0
        %2572 = vmatprep.subr.mxu0 0.0
        %2573 = vmatpush1.msra.mxu0 0.0
        %2574 = vmatprep.subr.mxu0 0.0
        %2575 = vmatpush1.msra.mxu0 0.0
        %2576 = vmatprep.subr.mxu0 0.0
        %2577 = vmatpush1.msra.mxu0 0.0
        %2578 = vmatprep.subr.mxu0 0.0
        %2579 = vmatpush1.msra.mxu0 0.0
        %2580 = vmatprep.subr.mxu0 0.0
        %2581 = vmatpush1.msra.mxu0 0.0
        %2582 = vmatprep.subr.mxu0 0.0
        %2583 = vmatpush1.msra.mxu0 0.0
        %2584 = vmatprep.mubr.f32.mxu0 0.0
        %2585 = vmatmul.mubr.f32.gmra.mrb[0].mxu0 %v2180
        %v2586 = vpop.f32.mrb[0].mxu0
        %v2587 = vadd.f32 %v2518, %v2586
        %v2588 = vpop.f32.mrb[0].mxu0
        %2589 = vmatprep.mubr.f32.mxu0 0.0
        %2590 = vmatmul.mubr.f32.gmra.mrb[0].mxu0 %v2183
        %v2591 = vpop.f32.mrb[0].mxu0
        %v2592 = vadd.f32 %v2518, %v2591
        %v2593 = vpop.f32.mrb[0].mxu0
        %2594 = vdwg.mxu0
        %vm2595 = vcmp.ge.f32.partialorder %v2587, 0.0
        %vm2596 = vcmp.ge.f32.partialorder %v2592, 0.0
        %v2597 = vmul.f32 %v2587, 0.01
        %v2598 = vmul.f32 %v2592, 0.01
        %v2599 = vsel %vm2595, %v2587, %v2597
        %v2600 = vsel %vm2596, %v2592, %v2598
        %v2601 = vadd.f32 %v2599, %v1381
        %v2602 = vadd.f32 %v2600, %v1382
        %v2603 = vld [vmem:[%s1114] sm:$0xff]
        %v2604 = vld [vmem:[%s1114 + $0x8] sm:$0xff]
        %v2605 = vld [vmem:[%s1114 + $0x10] sm:$0xff]
        %v2606 = vld [vmem:[%s1114 + $0x18] sm:$0xff]
        %v2607 = vld [vmem:[%s1114 + $0x20] sm:$0xff]
        %v2608 = vld [vmem:[%s1114 + $0x28] sm:$0xff]
        %v2609 = vld [vmem:[%s1114 + $0x30] sm:$0xff]
        %v2610 = vld [vmem:[%s1114 + $0x38] sm:$0xff]
        %v2611 = vld [vmem:[%s1122] sm:$0x1]
        %v2613 = vlaneseq
        %v2614 = vshrl.u32 %v2613, 7
        %v2615 = vsub.s32 0, %v2614
        %v2616 = vrot.slane %v2611, %v2615
        %v2619 = vsel %vm2178, %v2503, 0
        %v2622 = vsel %vm2178, %v2504, 0
        %2624 = vmatprep.subr.mxu0 0.0
        %2625 = vmatpush1.msra.mxu0 %v2603
        %2626 = vmatprep.subr.mxu0 0.0
        %2627 = vmatpush1.msra.mxu0 %v2604
        %2628 = vmatprep.subr.mxu0 0.0
        %2629 = vmatpush1.msra.mxu0 %v2605
        %2630 = vmatprep.subr.mxu0 0.0
        %2631 = vmatpush1.msra.mxu0 %v2606
        %2632 = vmatprep.subr.mxu0 0.0
        %2633 = vmatpush1.msra.mxu0 %v2607
        %2634 = vmatprep.subr.mxu0 0.0
        %2635 = vmatpush1.msra.mxu0 %v2608
        %2636 = vmatprep.subr.mxu0 0.0
        %2637 = vmatpush1.msra.mxu0 %v2609
        %2638 = vmatprep.subr.mxu0 0.0
        %2639 = vmatpush1.msra.mxu0 %v2610
        %2640 = vmatprep.subr.mxu0 0.0
        %2641 = vmatpush1.msra.mxu0 0.0
        %2642 = vmatprep.subr.mxu0 0.0
        %2643 = vmatpush1.msra.mxu0 0.0
        %2644 = vmatprep.subr.mxu0 0.0
        %2645 = vmatpush1.msra.mxu0 0.0
        %2646 = vmatprep.subr.mxu0 0.0
        %2647 = vmatpush1.msra.mxu0 0.0
        %2648 = vmatprep.subr.mxu0 0.0
        %2649 = vmatpush1.msra.mxu0 0.0
        %2650 = vmatprep.subr.mxu0 0.0
        %2651 = vmatpush1.msra.mxu0 0.0
        %2652 = vmatprep.subr.mxu0 0.0
        %2653 = vmatpush1.msra.mxu0 0.0
        %2654 = vmatprep.subr.mxu0 0.0
        %2655 = vmatpush1.msra.mxu0 0.0
        %2656 = vmatprep.subr.mxu0 0.0
        %2657 = vmatpush1.msra.mxu0 0.0
        %2658 = vmatprep.subr.mxu0 0.0
        %2659 = vmatpush1.msra.mxu0 0.0
        %2660 = vmatprep.subr.mxu0 0.0
        %2661 = vmatpush1.msra.mxu0 0.0
        %2662 = vmatprep.subr.mxu0 0.0
        %2663 = vmatpush1.msra.mxu0 0.0
        %2664 = vmatprep.subr.mxu0 0.0
        %2665 = vmatpush1.msra.mxu0 0.0
        %2666 = vmatprep.subr.mxu0 0.0
        %2667 = vmatpush1.msra.mxu0 0.0
        %2668 = vmatprep.subr.mxu0 0.0
        %2669 = vmatpush1.msra.mxu0 0.0
        %2670 = vmatprep.subr.mxu0 0.0
        %2671 = vmatpush1.msra.mxu0 0.0
        %2672 = vmatprep.subr.mxu0 0.0
        %2673 = vmatpush1.msra.mxu0 0.0
        %2674 = vmatprep.subr.mxu0 0.0
        %2675 = vmatpush1.msra.mxu0 0.0
        %2676 = vmatprep.subr.mxu0 0.0
        %2677 = vmatpush1.msra.mxu0 0.0
        %2678 = vmatprep.subr.mxu0 0.0
        %2679 = vmatpush1.msra.mxu0 0.0
        %2680 = vmatprep.subr.mxu0 0.0
        %2681 = vmatpush1.msra.mxu0 0.0
        %2682 = vmatprep.subr.mxu0 0.0
        %2683 = vmatpush1.msra.mxu0 0.0
        %2684 = vmatprep.subr.mxu0 0.0
        %2685 = vmatpush1.msra.mxu0 0.0
        %2686 = vmatprep.subr.mxu0 0.0
        %2687 = vmatpush1.msra.mxu0 0.0
        %2688 = vmatprep.mubr.f32.mxu0 0.0
        %2689 = vmatmul.mubr.f32.gmra.mrb[0].mxu0 %v2619
        %v2690 = vpop.f32.mrb[0].mxu0
        %v2691 = vadd.f32 %v2616, %v2690
        %v2692 = vpop.f32.mrb[0].mxu0
        %2693 = vmatprep.mubr.f32.mxu0 0.0
        %2694 = vmatmul.mubr.f32.gmra.mrb[0].mxu0 %v2622
        %v2695 = vpop.f32.mrb[0].mxu0
        %v2696 = vadd.f32 %v2616, %v2695
        %v2697 = vpop.f32.mrb[0].mxu0
        %2698 = vdwg.mxu0
        %v2699 = vadd.f32 %v2691, %v2601
        %v2700 = vadd.f32 %v2696, %v2602
        %vm2701 = vcmp.ge.f32.partialorder %v2699, 0.0
        %vm2702 = vcmp.ge.f32.partialorder %v2700, 0.0
        %v2703 = vmul.f32 %v2699, 0.01
        %v2704 = vmul.f32 %v2700, 0.01
        %v2705 = vsel %vm2701, %v2699, %v2703
        %v2706 = vsel %vm2702, %v2700, %v2704
        %v2707 = vld [vmem:[%s1131] sm:$0xff]
        %v2708 = vld [vmem:[%s1131 + $0x8] sm:$0xff]
        %v2709 = vld [vmem:[%s1131 + $0x10] sm:$0xff]
        %v2710 = vld [vmem:[%s1131 + $0x18] sm:$0xff]
        %v2711 = vld [vmem:[%s1131 + $0x20] sm:$0xff]
        %v2712 = vld [vmem:[%s1131 + $0x28] sm:$0xff]
        %v2713 = vld [vmem:[%s1131 + $0x30] sm:$0xff]
        %v2714 = vld [vmem:[%s1131 + $0x38] sm:$0xff]
        %v2716 = vsel %vm2178, %v2705, 0
        %v2719 = vsel %vm2178, %v2706, 0
        %2721 = vmatprep.subr.mxu0 0.0
        %2722 = vmatpush1.msra.mxu0 %v2707
        %2723 = vmatprep.subr.mxu0 0.0
        %2724 = vmatpush1.msra.mxu0 %v2708
        %2725 = vmatprep.subr.mxu0 0.0
        %2726 = vmatpush1.msra.mxu0 %v2709
        %2727 = vmatprep.subr.mxu0 0.0
        %2728 = vmatpush1.msra.mxu0 %v2710
        %2729 = vmatprep.subr.mxu0 0.0
        %2730 = vmatpush1.msra.mxu0 %v2711
        %2731 = vmatprep.subr.mxu0 0.0
        %2732 = vmatpush1.msra.mxu0 %v2712
        %2733 = vmatprep.subr.mxu0 0.0
        %2734 = vmatpush1.msra.mxu0 %v2713
        %2735 = vmatprep.subr.mxu0 0.0
        %2736 = vmatpush1.msra.mxu0 %v2714
        %2737 = vmatprep.subr.mxu0 0.0
        %2738 = vmatpush1.msra.mxu0 0.0
        %2739 = vmatprep.subr.mxu0 0.0
        %2740 = vmatpush1.msra.mxu0 0.0
        %2741 = vmatprep.subr.mxu0 0.0
        %2742 = vmatpush1.msra.mxu0 0.0
        %2743 = vmatprep.subr.mxu0 0.0
        %2744 = vmatpush1.msra.mxu0 0.0
        %2745 = vmatprep.subr.mxu0 0.0
        %2746 = vmatpush1.msra.mxu0 0.0
        %2747 = vmatprep.subr.mxu0 0.0
        %2748 = vmatpush1.msra.mxu0 0.0
        %2749 = vmatprep.subr.mxu0 0.0
        %2750 = vmatpush1.msra.mxu0 0.0
        %2751 = vmatprep.subr.mxu0 0.0
        %2752 = vmatpush1.msra.mxu0 0.0
        %2753 = vmatprep.subr.mxu0 0.0
        %2754 = vmatpush1.msra.mxu0 0.0
        %2755 = vmatprep.subr.mxu0 0.0
        %2756 = vmatpush1.msra.mxu0 0.0
        %2757 = vmatprep.subr.mxu0 0.0
        %2758 = vmatpush1.msra.mxu0 0.0
        %2759 = vmatprep.subr.mxu0 0.0
        %2760 = vmatpush1.msra.mxu0 0.0
        %2761 = vmatprep.subr.mxu0 0.0
        %2762 = vmatpush1.msra.mxu0 0.0
        %2763 = vmatprep.subr.mxu0 0.0
        %2764 = vmatpush1.msra.mxu0 0.0
        %2765 = vmatprep.subr.mxu0 0.0
        %2766 = vmatpush1.msra.mxu0 0.0
        %2767 = vmatprep.subr.mxu0 0.0
        %2768 = vmatpush1.msra.mxu0 0.0
        %2769 = vmatprep.subr.mxu0 0.0
        %2770 = vmatpush1.msra.mxu0 0.0
        %2771 = vmatprep.subr.mxu0 0.0
        %2772 = vmatpush1.msra.mxu0 0.0
        %2773 = vmatprep.subr.mxu0 0.0
        %2774 = vmatpush1.msra.mxu0 0.0
        %2775 = vmatprep.subr.mxu0 0.0
        %2776 = vmatpush1.msra.mxu0 0.0
        %2777 = vmatprep.subr.mxu0 0.0
        %2778 = vmatpush1.msra.mxu0 0.0
        %2779 = vmatprep.subr.mxu0 0.0
        %2780 = vmatpush1.msra.mxu0 0.0
        %2781 = vmatprep.subr.mxu0 0.0
        %2782 = vmatpush1.msra.mxu0 0.0
        %2783 = vmatprep.subr.mxu0 0.0
        %2784 = vmatpush1.msra.mxu0 0.0
        %2785 = vmatprep.mubr.f32.mxu0 0.0
        %2786 = vmatmul.mubr.f32.gmra.mrb[0].mxu0 %v2716
        %v2787 = vpop.f32.mrb[0].mxu0
        %v2788 = vadd.f32 0.0, %v2787
        %v2789 = vpop.f32.mrb[0].mxu0
        %2790 = vmatprep.mubr.f32.mxu0 0.0
        %2791 = vmatmul.mubr.f32.gmra.mrb[0].mxu0 %v2719
        %v2792 = vpop.f32.mrb[0].mxu0
        %v2793 = vadd.f32 0.0, %v2792
        %v2794 = vpop.f32.mrb[0].mxu0
        %2795 = vdwg.mxu0
        %vm2796 = vcmp.ge.f32.partialorder %v2788, 0.0
        %vm2797 = vcmp.ge.f32.partialorder %v2793, 0.0
        %v2798 = vmul.f32 %v2788, 0.01
        %v2799 = vmul.f32 %v2793, 0.01
        %v2800 = vsel %vm2796, %v2788, %v2798
        %v2801 = vsel %vm2797, %v2793, %v2799
        %v2803 = vsel %vm2178, %v2788, 0
        %v2806 = vsel %vm2178, %v2793, 0
        %v2809 = vsel %vm2178, %v2800, 0
        %v2812 = vsel %vm2178, %v2801, 0
        %2814 = vmatprep.subr.mxu0 0.0
        %2815 = vmatpush1.xpose.msra.mxu0 %v2809
        %2816 = vmatprep.subr.mxu0 0.0
        %2817 = vmatpush1.xpose.msra.mxu0 %v2812
        %2818 = vmatprep.subr.mxu0 0.0
        %2819 = vmatpush1.xpose.msra.mxu0 0.0
        %2820 = vmatprep.subr.mxu0 0.0
        %2821 = vmatpush1.xpose.msra.mxu0 0.0
        %2822 = vmatprep.subr.mxu0 0.0
        %2823 = vmatpush1.xpose.msra.mxu0 0.0
        %2824 = vmatprep.subr.mxu0 0.0
        %2825 = vmatpush1.xpose.msra.mxu0 0.0
        %2826 = vmatprep.subr.mxu0 0.0
        %2827 = vmatpush1.xpose.msra.mxu0 0.0
        %2828 = vmatprep.subr.mxu0 0.0
        %2829 = vmatpush1.xpose.msra.mxu0 0.0
        %2830 = vmatprep.subr.mxu0 0.0
        %2831 = vmatpush1.xpose.msra.mxu0 0.0
        %2832 = vmatprep.subr.mxu0 0.0
        %2833 = vmatpush1.xpose.msra.mxu0 0.0
        %2834 = vmatprep.subr.mxu0 0.0
        %2835 = vmatpush1.xpose.msra.mxu0 0.0
        %2836 = vmatprep.subr.mxu0 0.0
        %2837 = vmatpush1.xpose.msra.mxu0 0.0
        %2838 = vmatprep.subr.mxu0 0.0
        %2839 = vmatpush1.xpose.msra.mxu0 0.0
        %2840 = vmatprep.subr.mxu0 0.0
        %2841 = vmatpush1.xpose.msra.mxu0 0.0
        %2842 = vmatprep.subr.mxu0 0.0
        %2843 = vmatpush1.xpose.msra.mxu0 0.0
        %2844 = vmatprep.subr.mxu0 0.0
        %2845 = vmatpush1.xpose.msra.mxu0 0.0
        %2846 = vmatprep.subr.mxu0 0.0
        %2847 = vmatpush1.xpose.msra.mxu0 0.0
        %2848 = vmatprep.subr.mxu0 0.0
        %2849 = vmatpush1.xpose.msra.mxu0 0.0
        %2850 = vmatprep.subr.mxu0 0.0
        %2851 = vmatpush1.xpose.msra.mxu0 0.0
        %2852 = vmatprep.subr.mxu0 0.0
        %2853 = vmatpush1.xpose.msra.mxu0 0.0
        %2854 = vmatprep.subr.mxu0 0.0
        %2855 = vmatpush1.xpose.msra.mxu0 0.0
        %2856 = vmatprep.subr.mxu0 0.0
        %2857 = vmatpush1.xpose.msra.mxu0 0.0
        %2858 = vmatprep.subr.mxu0 0.0
        %2859 = vmatpush1.xpose.msra.mxu0 0.0
        %2860 = vmatprep.subr.mxu0 0.0
        %2861 = vmatpush1.xpose.msra.mxu0 0.0
        %2862 = vmatprep.subr.mxu0 0.0
        %2863 = vmatpush1.xpose.msra.mxu0 0.0
        %2864 = vmatprep.subr.mxu0 0.0
        %2865 = vmatpush1.xpose.msra.mxu0 0.0
        %2866 = vmatprep.subr.mxu0 0.0
        %2867 = vmatpush1.xpose.msra.mxu0 0.0
        %2868 = vmatprep.subr.mxu0 0.0
        %2869 = vmatpush1.xpose.msra.mxu0 0.0
        %2870 = vmatprep.subr.mxu0 0.0
        %2871 = vmatpush1.xpose.msra.mxu0 0.0
        %2872 = vmatprep.subr.mxu0 0.0
        %2873 = vmatpush1.xpose.msra.mxu0 0.0
        %2874 = vmatprep.subr.mxu0 0.0
        %2875 = vmatpush1.xpose.msra.mxu0 0.0
        %2876 = vmatprep.subr.mxu0 0.0
        %2877 = vmatpush1.xpose.msra.mxu0 0.0
        %2878 = vmatprep.mubr.f32.mxu0 0.0
        %2879 = vmatmul.mubr.f32.gmra.mrb[0].mxu0 %v2803
        %v2880 = vpop.f32.mrb[0].mxu0
        %v2881 = vadd.f32 0.0, %v2880
        %v2882 = vpop.f32.mrb[0].mxu0
        %2883 = vmatprep.mubr.f32.mxu0 0.0
        %2884 = vmatmul.mubr.f32.gmra.mrb[0].mxu0 %v2806
        %v2885 = vpop.f32.mrb[0].mxu0
        %v2886 = vadd.f32 0.0, %v2885
        %v2887 = vpop.f32.mrb[0].mxu0
        %2888 = vdwg.mxu0
        %v2889 = vmul.f32 %v2881, %v1380
        %v2890 = vmul.f32 %v2886, %v1380
        %v2891 = vxor.u32 %v2889, 2147483648
        %v2892 = vxor.u32 %v2890, 2147483648
        %v2893 = vmul.f32 %v2891, 1.442695
        %v2894 = vpow.pop %v2893
        %v2895 = vmul.f32 %v2892, 1.442695
        %v2896 = vpow.pop %v2895
        %v2897 = vadd.f32 %v2894, 1.0
        %v2898 = vadd.f32 %v2896, 1.0
        %v2899 = vrcp.pop %v2897
        %v2900 = vmul.f32 1.0, %v2899
        %v2901 = vrcp.pop %v2898
        %v2902 = vmul.f32 1.0, %v2901
        %v2903 = vmul.f32 %v2881, %v2900
        %v2904 = vmul.f32 %v2886, %v2902
        %v2905 = vsel %vm1366, %v2903, -1e+30
        %v2906 = vsel %vm1367, %v2904, -1e+30
        %v2907 = vsel %vm1368, %v2905, -inf
        %2908 = vmax.xlane.f32.xlu0 %v2907
        %v2909 = vpop.xlane.xlu0 %2908
        %v2910 = vsel %vm1368, %v2906, -inf
        %2911 = vmax.xlane.f32.xlu0 %v2910
        %v2912 = vpop.xlane.xlu0 %2911
        %v2913 = vsub.f32 %v2905, %v2909
        %v2914 = vsub.f32 %v2906, %v2912
        %v2915 = vmul.f32 %v2913, 1.442695
        %v2916 = vpow.pop %v2915
        %v2917 = vmul.f32 %v2914, 1.442695
        %v2918 = vpow.pop %v2917
        %v2919 = vsel %vm1366, %v2916, 0.0
        %v2920 = vsel %vm1367, %v2918, 0.0
        %v2921 = vsel %vm1368, %v2919, 0.0
        %2922 = vadd.xlane.f32.xlu0 %v2921
        %v2923 = vpop.xlane.xlu0 %2922
        %v2924 = vsel %vm1368, %v2920, 0.0
        %2925 = vadd.xlane.f32.xlu0 %v2924
        %v2926 = vpop.xlane.xlu0 %2925
        %v2927 = vadd.f32 %v2923, 1e-16
        %v2928 = vadd.f32 %v2926, 1e-16
        %v2929 = vrcp.pop %v2927
        %v2930 = vrcp.pop %v2928
        %v2931 = vmul.f32 %v2919, %v2929
        %v2932 = vmul.f32 %v2920, %v2930
        %v2933 = vld [vmem:[%s1139] sm:$0x1]
        %v2935 = vlaneseq
        %v2936 = vshrl.u32 %v2935, 7
        %v2937 = vsub.s32 0, %v2936
        %v2938 = vrot.slane %v2933, %v2937
        %v2941 = vsel %vm1368, %v2931, 0
        %v2944 = vsel %vm1368, %v2932, 0
        %2946 = vmatprep.subr.mxu0 0.0
        %2947 = vmatpush1.msra.mxu0 %v2788
        %2948 = vmatprep.subr.mxu0 0.0
        %2949 = vmatpush1.msra.mxu0 %v2793
        %2950 = vmatprep.subr.mxu0 0.0
        %2951 = vmatpush1.msra.mxu0 0.0
        %2952 = vmatprep.subr.mxu0 0.0
        %2953 = vmatpush1.msra.mxu0 0.0
        %2954 = vmatprep.subr.mxu0 0.0
        %2955 = vmatpush1.msra.mxu0 0.0
        %2956 = vmatprep.subr.mxu0 0.0
        %2957 = vmatpush1.msra.mxu0 0.0
        %2958 = vmatprep.subr.mxu0 0.0
        %2959 = vmatpush1.msra.mxu0 0.0
        %2960 = vmatprep.subr.mxu0 0.0
        %2961 = vmatpush1.msra.mxu0 0.0
        %2962 = vmatprep.subr.mxu0 0.0
        %2963 = vmatpush1.msra.mxu0 0.0
        %2964 = vmatprep.subr.mxu0 0.0
        %2965 = vmatpush1.msra.mxu0 0.0
        %2966 = vmatprep.subr.mxu0 0.0
        %2967 = vmatpush1.msra.mxu0 0.0
        %2968 = vmatprep.subr.mxu0 0.0
        %2969 = vmatpush1.msra.mxu0 0.0
        %2970 = vmatprep.subr.mxu0 0.0
        %2971 = vmatpush1.msra.mxu0 0.0
        %2972 = vmatprep.subr.mxu0 0.0
        %2973 = vmatpush1.msra.mxu0 0.0
        %2974 = vmatprep.subr.mxu0 0.0
        %2975 = vmatpush1.msra.mxu0 0.0
        %2976 = vmatprep.subr.mxu0 0.0
        %2977 = vmatpush1.msra.mxu0 0.0
        %2978 = vmatprep.subr.mxu0 0.0
        %2979 = vmatpush1.msra.mxu0 0.0
        %2980 = vmatprep.subr.mxu0 0.0
        %2981 = vmatpush1.msra.mxu0 0.0
        %2982 = vmatprep.subr.mxu0 0.0
        %2983 = vmatpush1.msra.mxu0 0.0
        %2984 = vmatprep.subr.mxu0 0.0
        %2985 = vmatpush1.msra.mxu0 0.0
        %2986 = vmatprep.subr.mxu0 0.0
        %2987 = vmatpush1.msra.mxu0 0.0
        %2988 = vmatprep.subr.mxu0 0.0
        %2989 = vmatpush1.msra.mxu0 0.0
        %2990 = vmatprep.subr.mxu0 0.0
        %2991 = vmatpush1.msra.mxu0 0.0
        %2992 = vmatprep.subr.mxu0 0.0
        %2993 = vmatpush1.msra.mxu0 0.0
        %2994 = vmatprep.subr.mxu0 0.0
        %2995 = vmatpush1.msra.mxu0 0.0
        %2996 = vmatprep.subr.mxu0 0.0
        %2997 = vmatpush1.msra.mxu0 0.0
        %2998 = vmatprep.subr.mxu0 0.0
        %2999 = vmatpush1.msra.mxu0 0.0
        %3000 = vmatprep.subr.mxu0 0.0
        %3001 = vmatpush1.msra.mxu0 0.0
        %3002 = vmatprep.subr.mxu0 0.0
        %3003 = vmatpush1.msra.mxu0 0.0
        %3004 = vmatprep.subr.mxu0 0.0
        %3005 = vmatpush1.msra.mxu0 0.0
        %3006 = vmatprep.subr.mxu0 0.0
        %3007 = vmatpush1.msra.mxu0 0.0
        %3008 = vmatprep.subr.mxu0 0.0
        %3009 = vmatpush1.msra.mxu0 0.0
        %3010 = vmatprep.mubr.f32.mxu0 0.0
        %3011 = vmatmul.mubr.f32.gmra.mrb[0].mxu0 %v2941
        %v3012 = vpop.f32.mrb[0].mxu0
        %v3013 = vadd.f32 %v2938, %v3012
        %v3014 = vpop.f32.mrb[0].mxu0
        %3015 = vmatprep.mubr.f32.mxu0 0.0
        %3016 = vmatmul.mubr.f32.gmra.mrb[0].mxu0 %v2944
        %v3017 = vpop.f32.mrb[0].mxu0
        %v3018 = vadd.f32 %v2938, %v3017
        %v3019 = vpop.f32.mrb[0].mxu0
        %3020 = vdwg.mxu0
        %v3021 = vmul.f32 %v3013, %v3013
        %v3022 = vmul.f32 %v3018, %v3018
        %v3023 = vsel %vm2178, %v3021, 0.0
        %3024 = vadd.xlane.f32.xlu0 %v3023
        %v3025 = vpop.xlane.xlu0 %3024
        %v3026 = vsel %vm2178, %v3022, 0.0
        %3027 = vadd.xlane.f32.xlu0 %v3026
        %v3028 = vpop.xlane.xlu0 %3027
        %v3029 = vmax.f32 %v3025, 1e-24
        %v3030 = vmax.f32 %v3028, 1e-24
        %v3031 = vrsqrt.pop %v3029
        %v3032 = vrsqrt.pop %v3030
        %v3033 = vmul.f32 %v3013, %v3031
        %v3034 = vmul.f32 %v3018, %v3032
        %vm3035 = vcmp.ge.f32.partialorder %v3033, 0.0
        %vm3036 = vcmp.ge.f32.partialorder %v3034, 0.0
        %v3037 = vmul.f32 %v3033, 0.01
        %v3038 = vmul.f32 %v3034, 0.01
        %v3039 = vsel %vm3035, %v3033, %v3037
        %v3040 = vsel %vm3036, %v3034, %v3038
        %v3041 = vld [vmem:[%s1148] sm:$0xff]
        %v3042 = vld [vmem:[%s1148 + $0x8] sm:$0xff]
        %v3043 = vld [vmem:[%s1148 + $0x10] sm:$0xff]
        %v3044 = vld [vmem:[%s1148 + $0x18] sm:$0xff]
        %v3045 = vld [vmem:[%s1148 + $0x20] sm:$0xff]
        %v3046 = vld [vmem:[%s1148 + $0x28] sm:$0xff]
        %v3047 = vld [vmem:[%s1148 + $0x30] sm:$0xff]
        %v3048 = vld [vmem:[%s1148 + $0x38] sm:$0xff]
        %v3049 = vld [vmem:[%s1358] sm:$0x1]
        %v3051 = vlaneseq
        %v3052 = vshrl.u32 %v3051, 7
        %v3053 = vsub.s32 0, %v3052
        %v3054 = vrot.slane %v3049, %v3053
        %3056 = vmatprep.subr.mxu0 0.0
        %3057 = vmatpush1.msra.mxu0 %v3041
        %3058 = vmatprep.subr.mxu0 0.0
        %3059 = vmatpush1.msra.mxu0 %v3042
        %3060 = vmatprep.subr.mxu0 0.0
        %3061 = vmatpush1.msra.mxu0 %v3043
        %3062 = vmatprep.subr.mxu0 0.0
        %3063 = vmatpush1.msra.mxu0 %v3044
        %3064 = vmatprep.subr.mxu0 0.0
        %3065 = vmatpush1.msra.mxu0 %v3045
        %3066 = vmatprep.subr.mxu0 0.0
        %3067 = vmatpush1.msra.mxu0 %v3046
        %3068 = vmatprep.subr.mxu0 0.0
        %3069 = vmatpush1.msra.mxu0 %v3047
        %3070 = vmatprep.subr.mxu0 0.0
        %3071 = vmatpush1.msra.mxu0 %v3048
        %3072 = vmatprep.subr.mxu0 0.0
        %3073 = vmatpush1.msra.mxu0 0.0
        %3074 = vmatprep.subr.mxu0 0.0
        %3075 = vmatpush1.msra.mxu0 0.0
        %3076 = vmatprep.subr.mxu0 0.0
        %3077 = vmatpush1.msra.mxu0 0.0
        %3078 = vmatprep.subr.mxu0 0.0
        %3079 = vmatpush1.msra.mxu0 0.0
        %3080 = vmatprep.subr.mxu0 0.0
        %3081 = vmatpush1.msra.mxu0 0.0
        %3082 = vmatprep.subr.mxu0 0.0
        %3083 = vmatpush1.msra.mxu0 0.0
        %3084 = vmatprep.subr.mxu0 0.0
        %3085 = vmatpush1.msra.mxu0 0.0
        %3086 = vmatprep.subr.mxu0 0.0
        %3087 = vmatpush1.msra.mxu0 0.0
        %3088 = vmatprep.subr.mxu0 0.0
        %3089 = vmatpush1.msra.mxu0 0.0
        %3090 = vmatprep.subr.mxu0 0.0
        %3091 = vmatpush1.msra.mxu0 0.0
        %3092 = vmatprep.subr.mxu0 0.0
        %3093 = vmatpush1.msra.mxu0 0.0
        %3094 = vmatprep.subr.mxu0 0.0
        %3095 = vmatpush1.msra.mxu0 0.0
        %3096 = vmatprep.subr.mxu0 0.0
        %3097 = vmatpush1.msra.mxu0 0.0
        %3098 = vmatprep.subr.mxu0 0.0
        %3099 = vmatpush1.msra.mxu0 0.0
        %3100 = vmatprep.subr.mxu0 0.0
        %3101 = vmatpush1.msra.mxu0 0.0
        %3102 = vmatprep.subr.mxu0 0.0
        %3103 = vmatpush1.msra.mxu0 0.0
        %3104 = vmatprep.subr.mxu0 0.0
        %3105 = vmatpush1.msra.mxu0 0.0
        %3106 = vmatprep.subr.mxu0 0.0
        %3107 = vmatpush1.msra.mxu0 0.0
        %3108 = vmatprep.subr.mxu0 0.0
        %3109 = vmatpush1.msra.mxu0 0.0
        %3110 = vmatprep.subr.mxu0 0.0
        %3111 = vmatpush1.msra.mxu0 0.0
        %3112 = vmatprep.subr.mxu0 0.0
        %3113 = vmatpush1.msra.mxu0 0.0
        %3114 = vmatprep.subr.mxu0 0.0
        %3115 = vmatpush1.msra.mxu0 0.0
        %3116 = vmatprep.subr.mxu0 0.0
        %3117 = vmatpush1.msra.mxu0 0.0
        %3118 = vmatprep.subr.mxu0 0.0
        %3119 = vmatpush1.msra.mxu0 0.0
        %3120 = vmatprep.mubr.f32.mxu0 0.0
        %3121 = vmatmul.mubr.f32.gmra.mrb[0].mxu0 %v2716
        %v3122 = vpop.f32.mrb[0].mxu0
        %v3123 = vadd.f32 %v3054, %v3122
        %v3124 = vpop.f32.mrb[0].mxu0
        %3125 = vmatprep.mubr.f32.mxu0 0.0
        %3126 = vmatmul.mubr.f32.gmra.mrb[0].mxu0 %v2719
        %v3127 = vpop.f32.mrb[0].mxu0
        %v3128 = vadd.f32 %v3054, %v3127
        %v3129 = vpop.f32.mrb[0].mxu0
        %3130 = vdwg.mxu0
        %vm3131 = vcmp.ge.f32.partialorder %v3123, 0.0
        %vm3132 = vcmp.ge.f32.partialorder %v3128, 0.0
        %v3133 = vmul.f32 %v3123, 0.01
        %v3134 = vmul.f32 %v3128, 0.01
        %v3135 = vsel %vm3131, %v3123, %v3133
        %v3136 = vsel %vm3132, %v3128, %v3134
        %v3137 = vadd.f32 %v3135, %v1381
        %v3138 = vadd.f32 %v3136, %v1382
        %v3139 = vld [vmem:[%s1157] sm:$0xff]
        %v3140 = vld [vmem:[%s1157 + $0x8] sm:$0xff]
        %v3141 = vld [vmem:[%s1157 + $0x10] sm:$0xff]
        %v3142 = vld [vmem:[%s1157 + $0x18] sm:$0xff]
        %v3143 = vld [vmem:[%s1157 + $0x20] sm:$0xff]
        %v3144 = vld [vmem:[%s1157 + $0x28] sm:$0xff]
        %v3145 = vld [vmem:[%s1157 + $0x30] sm:$0xff]
        %v3146 = vld [vmem:[%s1157 + $0x38] sm:$0xff]
        %v3147 = vld [vmem:[%s1165] sm:$0x1]
        %v3149 = vlaneseq
        %v3150 = vshrl.u32 %v3149, 7
        %v3151 = vsub.s32 0, %v3150
        %v3152 = vrot.slane %v3147, %v3151
        %v3155 = vsel %vm2178, %v3039, 0
        %v3158 = vsel %vm2178, %v3040, 0
        %3160 = vmatprep.subr.mxu0 0.0
        %3161 = vmatpush1.msra.mxu0 %v3139
        %3162 = vmatprep.subr.mxu0 0.0
        %3163 = vmatpush1.msra.mxu0 %v3140
        %3164 = vmatprep.subr.mxu0 0.0
        %3165 = vmatpush1.msra.mxu0 %v3141
        %3166 = vmatprep.subr.mxu0 0.0
        %3167 = vmatpush1.msra.mxu0 %v3142
        %3168 = vmatprep.subr.mxu0 0.0
        %3169 = vmatpush1.msra.mxu0 %v3143
        %3170 = vmatprep.subr.mxu0 0.0
        %3171 = vmatpush1.msra.mxu0 %v3144
        %3172 = vmatprep.subr.mxu0 0.0
        %3173 = vmatpush1.msra.mxu0 %v3145
        %3174 = vmatprep.subr.mxu0 0.0
        %3175 = vmatpush1.msra.mxu0 %v3146
        %3176 = vmatprep.subr.mxu0 0.0
        %3177 = vmatpush1.msra.mxu0 0.0
        %3178 = vmatprep.subr.mxu0 0.0
        %3179 = vmatpush1.msra.mxu0 0.0
        %3180 = vmatprep.subr.mxu0 0.0
        %3181 = vmatpush1.msra.mxu0 0.0
        %3182 = vmatprep.subr.mxu0 0.0
        %3183 = vmatpush1.msra.mxu0 0.0
        %3184 = vmatprep.subr.mxu0 0.0
        %3185 = vmatpush1.msra.mxu0 0.0
        %3186 = vmatprep.subr.mxu0 0.0
        %3187 = vmatpush1.msra.mxu0 0.0
        %3188 = vmatprep.subr.mxu0 0.0
        %3189 = vmatpush1.msra.mxu0 0.0
        %3190 = vmatprep.subr.mxu0 0.0
        %3191 = vmatpush1.msra.mxu0 0.0
        %3192 = vmatprep.subr.mxu0 0.0
        %3193 = vmatpush1.msra.mxu0 0.0
        %3194 = vmatprep.subr.mxu0 0.0
        %3195 = vmatpush1.msra.mxu0 0.0
        %3196 = vmatprep.subr.mxu0 0.0
        %3197 = vmatpush1.msra.mxu0 0.0
        %3198 = vmatprep.subr.mxu0 0.0
        %3199 = vmatpush1.msra.mxu0 0.0
        %3200 = vmatprep.subr.mxu0 0.0
        %3201 = vmatpush1.msra.mxu0 0.0
        %3202 = vmatprep.subr.mxu0 0.0
        %3203 = vmatpush1.msra.mxu0 0.0
        %3204 = vmatprep.subr.mxu0 0.0
        %3205 = vmatpush1.msra.mxu0 0.0
        %3206 = vmatprep.subr.mxu0 0.0
        %3207 = vmatpush1.msra.mxu0 0.0
        %3208 = vmatprep.subr.mxu0 0.0
        %3209 = vmatpush1.msra.mxu0 0.0
        %3210 = vmatprep.subr.mxu0 0.0
        %3211 = vmatpush1.msra.mxu0 0.0
        %3212 = vmatprep.subr.mxu0 0.0
        %3213 = vmatpush1.msra.mxu0 0.0
        %3214 = vmatprep.subr.mxu0 0.0
        %3215 = vmatpush1.msra.mxu0 0.0
        %3216 = vmatprep.subr.mxu0 0.0
        %3217 = vmatpush1.msra.mxu0 0.0
        %3218 = vmatprep.subr.mxu0 0.0
        %3219 = vmatpush1.msra.mxu0 0.0
        %3220 = vmatprep.subr.mxu0 0.0
        %3221 = vmatpush1.msra.mxu0 0.0
        %3222 = vmatprep.subr.mxu0 0.0
        %3223 = vmatpush1.msra.mxu0 0.0
        %3224 = vmatprep.mubr.f32.mxu0 0.0
        %3225 = vmatmul.mubr.f32.gmra.mrb[0].mxu0 %v3155
        %v3226 = vpop.f32.mrb[0].mxu0
        %v3227 = vadd.f32 %v3152, %v3226
        %v3228 = vpop.f32.mrb[0].mxu0
        %3229 = vmatprep.mubr.f32.mxu0 0.0
        %3230 = vmatmul.mubr.f32.gmra.mrb[0].mxu0 %v3158
        %v3231 = vpop.f32.mrb[0].mxu0
        %v3232 = vadd.f32 %v3152, %v3231
        %v3233 = vpop.f32.mrb[0].mxu0
        %3234 = vdwg.mxu0
        %v3235 = vadd.f32 %v3227, %v3137
        %v3236 = vadd.f32 %v3232, %v3138
        %vm3237 = vcmp.ge.f32.partialorder %v3235, 0.0
        %vm3238 = vcmp.ge.f32.partialorder %v3236, 0.0
        %v3239 = vmul.f32 %v3235, 0.01
        %v3240 = vmul.f32 %v3236, 0.01
        %v3241 = vsel %vm3237, %v3235, %v3239
        %v3242 = vsel %vm3238, %v3236, %v3240
        %3243 = vst.msk [vmem:[%s1363] sm:$0xff] %vm2178, %v2168
        %3244 = vst.msk [vmem:[%s1363 + $0x10] sm:$0xff] %vm2178, %v2169
        %3245 = vrot.lane.b32.xlu0 %v2705, 64
        %v3246 = vpop.permute.xlu0 %3245
        %3247 = vrot.lane.b32.xlu0 %v2706, 64
        %v3248 = vpop.permute.xlu0 %3247
        %vm3251 = vcmask 1048064
        %3252 = vst.msk [vmem:[%s1363] sm:$0xff] %vm3251, %v3246
        %3253 = vst.msk [vmem:[%s1363 + $0x10] sm:$0xff] %vm3251, %v3248
        %3254 = vst.msk [vmem:[%s1363 + $0x8] sm:$0xff] %vm2178, %v3241
        %3255 = vst.msk [vmem:[%s1363 + $0x18] sm:$0xff] %vm2178, %v3242
        %p3256 = scmp.lt.s32.totalorder %s59, 1
        %s3257 = scalar_select %p3256, %s59, 1
        %s3258 = smul.addr %s3257, 4
        %s3259 = smul.addr %s3258, 8
        %s3260 = scalar_lea.vmem %s24, %s3259
        // Predicated region
        $region173: #{mgat_forward.2} parent=115 // pred_check
          %p3261 = pneg %p691
        $region174: #{mgat_forward.2} parent=115 // pred_check_branch
          %3263 = sbr.rel (%p3261) target = $region176
        $region175: #{mgat_forward.2} parent=115 // pred_region
          _
        $region176: #{mgat_forward.2} parent=115 // pred_fallthru
          _
      $region116: #{mgat_forward.2} parent=5 // pred_fallthru
        _
      %p3264 = scmp.le.s32.totalorder 2, %s54
      // Predicated region
      $region177: #{mgat_forward.2} parent=5 // pred_check
        %p3265 = pneg %p3264
      $region178: #{mgat_forward.2} parent=5 // pred_check_branch
        %3267 = sbr.rel (%p3265) target = $region180
      $region179: #{mgat_forward.2} parent=5 // pred_region
        %s3268 = ssub.s32 %s54, 2
        // Predicated region
        $region181: #{mgat_forward.2} parent=179 // pred_check
          %p3269 = pneg %p697
        $region182: #{mgat_forward.2} parent=179 // pred_check_branch
          %3271 = sbr.rel (%p3269) target = $region184
        $region183: #{mgat_forward.2} parent=179 // pred_region
          %p3272 = scmp.lt.s32.totalorder %s60, 1
          %s3273 = scalar_select %p3272, %s60, 1
          %s3274 = smul.addr %s3273, 4
          %s3275 = smul.addr %s3274, 8
          %s3276 = scalar_lea.vmem %s24, %s3275
        $region184: #{mgat_forward.2} parent=179 // pred_fallthru
          _
      $region180: #{mgat_forward.2} parent=5 // pred_fallthru
        _
    $region6: #{mgat_forward.2} parent=1 // loop_footer
      %s58 = sadd.s32 1, %s54
    $region7: #{mgat_forward.2} parent=1 // loop_footer_branch
      %53 = sbr.rel target = $region3
    $region8: #{mgat_forward.2} parent=1 // loop_exit
      _
    %3277 = vsyncpa [#allocation4], 1
    %s3278 = scalar_lea.sflag [#allocation4], 1
    %3279 = vsyncpa %s3278, 1
    %3280 = vsyncpa [#allocation6], 1
    %s3281 = scalar_lea.sflag [#allocation6], 1
    %3282 = vsyncpa %s3281, 1
    %3283 = vsyncpa [#allocation9], 1
    %s3284 = scalar_lea.sflag [#allocation9], 1
    %3285 = vsyncpa %s3284, 1
    %3286 = vsyncpa [#allocation12], 1
    %s3287 = scalar_lea.sflag [#allocation12], 1
    %3288 = vsyncpa %s3287, 1
    %3289 = vsyncpa [#allocation15], 1
    %s3290 = scalar_lea.sflag [#allocation15], 1
    %3291 = vsyncpa %s3290, 1
    %3292 = vsyncpa [#allocation18], 1
    %s3293 = scalar_lea.sflag [#allocation18], 1
    %3294 = vsyncpa %s3293, 1
    %3295 = vsyncpa [#allocation21], 1
    %s3296 = scalar_lea.sflag [#allocation21], 1
    %3297 = vsyncpa %s3296, 1
    %3298 = vsyncpa [#allocation24], 1
    %s3299 = scalar_lea.sflag [#allocation24], 1
    %3300 = vsyncpa %s3299, 1

</llo_original>
